<compile_context>
chip_gen: v7x
topology: tpu7x:2x2x1
jax: 0.10.0
libtpu: 0.0.40
codegen_flags: <defaults>
</compile_context>

<pallas_src>
import functools

import jax
import jax.numpy as jnp
from jax.experimental import pallas as pl
from jax.experimental.pallas import tpu as pltpu


def _round_up(x, m):
    return (x + m - 1) // m * m


def _chip_vmem_capacity_bytes():
    try:
        return int(pltpu.get_tpu_info().vmem_capacity_bytes)
    except Exception:
        return 64 * 1024 * 1024  # conservative (v7x-sized) fallback


def _build_kernel(num_layers, t_blk, b_pad, h_pad, seq_len, compute_dtype):
    """Returns the fused multi-layer LSTM kernel body (closure over shapes)."""
    L = num_layers
    needs_mask = (seq_len % t_blk) != 0  # padded timesteps exist

    def kernel(*refs):
        x_ref = refs[0]                       # (T_blk*B_pad, Din_pad) compute_dtype
        w_hbm = refs[1:1 + 3 * L]             # per layer: wih, whh, bias (HBM)
        out_ref = refs[1 + 3 * L]             # (B_pad, H_pad) f32, resident
        sc = refs[2 + 3 * L:]
        w_sc = sc[:3 * L]                     # single-buffered VMEM weights
        h_sc, c_sc, gbuf, xbuf, dma_sem = sc[3 * L:]

        @pl.when(pl.program_id(0) == 0)
        def _init():
            h_sc[...] = jnp.zeros_like(h_sc)
            c_sc[...] = jnp.zeros_like(c_sc)
            # Start ALL weight copies now; each layer waits for its own three
            # right before its projection, so later layers' DMA hides behind
            # earlier layers' compute.
            for k in range(3 * L):
                pltpu.make_async_copy(w_hbm[k], w_sc[k], dma_sem.at[k]).start()

        # Cascade layers; within a layer, hoist the input projection for the
        # whole T_blk-step block into one matmul, then run the short
        # sequential recurrence (statically unrolled -> full LLO visibility).
        h_last = None
        for j in range(L):

            @pl.when(pl.program_id(0) == 0)
            def _wait_layer_weights(j=j):
                for k in range(3 * j, 3 * j + 3):
                    pltpu.make_async_copy(w_hbm[k], w_sc[k],
                                          dma_sem.at[k]).wait()

            wih = w_sc[3 * j][...]            # (in_dim_j, 4*H_pad) compute_dtype
            whh = w_sc[3 * j + 1][...]        # (H_pad,    4*H_pad) compute_dtype
            bias = w_sc[3 * j + 2][...]       # (1,        4*H_pad) f32

            # xblk is already compute_dtype (wrapper casts x; xbuf is bf16/f32).
            xblk = x_ref[...] if j == 0 else xbuf[...]
            # Hoisted input projection + fused bias for all T_blk timesteps.
            gbuf[...] = (
                jnp.dot(xblk, wih, preferred_element_type=jnp.float32) + bias)

            # Carry (h, c) in vregs across the unrolled time loop.
            h = h_sc[j]                       # one VMEM load (B_pad, H_pad) f32
            c = c_sc[j]
            for t in range(t_blk):
                gates = gbuf[t * b_pad:(t + 1) * b_pad, :] + jnp.dot(
                    h.astype(compute_dtype), whh,
                    preferred_element_type=jnp.float32)
                # Gate slices are 128-lane aligned (H_pad multiple of 128).
                i_g = jax.nn.sigmoid(gates[:, 0 * h_pad:1 * h_pad])
                f_g = jax.nn.sigmoid(gates[:, 1 * h_pad:2 * h_pad])
                g_g = jnp.tanh(gates[:, 2 * h_pad:3 * h_pad])
                o_g = jax.nn.sigmoid(gates[:, 3 * h_pad:4 * h_pad])
                c_new = f_g * c + i_g * g_g
                h_new = o_g * jnp.tanh(c_new)
                if needs_mask:
                    # Freeze the state on padded timesteps (exact f32 blend;
                    # cheap VPU filler on the latency-bound recurrence).
                    valid = ((pl.program_id(0) * t_blk + t) < seq_len)
                    m = valid.astype(jnp.float32)
                    c_new = m * c_new + (1.0 - m) * c
                    h_new = m * h_new + (1.0 - m) * h
                c = c_new
                h = h_new
                if j < L - 1:
                    # Becomes the next layer's input block (stays in VMEM,
                    # stored in compute_dtype -> halves vld bytes of the next
                    # projection in the bf16 path).
                    xbuf[t * b_pad:(t + 1) * b_pad, :] = h.astype(xbuf.dtype)
            h_sc[j] = h                       # one VMEM store per layer/block
            c_sc[j] = c
            h_last = h

        # Final state of the last layer; resident output block (constant
        # index_map) -> written back to HBM once at the end of the grid.
        out_ref[...] = h_last

    return kernel


@functools.partial(jax.jit, static_argnames=("compute_dtype", "time_block"))
def lstm_by_split_forward(inputs, params, compute_dtype=jnp.bfloat16,
                          time_block=32):
    """inputs: (S, B, input_size) f32.  Returns final h of last layer (B, H).

    compute_dtype=bf16 is a performance/precision trade-off mode (MXU operands
    bf16, accumulation and gate math f32); use jnp.float32 for exactness.
    time_block=32 fills the 256-row MXU on v6e/v7x with B_pad=8; ~16 suffices
    on v5e (128-row MXU).
    """
    S, B, Din = inputs.shape
    H = params[0][0].shape[-1]
    L = len(params)

    B_pad = _round_up(B, 8)          # fill sublanes / MXU rows
    H_pad = _round_up(H, 128)        # lane-tile aligned gates & output
    Din_pad = _round_up(Din, 8)
    T_blk = min(time_block, S)       # timesteps per grid step
    S_pad = _round_up(S, T_blk)

    # Pad input (zeros in padded batch rows / timesteps are masked or ignored)
    # and flatten time+batch so the kernel sees lane-dense 2-D blocks.  Cast to
    # compute_dtype here so the x HBM->VMEM DMA is halved in the bf16 path.
    x = jnp.zeros((S_pad, B_pad, Din_pad), compute_dtype)
    x = x.at[:S, :B, :Din].set(inputs.astype(compute_dtype))
    x2d = x.reshape(S_pad * B_pad, Din_pad)

    # Fuse the 4 gate weight matrices into lane-dense (in_dim, 4*H_pad) blocks
    # (gate g lives in columns [g*H_pad:(g+1)*H_pad]); fold bias_ih + bias_hh.
    flat_w = []
    scratch = []
    for j, (w_ih, w_hh, b_ih, b_hh) in enumerate(params):
        in_dim = w_ih.shape[1]
        in_dim_p = Din_pad if j == 0 else H_pad
        wih = jnp.transpose(w_ih, (1, 0, 2))                       # (in,4,H)
        wih = jnp.pad(wih, ((0, in_dim_p - in_dim), (0, 0), (0, H_pad - H)))
        wih = wih.reshape(in_dim_p, 4 * H_pad)
        whh = jnp.transpose(w_hh, (1, 0, 2))                       # (H,4,H)
        whh = jnp.pad(whh, ((0, H_pad - H), (0, 0), (0, H_pad - H)))
        whh = whh.reshape(H_pad, 4 * H_pad)
        bias = jnp.stack([b_ih[g] + b_hh[g] for g in range(4)])    # (4,H)
        bias = jnp.pad(bias, ((0, 0), (0, H_pad - H))).reshape(1, 4 * H_pad)

        flat_w += [wih.astype(compute_dtype), whh.astype(compute_dtype),
                   bias.astype(jnp.float32)]
        scratch += [pltpu.VMEM((in_dim_p, 4 * H_pad), compute_dtype),
                    pltpu.VMEM((H_pad, 4 * H_pad), compute_dtype),
                    pltpu.VMEM((1, 4 * H_pad), jnp.float32)]

    scratch += [
        pltpu.VMEM((L, B_pad, H_pad), jnp.float32),                # h carry
        pltpu.VMEM((L, B_pad, H_pad), jnp.float32),                # c carry
        pltpu.VMEM((T_blk * B_pad, 4 * H_pad), jnp.float32),       # gates block
        pltpu.VMEM((T_blk * B_pad, H_pad), compute_dtype),         # layer io blk
        pltpu.SemaphoreType.DMA((3 * L,)),
    ]

    in_specs = [pl.BlockSpec((T_blk * B_pad, Din_pad), lambda s: (s, 0))]
    in_specs += [pl.BlockSpec(memory_space=pl.ANY) for _ in range(3 * L)]
    # Constant block index -> output stays resident in VMEM across the grid;
    # only the final (B_pad, H_pad) state is ever written to HBM.
    out_spec = pl.BlockSpec((B_pad, H_pad), lambda s: (0, 0))

    # VMEM budget: weights are single-buffered (no 2x), only the x input block
    # is pipeline double-buffered; the output block is tiny and resident.
    wsize = jnp.dtype(compute_dtype).itemsize
    w_bytes = sum(((Din_pad if j == 0 else H_pad) + H_pad) * 4 * H_pad * wsize
                  + 4 * H_pad * 4 for j in range(L))
    state_bytes = 2 * L * B_pad * H_pad * 4
    gbuf_bytes = T_blk * B_pad * 4 * H_pad * 4
    xbuf_bytes = T_blk * B_pad * H_pad * wsize
    x_pipe_bytes = 2 * T_blk * B_pad * Din_pad * wsize
    out_pipe_bytes = 2 * B_pad * H_pad * 4
    est = (w_bytes + state_bytes + gbuf_bytes + xbuf_bytes
           + x_pipe_bytes + out_pipe_bytes)
    chip_vmem = _chip_vmem_capacity_bytes()
    vmem_limit = int(min(max(int(est * 1.3) + (4 << 20), 32 << 20),
                         int(chip_vmem * 0.85)))

    out = pl.pallas_call(
        _build_kernel(L, T_blk, B_pad, H_pad, S, compute_dtype),
        out_shape=jax.ShapeDtypeStruct((B_pad, H_pad), jnp.float32),
        grid_spec=pltpu.PrefetchScalarGridSpec(
            num_scalar_prefetch=0,
            grid=(S_pad // T_blk,),
            in_specs=in_specs,
            out_specs=out_spec,
            scratch_shapes=scratch),
        compiler_params=pltpu.CompilerParams(
            dimension_semantics=("arbitrary",),
            vmem_limit_bytes=vmem_limit),
    )(x2d, *flat_w)

    # Unpad: h of the last layer at the last real timestep.
    return out[:B, :H]


def init_params(key, input_size, hidden_size, num_layers):
    """Deterministic parameter init matching LSTMCell shapes."""
    params = []
    in_dim = input_size
    for _ in range(num_layers):
        key, k_ih, k_hh, *k_b = jax.random.split(key, 11)
        lim_ih = (6.0 / (in_dim + hidden_size)) ** 0.5
        lim_hh = (6.0 / (hidden_size + hidden_size)) ** 0.5
        w_ih = jax.random.uniform(
            k_ih, (4, in_dim, hidden_size), jnp.float32, -lim_ih, lim_ih)
        w_hh = jax.random.uniform(
            k_hh, (4, hidden_size, hidden_size), jnp.float32, -lim_hh, lim_hh)
        b_ih = [jax.random.normal(k_b[g], (hidden_size,), jnp.float32)
                for g in range(4)]
        b_hh = [jax.random.normal(k_b[4 + g], (hidden_size,), jnp.float32)
                for g in range(4)]
        params.append((w_ih, w_hh, b_ih, b_hh))
        in_dim = hidden_size
    return params


def lstm_reference(inputs, params):
    """Pure-JAX reference reproducing the PyTorch forward exactly."""
    S, B, _ = inputs.shape
    H = params[0][0].shape[-1]
    num_layers = len(params)
    state_c = [jnp.zeros((B, H), jnp.float32) for _ in range(num_layers)]
    state_h = [jnp.zeros((B, H), jnp.float32) for _ in range(num_layers)]
    for i in range(S):
        cur = inputs[i]
        for j, (w_ih, w_hh, b_ih, b_hh) in enumerate(params):
            c, h = state_c[j], state_h[j]
            ih = jnp.matmul(cur, w_ih)   # (4, B, H)
            hh = jnp.matmul(h, w_hh)     # (4, B, H)
            ingate = jax.nn.sigmoid(ih[0] + b_ih[0] + hh[0] + b_hh[0])
            forgetgate = jax.nn.sigmoid(ih[1] + b_ih[1] + hh[1] + b_hh[1])
            cellgate = jnp.tanh(ih[2] + b_ih[2] + hh[2] + b_hh[2])
            outgate = jax.nn.sigmoid(ih[3] + b_ih[3] + hh[3] + b_hh[3])
            c = forgetgate * c + ingate * cellgate
            h = outgate * jnp.tanh(c)
            state_c[j], state_h[j] = c, h
            cur = h
    return state_h[num_layers - 1]


if __name__ == "__main__":
    seq_len = 8
    batch_size = 2
    input_size = 16
    hidden_size = 32
    num_layers = 3

    key = jax.random.PRNGKey(0)
    k_in, k_par = jax.random.split(key)
    inputs = jax.random.normal(
        k_in, (seq_len, batch_size, input_size), jnp.float32)
    params = init_params(k_par, input_size, hidden_size, num_layers)

    ref = lstm_reference(inputs, params)

    # Exactness check: f32 operands must match the reference tightly.
    # time_block=4 -> grid of 2 steps, exercising the cross-step state carry.
    out_f32 = jax.block_until_ready(
        lstm_by_split_forward(inputs, params,
                              compute_dtype=jnp.float32, time_block=4))
    assert out_f32.shape == (batch_size, hidden_size)
    err_f32 = float(jnp.max(jnp.abs(out_f32 - ref)))
    assert err_f32 < 1e-4, f"f32 max err {err_f32}"

    # Padded-timestep masking path: time_block=3 -> S_pad=9 > S, the final
    # grid step contains one padded timestep that must leave the state frozen.
    out_msk = jax.block_until_ready(
        lstm_by_split_forward(inputs, params,
                              compute_dtype=jnp.float32, time_block=3))
    err_msk = float(jnp.max(jnp.abs(out_msk - ref)))
    assert err_msk < 1e-4, f"masked f32 max err {err_msk}"

    # Performance path: bf16 MXU operands, f32 accumulation and gate math.
    out_bf16 = jax.block_until_ready(
        lstm_by_split_forward(inputs, params,
                              compute_dtype=jnp.bfloat16, time_block=4))
    assert bool(jnp.all(jnp.isfinite(out_bf16)))
    err_bf16 = float(jnp.max(jnp.abs(out_bf16 - ref)))
    assert err_bf16 < 1.5e-1, f"bf16 max err {err_bf16}"

    print("KERNEL_OK")
</pallas_src>

<mosaic_0001>
module attributes {stable_mosaic.version = 11 : i64} {
  func.func @kernel(%arg0: i32, %arg1: memref<32x16xf32, #tpu.memory_space<vmem>>, %arg2: memref<16x512xf32, #tpu.memory_space<any>>, %arg3: memref<128x512xf32, #tpu.memory_space<any>>, %arg4: memref<1x512xf32, #tpu.memory_space<any>>, %arg5: memref<128x512xf32, #tpu.memory_space<any>>, %arg6: memref<128x512xf32, #tpu.memory_space<any>>, %arg7: memref<1x512xf32, #tpu.memory_space<any>>, %arg8: memref<128x512xf32, #tpu.memory_space<any>>, %arg9: memref<128x512xf32, #tpu.memory_space<any>>, %arg10: memref<1x512xf32, #tpu.memory_space<any>>, %arg11: memref<8x128xf32, #tpu.memory_space<vmem>>, %arg12: memref<16x512xf32, #tpu.memory_space<vmem>>, %arg13: memref<128x512xf32, #tpu.memory_space<vmem>>, %arg14: memref<1x512xf32, #tpu.memory_space<vmem>>, %arg15: memref<128x512xf32, #tpu.memory_space<vmem>>, %arg16: memref<128x512xf32, #tpu.memory_space<vmem>>, %arg17: memref<1x512xf32, #tpu.memory_space<vmem>>, %arg18: memref<128x512xf32, #tpu.memory_space<vmem>>, %arg19: memref<128x512xf32, #tpu.memory_space<vmem>>, %arg20: memref<1x512xf32, #tpu.memory_space<vmem>>, %arg21: memref<3x8x128xf32, #tpu.memory_space<vmem>>, %arg22: memref<3x8x128xf32, #tpu.memory_space<vmem>>, %arg23: memref<32x512xf32, #tpu.memory_space<vmem>>, %arg24: memref<32x128xf32, #tpu.memory_space<vmem>>, %arg25: memref<9x!tpu.dma_semaphore, #tpu.memory_space<semaphore_mem>>) attributes {dimension_semantics = [#tpu.dimension_semantics<arbitrary>], iteration_bounds = array<i64: 2>, scalar_prefetch = 0 : i64, scratch_operands = 14 : i64, tpu.core_type = #tpu.core_type<tc>, window_params = [{transform_indices = @transform_0, window_bounds = array<i64: 32, 16>}, {}, {}, {}, {}, {}, {}, {}, {}, {}, {pipeline_mode = #tpu.pipeline_mode<synchronous>, transform_indices = @transform_10, window_bounds = array<i64: 8, 128>}]} {
    %c0_i32 = arith.constant 0 : i32
    %0 = arith.cmpi eq, %arg0, %c0_i32 : i32
    %1 = arith.extui %0 : i1 to i32
    %c0_i32_0 = arith.constant 0 : i32
    %2 = arith.cmpi ne, %1, %c0_i32_0 : i32
    scf.if %2 {
      %cst_159 = arith.constant 0.000000e+00 : f32
      %411 = vector.broadcast %cst_159 : f32 to vector<3x8x128xf32>
      %c0_160 = arith.constant 0 : index
      %c0_161 = arith.constant 0 : index
      %c0_162 = arith.constant 0 : index
      %412 = vector.load %arg21[%c0_160, %c0_161, %c0_162] : memref<3x8x128xf32, #tpu.memory_space<vmem>>, vector<3x8x128xf32>
      tpu.vector_store %arg21[%c0_160, %c0_161, %c0_162], %411 {strides = array<i32>} : memref<3x8x128xf32, #tpu.memory_space<vmem>>, vector<3x8x128xf32>,
      %cst_163 = arith.constant 0.000000e+00 : f32
      %413 = vector.broadcast %cst_163 : f32 to vector<3x8x128xf32>
      %c0_164 = arith.constant 0 : index
      %c0_165 = arith.constant 0 : index
      %c0_166 = arith.constant 0 : index
      %414 = vector.load %arg22[%c0_164, %c0_165, %c0_166] : memref<3x8x128xf32, #tpu.memory_space<vmem>>, vector<3x8x128xf32>
      tpu.vector_store %arg22[%c0_164, %c0_165, %c0_166], %413 {strides = array<i32>} : memref<3x8x128xf32, #tpu.memory_space<vmem>>, vector<3x8x128xf32>,
      %c0_i32_167 = arith.constant 0 : i32
      %415 = tpu.memref_slice %arg25[%c0_i32_167] : memref<9x!tpu.dma_semaphore, #tpu.memory_space<semaphore_mem>> -> memref<1x!tpu.dma_semaphore, #tpu.memory_space<semaphore_mem>>
      %416 = tpu.memref_squeeze %415 : memref<1x!tpu.dma_semaphore, #tpu.memory_space<semaphore_mem>> -> memref<!tpu.dma_semaphore, #tpu.memory_space<semaphore_mem>>
      tpu.enqueue_dma source(%arg2 : memref<16x512xf32, #tpu.memory_space<any>>) target(%arg12 : memref<16x512xf32, #tpu.memory_space<vmem>>) target_semaphore(%416 : memref<!tpu.dma_semaphore, #tpu.memory_space<semaphore_mem>>)
      %c1_i32 = arith.constant 1 : i32
      %417 = tpu.memref_slice %arg25[%c1_i32] : memref<9x!tpu.dma_semaphore, #tpu.memory_space<semaphore_mem>> -> memref<1x!tpu.dma_semaphore, #tpu.memory_space<semaphore_mem>>
      %418 = tpu.memref_squeeze %417 : memref<1x!tpu.dma_semaphore, #tpu.memory_space<semaphore_mem>> -> memref<!tpu.dma_semaphore, #tpu.memory_space<semaphore_mem>>
      tpu.enqueue_dma source(%arg3 : memref<128x512xf32, #tpu.memory_space<any>>) target(%arg13 : memref<128x512xf32, #tpu.memory_space<vmem>>) target_semaphore(%418 : memref<!tpu.dma_semaphore, #tpu.memory_space<semaphore_mem>>)
      %c2_i32 = arith.constant 2 : i32
      %419 = tpu.memref_slice %arg25[%c2_i32] : memref<9x!tpu.dma_semaphore, #tpu.memory_space<semaphore_mem>> -> memref<1x!tpu.dma_semaphore, #tpu.memory_space<semaphore_mem>>
      %420 = tpu.memref_squeeze %419 : memref<1x!tpu.dma_semaphore, #tpu.memory_space<semaphore_mem>> -> memref<!tpu.dma_semaphore, #tpu.memory_space<semaphore_mem>>
      tpu.enqueue_dma source(%arg4 : memref<1x512xf32, #tpu.memory_space<any>>) target(%arg14 : memref<1x512xf32, #tpu.memory_space<vmem>>) target_semaphore(%420 : memref<!tpu.dma_semaphore, #tpu.memory_space<semaphore_mem>>)
      %c3_i32 = arith.constant 3 : i32
      %421 = tpu.memref_slice %arg25[%c3_i32] : memref<9x!tpu.dma_semaphore, #tpu.memory_space<semaphore_mem>> -> memref<1x!tpu.dma_semaphore, #tpu.memory_space<semaphore_mem>>
      %422 = tpu.memref_squeeze %421 : memref<1x!tpu.dma_semaphore, #tpu.memory_space<semaphore_mem>> -> memref<!tpu.dma_semaphore, #tpu.memory_space<semaphore_mem>>
      tpu.enqueue_dma source(%arg5 : memref<128x512xf32, #tpu.memory_space<any>>) target(%arg15 : memref<128x512xf32, #tpu.memory_space<vmem>>) target_semaphore(%422 : memref<!tpu.dma_semaphore, #tpu.memory_space<semaphore_mem>>)
      %c4_i32 = arith.constant 4 : i32
      %423 = tpu.memref_slice %arg25[%c4_i32] : memref<9x!tpu.dma_semaphore, #tpu.memory_space<semaphore_mem>> -> memref<1x!tpu.dma_semaphore, #tpu.memory_space<semaphore_mem>>
      %424 = tpu.memref_squeeze %423 : memref<1x!tpu.dma_semaphore, #tpu.memory_space<semaphore_mem>> -> memref<!tpu.dma_semaphore, #tpu.memory_space<semaphore_mem>>
      tpu.enqueue_dma source(%arg6 : memref<128x512xf32, #tpu.memory_space<any>>) target(%arg16 : memref<128x512xf32, #tpu.memory_space<vmem>>) target_semaphore(%424 : memref<!tpu.dma_semaphore, #tpu.memory_space<semaphore_mem>>)
      %c5_i32 = arith.constant 5 : i32
      %425 = tpu.memref_slice %arg25[%c5_i32] : memref<9x!tpu.dma_semaphore, #tpu.memory_space<semaphore_mem>> -> memref<1x!tpu.dma_semaphore, #tpu.memory_space<semaphore_mem>>
      %426 = tpu.memref_squeeze %425 : memref<1x!tpu.dma_semaphore, #tpu.memory_space<semaphore_mem>> -> memref<!tpu.dma_semaphore, #tpu.memory_space<semaphore_mem>>
      tpu.enqueue_dma source(%arg7 : memref<1x512xf32, #tpu.memory_space<any>>) target(%arg17 : memref<1x512xf32, #tpu.memory_space<vmem>>) target_semaphore(%426 : memref<!tpu.dma_semaphore, #tpu.memory_space<semaphore_mem>>)
      %c6_i32 = arith.constant 6 : i32
      %427 = tpu.memref_slice %arg25[%c6_i32] : memref<9x!tpu.dma_semaphore, #tpu.memory_space<semaphore_mem>> -> memref<1x!tpu.dma_semaphore, #tpu.memory_space<semaphore_mem>>
      %428 = tpu.memref_squeeze %427 : memref<1x!tpu.dma_semaphore, #tpu.memory_space<semaphore_mem>> -> memref<!tpu.dma_semaphore, #tpu.memory_space<semaphore_mem>>
      tpu.enqueue_dma source(%arg8 : memref<128x512xf32, #tpu.memory_space<any>>) target(%arg18 : memref<128x512xf32, #tpu.memory_space<vmem>>) target_semaphore(%428 : memref<!tpu.dma_semaphore, #tpu.memory_space<semaphore_mem>>)
      %c7_i32 = arith.constant 7 : i32
      %429 = tpu.memref_slice %arg25[%c7_i32] : memref<9x!tpu.dma_semaphore, #tpu.memory_space<semaphore_mem>> -> memref<1x!tpu.dma_semaphore, #tpu.memory_space<semaphore_mem>>
      %430 = tpu.memref_squeeze %429 : memref<1x!tpu.dma_semaphore, #tpu.memory_space<semaphore_mem>> -> memref<!tpu.dma_semaphore, #tpu.memory_space<semaphore_mem>>
      tpu.enqueue_dma source(%arg9 : memref<128x512xf32, #tpu.memory_space<any>>) target(%arg19 : memref<128x512xf32, #tpu.memory_space<vmem>>) target_semaphore(%430 : memref<!tpu.dma_semaphore, #tpu.memory_space<semaphore_mem>>)
      %c8_i32 = arith.constant 8 : i32
      %431 = tpu.memref_slice %arg25[%c8_i32] : memref<9x!tpu.dma_semaphore, #tpu.memory_space<semaphore_mem>> -> memref<1x!tpu.dma_semaphore, #tpu.memory_space<semaphore_mem>>
      %432 = tpu.memref_squeeze %431 : memref<1x!tpu.dma_semaphore, #tpu.memory_space<semaphore_mem>> -> memref<!tpu.dma_semaphore, #tpu.memory_space<semaphore_mem>>
      tpu.enqueue_dma source(%arg10 : memref<1x512xf32, #tpu.memory_space<any>>) target(%arg20 : memref<1x512xf32, #tpu.memory_space<vmem>>) target_semaphore(%432 : memref<!tpu.dma_semaphore, #tpu.memory_space<semaphore_mem>>)
    } else {
    }
    %c0_i32_1 = arith.constant 0 : i32
    %3 = arith.cmpi eq, %arg0, %c0_i32_1 : i32
    %4 = arith.extui %3 : i1 to i32
    %c0_i32_2 = arith.constant 0 : i32
    %5 = arith.cmpi ne, %4, %c0_i32_2 : i32
    scf.if %5 {
      %c0_i32_159 = arith.constant 0 : i32
      %411 = tpu.memref_slice %arg25[%c0_i32_159] : memref<9x!tpu.dma_semaphore, #tpu.memory_space<semaphore_mem>> -> memref<1x!tpu.dma_semaphore, #tpu.memory_space<semaphore_mem>>
      %412 = tpu.memref_squeeze %411 : memref<1x!tpu.dma_semaphore, #tpu.memory_space<semaphore_mem>> -> memref<!tpu.dma_semaphore, #tpu.memory_space<semaphore_mem>>
      tpu.wait_dma2 semaphore(%412 : memref<!tpu.dma_semaphore, #tpu.memory_space<semaphore_mem>>) src(%arg2 : memref<16x512xf32, #tpu.memory_space<any>>) dst(%arg12 : memref<16x512xf32, #tpu.memory_space<vmem>>)
      %c1_i32 = arith.constant 1 : i32
      %413 = tpu.memref_slice %arg25[%c1_i32] : memref<9x!tpu.dma_semaphore, #tpu.memory_space<semaphore_mem>> -> memref<1x!tpu.dma_semaphore, #tpu.memory_space<semaphore_mem>>
      %414 = tpu.memref_squeeze %413 : memref<1x!tpu.dma_semaphore, #tpu.memory_space<semaphore_mem>> -> memref<!tpu.dma_semaphore, #tpu.memory_space<semaphore_mem>>
      tpu.wait_dma2 semaphore(%414 : memref<!tpu.dma_semaphore, #tpu.memory_space<semaphore_mem>>) src(%arg3 : memref<128x512xf32, #tpu.memory_space<any>>) dst(%arg13 : memref<128x512xf32, #tpu.memory_space<vmem>>)
      %c2_i32 = arith.constant 2 : i32
      %415 = tpu.memref_slice %arg25[%c2_i32] : memref<9x!tpu.dma_semaphore, #tpu.memory_space<semaphore_mem>> -> memref<1x!tpu.dma_semaphore, #tpu.memory_space<semaphore_mem>>
      %416 = tpu.memref_squeeze %415 : memref<1x!tpu.dma_semaphore, #tpu.memory_space<semaphore_mem>> -> memref<!tpu.dma_semaphore, #tpu.memory_space<semaphore_mem>>
      tpu.wait_dma2 semaphore(%416 : memref<!tpu.dma_semaphore, #tpu.memory_space<semaphore_mem>>) src(%arg4 : memref<1x512xf32, #tpu.memory_space<any>>) dst(%arg14 : memref<1x512xf32, #tpu.memory_space<vmem>>)
    } else {
    }
    %c0 = arith.constant 0 : index
    %c0_3 = arith.constant 0 : index
    %6 = vector.load %arg12[%c0, %c0_3] : memref<16x512xf32, #tpu.memory_space<vmem>>, vector<16x512xf32>
    %c0_4 = arith.constant 0 : index
    %c0_5 = arith.constant 0 : index
    %7 = vector.load %arg13[%c0_4, %c0_5] : memref<128x512xf32, #tpu.memory_space<vmem>>, vector<128x512xf32>
    %c0_6 = arith.constant 0 : index
    %c0_7 = arith.constant 0 : index
    %8 = vector.load %arg14[%c0_6, %c0_7] : memref<1x512xf32, #tpu.memory_space<vmem>>, vector<1x512xf32>
    %c0_8 = arith.constant 0 : index
    %c0_9 = arith.constant 0 : index
    %9 = vector.load %arg1[%c0_8, %c0_9] : memref<32x16xf32, #tpu.memory_space<vmem>>, vector<32x16xf32>
    %cst = arith.constant dense<0.000000e+00> : vector<32x512xf32>
    %10 = tpu.matmul %9, %6, %cst {dimension_numbers = #tpu.dot_dimension_numbers<[1], [0], [0], [1], [0, 0, 1, 1], [], []>} : vector<32x16xf32>, vector<16x512xf32>, vector<32x512xf32> -> vector<32x512xf32>
    %11 = vector.broadcast %8 : vector<1x512xf32> to vector<32x512xf32>
    %12 = arith.addf %10, %11 : vector<32x512xf32>
    %c0_10 = arith.constant 0 : index
    %c0_11 = arith.constant 0 : index
    %13 = vector.load %arg23[%c0_10, %c0_11] : memref<32x512xf32, #tpu.memory_space<vmem>>, vector<32x512xf32>
    tpu.vector_store %arg23[%c0_10, %c0_11], %12 {strides = array<i32>} : memref<32x512xf32, #tpu.memory_space<vmem>>, vector<32x512xf32>,
    %c0_12 = arith.constant 0 : index
    %c0_13 = arith.constant 0 : index
    %c0_14 = arith.constant 0 : index
    %14 = vector.load %arg21[%c0_12, %c0_13, %c0_14] : memref<3x8x128xf32, #tpu.memory_space<vmem>>, vector<1x8x128xf32>
    %15 = vector.shape_cast %14 : vector<1x8x128xf32> to vector<8x128xf32>
    %c0_15 = arith.constant 0 : index
    %c0_16 = arith.constant 0 : index
    %c0_17 = arith.constant 0 : index
    %16 = vector.load %arg22[%c0_15, %c0_16, %c0_17] : memref<3x8x128xf32, #tpu.memory_space<vmem>>, vector<1x8x128xf32>
    %17 = vector.shape_cast %16 : vector<1x8x128xf32> to vector<8x128xf32>
    %c0_18 = arith.constant 0 : index
    %c0_19 = arith.constant 0 : index
    %18 = vector.load %arg23[%c0_18, %c0_19] : memref<32x512xf32, #tpu.memory_space<vmem>>, vector<8x512xf32>
    %cst_20 = arith.constant dense<0.000000e+00> : vector<8x512xf32>
    %19 = tpu.matmul %15, %7, %cst_20 {dimension_numbers = #tpu.dot_dimension_numbers<[1], [0], [0], [1], [0, 0, 1, 1], [], []>} : vector<8x128xf32>, vector<128x512xf32>, vector<8x512xf32> -> vector<8x512xf32>
    %20 = arith.addf %18, %19 : vector<8x512xf32>
    %21 = vector.extract_strided_slice %20 {offsets = [0, 0], sizes = [8, 128], strides = [1, 1]} : vector<8x512xf32> to vector<8x128xf32>
    %22 = arith.negf %21 : vector<8x128xf32>
    %23 = math.exp %22 : vector<8x128xf32>
    %cst_21 = arith.constant 1.000000e+00 : f32
    %24 = vector.broadcast %cst_21 : f32 to vector<8x128xf32>
    %25 = arith.addf %24, %23 : vector<8x128xf32>
    %26 = arith.divf %24, %25 : vector<8x128xf32>
    %27 = vector.extract_strided_slice %20 {offsets = [0, 128], sizes = [8, 128], strides = [1, 1]} : vector<8x512xf32> to vector<8x128xf32>
    %28 = arith.negf %27 : vector<8x128xf32>
    %29 = math.exp %28 : vector<8x128xf32>
    %cst_22 = arith.constant 1.000000e+00 : f32
    %30 = vector.broadcast %cst_22 : f32 to vector<8x128xf32>
    %31 = arith.addf %30, %29 : vector<8x128xf32>
    %32 = arith.divf %30, %31 : vector<8x128xf32>
    %33 = vector.extract_strided_slice %20 {offsets = [0, 256], sizes = [8, 128], strides = [1, 1]} : vector<8x512xf32> to vector<8x128xf32>
    %34 = math.tanh %33 : vector<8x128xf32>
    %35 = vector.extract_strided_slice %20 {offsets = [0, 384], sizes = [8, 128], strides = [1, 1]} : vector<8x512xf32> to vector<8x128xf32>
    %36 = arith.negf %35 : vector<8x128xf32>
    %37 = math.exp %36 : vector<8x128xf32>
    %cst_23 = arith.constant 1.000000e+00 : f32
    %38 = vector.broadcast %cst_23 : f32 to vector<8x128xf32>
    %39 = arith.addf %38, %37 : vector<8x128xf32>
    %40 = arith.divf %38, %39 : vector<8x128xf32>
    %41 = arith.mulf %32, %17 : vector<8x128xf32>
    %42 = arith.mulf %26, %34 : vector<8x128xf32>
    %43 = arith.addf %41, %42 : vector<8x128xf32>
    %44 = math.tanh %43 : vector<8x128xf32>
    %45 = arith.mulf %40, %44 : vector<8x128xf32>
    %c0_24 = arith.constant 0 : index
    %c0_25 = arith.constant 0 : index
    %46 = vector.load %arg24[%c0_24, %c0_25] : memref<32x128xf32, #tpu.memory_space<vmem>>, vector<8x128xf32>
    tpu.vector_store %arg24[%c0_24, %c0_25], %45 {strides = array<i32>} : memref<32x128xf32, #tpu.memory_space<vmem>>, vector<8x128xf32>,
    %c8 = arith.constant 8 : index
    %c0_26 = arith.constant 0 : index
    %47 = vector.load %arg23[%c8, %c0_26] : memref<32x512xf32, #tpu.memory_space<vmem>>, vector<8x512xf32>
    %cst_27 = arith.constant dense<0.000000e+00> : vector<8x512xf32>
    %48 = tpu.matmul %45, %7, %cst_27 {dimension_numbers = #tpu.dot_dimension_numbers<[1], [0], [0], [1], [0, 0, 1, 1], [], []>} : vector<8x128xf32>, vector<128x512xf32>, vector<8x512xf32> -> vector<8x512xf32>
    %49 = arith.addf %47, %48 : vector<8x512xf32>
    %50 = vector.extract_strided_slice %49 {offsets = [0, 0], sizes = [8, 128], strides = [1, 1]} : vector<8x512xf32> to vector<8x128xf32>
    %51 = arith.negf %50 : vector<8x128xf32>
    %52 = math.exp %51 : vector<8x128xf32>
    %cst_28 = arith.constant 1.000000e+00 : f32
    %53 = vector.broadcast %cst_28 : f32 to vector<8x128xf32>
    %54 = arith.addf %53, %52 : vector<8x128xf32>
    %55 = arith.divf %53, %54 : vector<8x128xf32>
    %56 = vector.extract_strided_slice %49 {offsets = [0, 128], sizes = [8, 128], strides = [1, 1]} : vector<8x512xf32> to vector<8x128xf32>
    %57 = arith.negf %56 : vector<8x128xf32>
    %58 = math.exp %57 : vector<8x128xf32>
    %cst_29 = arith.constant 1.000000e+00 : f32
    %59 = vector.broadcast %cst_29 : f32 to vector<8x128xf32>
    %60 = arith.addf %59, %58 : vector<8x128xf32>
    %61 = arith.divf %59, %60 : vector<8x128xf32>
    %62 = vector.extract_strided_slice %49 {offsets = [0, 256], sizes = [8, 128], strides = [1, 1]} : vector<8x512xf32> to vector<8x128xf32>
    %63 = math.tanh %62 : vector<8x128xf32>
    %64 = vector.extract_strided_slice %49 {offsets = [0, 384], sizes = [8, 128], strides = [1, 1]} : vector<8x512xf32> to vector<8x128xf32>
    %65 = arith.negf %64 : vector<8x128xf32>
    %66 = math.exp %65 : vector<8x128xf32>
    %cst_30 = arith.constant 1.000000e+00 : f32
    %67 = vector.broadcast %cst_30 : f32 to vector<8x128xf32>
    %68 = arith.addf %67, %66 : vector<8x128xf32>
    %69 = arith.divf %67, %68 : vector<8x128xf32>
    %70 = arith.mulf %61, %43 : vector<8x128xf32>
    %71 = arith.mulf %55, %63 : vector<8x128xf32>
    %72 = arith.addf %70, %71 : vector<8x128xf32>
    %73 = math.tanh %72 : vector<8x128xf32>
    %74 = arith.mulf %69, %73 : vector<8x128xf32>
    %c8_31 = arith.constant 8 : index
    %c0_32 = arith.constant 0 : index
    %75 = vector.load %arg24[%c8_31, %c0_32] : memref<32x128xf32, #tpu.memory_space<vmem>>, vector<8x128xf32>
    tpu.vector_store %arg24[%c8_31, %c0_32], %74 {strides = array<i32>} : memref<32x128xf32, #tpu.memory_space<vmem>>, vector<8x128xf32>,
    %c16 = arith.constant 16 : index
    %c0_33 = arith.constant 0 : index
    %76 = vector.load %arg23[%c16, %c0_33] : memref<32x512xf32, #tpu.memory_space<vmem>>, vector<8x512xf32>
    %cst_34 = arith.constant dense<0.000000e+00> : vector<8x512xf32>
    %77 = tpu.matmul %74, %7, %cst_34 {dimension_numbers = #tpu.dot_dimension_numbers<[1], [0], [0], [1], [0, 0, 1, 1], [], []>} : vector<8x128xf32>, vector<128x512xf32>, vector<8x512xf32> -> vector<8x512xf32>
    %78 = arith.addf %76, %77 : vector<8x512xf32>
    %79 = vector.extract_strided_slice %78 {offsets = [0, 0], sizes = [8, 128], strides = [1, 1]} : vector<8x512xf32> to vector<8x128xf32>
    %80 = arith.negf %79 : vector<8x128xf32>
    %81 = math.exp %80 : vector<8x128xf32>
    %cst_35 = arith.constant 1.000000e+00 : f32
    %82 = vector.broadcast %cst_35 : f32 to vector<8x128xf32>
    %83 = arith.addf %82, %81 : vector<8x128xf32>
    %84 = arith.divf %82, %83 : vector<8x128xf32>
    %85 = vector.extract_strided_slice %78 {offsets = [0, 128], sizes = [8, 128], strides = [1, 1]} : vector<8x512xf32> to vector<8x128xf32>
    %86 = arith.negf %85 : vector<8x128xf32>
    %87 = math.exp %86 : vector<8x128xf32>
    %cst_36 = arith.constant 1.000000e+00 : f32
    %88 = vector.broadcast %cst_36 : f32 to vector<8x128xf32>
    %89 = arith.addf %88, %87 : vector<8x128xf32>
    %90 = arith.divf %88, %89 : vector<8x128xf32>
    %91 = vector.extract_strided_slice %78 {offsets = [0, 256], sizes = [8, 128], strides = [1, 1]} : vector<8x512xf32> to vector<8x128xf32>
    %92 = math.tanh %91 : vector<8x128xf32>
    %93 = vector.extract_strided_slice %78 {offsets = [0, 384], sizes = [8, 128], strides = [1, 1]} : vector<8x512xf32> to vector<8x128xf32>
    %94 = arith.negf %93 : vector<8x128xf32>
    %95 = math.exp %94 : vector<8x128xf32>
    %cst_37 = arith.constant 1.000000e+00 : f32
    %96 = vector.broadcast %cst_37 : f32 to vector<8x128xf32>
    %97 = arith.addf %96, %95 : vector<8x128xf32>
    %98 = arith.divf %96, %97 : vector<8x128xf32>
    %99 = arith.mulf %90, %72 : vector<8x128xf32>
    %100 = arith.mulf %84, %92 : vector<8x128xf32>
    %101 = arith.addf %99, %100 : vector<8x128xf32>
    %102 = math.tanh %101 : vector<8x128xf32>
    %103 = arith.mulf %98, %102 : vector<8x128xf32>
    %c16_38 = arith.constant 16 : index
    %c0_39 = arith.constant 0 : index
    %104 = vector.load %arg24[%c16_38, %c0_39] : memref<32x128xf32, #tpu.memory_space<vmem>>, vector<8x128xf32>
    tpu.vector_store %arg24[%c16_38, %c0_39], %103 {strides = array<i32>} : memref<32x128xf32, #tpu.memory_space<vmem>>, vector<8x128xf32>,
    %c24 = arith.constant 24 : index
    %c0_40 = arith.constant 0 : index
    %105 = vector.load %arg23[%c24, %c0_40] : memref<32x512xf32, #tpu.memory_space<vmem>>, vector<8x512xf32>
    %cst_41 = arith.constant dense<0.000000e+00> : vector<8x512xf32>
    %106 = tpu.matmul %103, %7, %cst_41 {dimension_numbers = #tpu.dot_dimension_numbers<[1], [0], [0], [1], [0, 0, 1, 1], [], []>} : vector<8x128xf32>, vector<128x512xf32>, vector<8x512xf32> -> vector<8x512xf32>
    %107 = arith.addf %105, %106 : vector<8x512xf32>
    %108 = vector.extract_strided_slice %107 {offsets = [0, 0], sizes = [8, 128], strides = [1, 1]} : vector<8x512xf32> to vector<8x128xf32>
    %109 = arith.negf %108 : vector<8x128xf32>
    %110 = math.exp %109 : vector<8x128xf32>
    %cst_42 = arith.constant 1.000000e+00 : f32
    %111 = vector.broadcast %cst_42 : f32 to vector<8x128xf32>
    %112 = arith.addf %111, %110 : vector<8x128xf32>
    %113 = arith.divf %111, %112 : vector<8x128xf32>
    %114 = vector.extract_strided_slice %107 {offsets = [0, 128], sizes = [8, 128], strides = [1, 1]} : vector<8x512xf32> to vector<8x128xf32>
    %115 = arith.negf %114 : vector<8x128xf32>
    %116 = math.exp %115 : vector<8x128xf32>
    %cst_43 = arith.constant 1.000000e+00 : f32
    %117 = vector.broadcast %cst_43 : f32 to vector<8x128xf32>
    %118 = arith.addf %117, %116 : vector<8x128xf32>
    %119 = arith.divf %117, %118 : vector<8x128xf32>
    %120 = vector.extract_strided_slice %107 {offsets = [0, 256], sizes = [8, 128], strides = [1, 1]} : vector<8x512xf32> to vector<8x128xf32>
    %121 = math.tanh %120 : vector<8x128xf32>
    %122 = vector.extract_strided_slice %107 {offsets = [0, 384], sizes = [8, 128], strides = [1, 1]} : vector<8x512xf32> to vector<8x128xf32>
    %123 = arith.negf %122 : vector<8x128xf32>
    %124 = math.exp %123 : vector<8x128xf32>
    %cst_44 = arith.constant 1.000000e+00 : f32
    %125 = vector.broadcast %cst_44 : f32 to vector<8x128xf32>
    %126 = arith.addf %125, %124 : vector<8x128xf32>
    %127 = arith.divf %125, %126 : vector<8x128xf32>
    %128 = arith.mulf %119, %101 : vector<8x128xf32>
    %129 = arith.mulf %113, %121 : vector<8x128xf32>
    %130 = arith.addf %128, %129 : vector<8x128xf32>
    %131 = math.tanh %130 : vector<8x128xf32>
    %132 = arith.mulf %127, %131 : vector<8x128xf32>
    %c24_45 = arith.constant 24 : index
    %c0_46 = arith.constant 0 : index
    %133 = vector.load %arg24[%c24_45, %c0_46] : memref<32x128xf32, #tpu.memory_space<vmem>>, vector<8x128xf32>
    tpu.vector_store %arg24[%c24_45, %c0_46], %132 {strides = array<i32>} : memref<32x128xf32, #tpu.memory_space<vmem>>, vector<8x128xf32>,
    %c0_47 = arith.constant 0 : index
    %c0_48 = arith.constant 0 : index
    %c0_49 = arith.constant 0 : index
    %134 = vector.load %arg21[%c0_47, %c0_48, %c0_49] : memref<3x8x128xf32, #tpu.memory_space<vmem>>, vector<1x8x128xf32>
    %135 = vector.shape_cast %134 : vector<1x8x128xf32> to vector<8x128xf32>
    %136 = vector.shape_cast %132 : vector<8x128xf32> to vector<1x8x128xf32>
    tpu.vector_store %arg21[%c0_47, %c0_48, %c0_49], %136 {strides = array<i32>} : memref<3x8x128xf32, #tpu.memory_space<vmem>>, vector<1x8x128xf32>,
    %c0_50 = arith.constant 0 : index
    %c0_51 = arith.constant 0 : index
    %c0_52 = arith.constant 0 : index
    %137 = vector.load %arg22[%c0_50, %c0_51, %c0_52] : memref<3x8x128xf32, #tpu.memory_space<vmem>>, vector<1x8x128xf32>
    %138 = vector.shape_cast %137 : vector<1x8x128xf32> to vector<8x128xf32>
    %139 = vector.shape_cast %130 : vector<8x128xf32> to vector<1x8x128xf32>
    tpu.vector_store %arg22[%c0_50, %c0_51, %c0_52], %139 {strides = array<i32>} : memref<3x8x128xf32, #tpu.memory_space<vmem>>, vector<1x8x128xf32>,
    %c0_i32_53 = arith.constant 0 : i32
    %140 = arith.cmpi eq, %arg0, %c0_i32_53 : i32
    %141 = arith.extui %140 : i1 to i32
    %c0_i32_54 = arith.constant 0 : i32
    %142 = arith.cmpi ne, %141, %c0_i32_54 : i32
    scf.if %142 {
      %c3_i32 = arith.constant 3 : i32
      %411 = tpu.memref_slice %arg25[%c3_i32] : memref<9x!tpu.dma_semaphore, #tpu.memory_space<semaphore_mem>> -> memref<1x!tpu.dma_semaphore, #tpu.memory_space<semaphore_mem>>
      %412 = tpu.memref_squeeze %411 : memref<1x!tpu.dma_semaphore, #tpu.memory_space<semaphore_mem>> -> memref<!tpu.dma_semaphore, #tpu.memory_space<semaphore_mem>>
      tpu.wait_dma2 semaphore(%412 : memref<!tpu.dma_semaphore, #tpu.memory_space<semaphore_mem>>) src(%arg5 : memref<128x512xf32, #tpu.memory_space<any>>) dst(%arg15 : memref<128x512xf32, #tpu.memory_space<vmem>>)
      %c4_i32 = arith.constant 4 : i32
      %413 = tpu.memref_slice %arg25[%c4_i32] : memref<9x!tpu.dma_semaphore, #tpu.memory_space<semaphore_mem>> -> memref<1x!tpu.dma_semaphore, #tpu.memory_space<semaphore_mem>>
      %414 = tpu.memref_squeeze %413 : memref<1x!tpu.dma_semaphore, #tpu.memory_space<semaphore_mem>> -> memref<!tpu.dma_semaphore, #tpu.memory_space<semaphore_mem>>
      tpu.wait_dma2 semaphore(%414 : memref<!tpu.dma_semaphore, #tpu.memory_space<semaphore_mem>>) src(%arg6 : memref<128x512xf32, #tpu.memory_space<any>>) dst(%arg16 : memref<128x512xf32, #tpu.memory_space<vmem>>)
      %c5_i32 = arith.constant 5 : i32
      %415 = tpu.memref_slice %arg25[%c5_i32] : memref<9x!tpu.dma_semaphore, #tpu.memory_space<semaphore_mem>> -> memref<1x!tpu.dma_semaphore, #tpu.memory_space<semaphore_mem>>
      %416 = tpu.memref_squeeze %415 : memref<1x!tpu.dma_semaphore, #tpu.memory_space<semaphore_mem>> -> memref<!tpu.dma_semaphore, #tpu.memory_space<semaphore_mem>>
      tpu.wait_dma2 semaphore(%416 : memref<!tpu.dma_semaphore, #tpu.memory_space<semaphore_mem>>) src(%arg7 : memref<1x512xf32, #tpu.memory_space<any>>) dst(%arg17 : memref<1x512xf32, #tpu.memory_space<vmem>>)
    } else {
    }
    %c0_55 = arith.constant 0 : index
    %c0_56 = arith.constant 0 : index
    %143 = vector.load %arg15[%c0_55, %c0_56] : memref<128x512xf32, #tpu.memory_space<vmem>>, vector<128x512xf32>
    %c0_57 = arith.constant 0 : index
    %c0_58 = arith.constant 0 : index
    %144 = vector.load %arg16[%c0_57, %c0_58] : memref<128x512xf32, #tpu.memory_space<vmem>>, vector<128x512xf32>
    %c0_59 = arith.constant 0 : index
    %c0_60 = arith.constant 0 : index
    %145 = vector.load %arg17[%c0_59, %c0_60] : memref<1x512xf32, #tpu.memory_space<vmem>>, vector<1x512xf32>
    %c0_61 = arith.constant 0 : index
    %c0_62 = arith.constant 0 : index
    %146 = vector.load %arg24[%c0_61, %c0_62] : memref<32x128xf32, #tpu.memory_space<vmem>>, vector<32x128xf32>
    %cst_63 = arith.constant dense<0.000000e+00> : vector<32x512xf32>
    %147 = tpu.matmul %146, %143, %cst_63 {dimension_numbers = #tpu.dot_dimension_numbers<[1], [0], [0], [1], [0, 0, 1, 1], [], []>} : vector<32x128xf32>, vector<128x512xf32>, vector<32x512xf32> -> vector<32x512xf32>
    %148 = vector.broadcast %145 : vector<1x512xf32> to vector<32x512xf32>
    %149 = arith.addf %147, %148 : vector<32x512xf32>
    %c0_64 = arith.constant 0 : index
    %c0_65 = arith.constant 0 : index
    %150 = vector.load %arg23[%c0_64, %c0_65] : memref<32x512xf32, #tpu.memory_space<vmem>>, vector<32x512xf32>
    tpu.vector_store %arg23[%c0_64, %c0_65], %149 {strides = array<i32>} : memref<32x512xf32, #tpu.memory_space<vmem>>, vector<32x512xf32>,
    %c1 = arith.constant 1 : index
    %c0_66 = arith.constant 0 : index
    %c0_67 = arith.constant 0 : index
    %151 = vector.load %arg21[%c1, %c0_66, %c0_67] : memref<3x8x128xf32, #tpu.memory_space<vmem>>, vector<1x8x128xf32>
    %152 = vector.shape_cast %151 : vector<1x8x128xf32> to vector<8x128xf32>
    %c1_68 = arith.constant 1 : index
    %c0_69 = arith.constant 0 : index
    %c0_70 = arith.constant 0 : index
    %153 = vector.load %arg22[%c1_68, %c0_69, %c0_70] : memref<3x8x128xf32, #tpu.memory_space<vmem>>, vector<1x8x128xf32>
    %154 = vector.shape_cast %153 : vector<1x8x128xf32> to vector<8x128xf32>
    %c0_71 = arith.constant 0 : index
    %c0_72 = arith.constant 0 : index
    %155 = vector.load %arg23[%c0_71, %c0_72] : memref<32x512xf32, #tpu.memory_space<vmem>>, vector<8x512xf32>
    %cst_73 = arith.constant dense<0.000000e+00> : vector<8x512xf32>
    %156 = tpu.matmul %152, %144, %cst_73 {dimension_numbers = #tpu.dot_dimension_numbers<[1], [0], [0], [1], [0, 0, 1, 1], [], []>} : vector<8x128xf32>, vector<128x512xf32>, vector<8x512xf32> -> vector<8x512xf32>
    %157 = arith.addf %155, %156 : vector<8x512xf32>
    %158 = vector.extract_strided_slice %157 {offsets = [0, 0], sizes = [8, 128], strides = [1, 1]} : vector<8x512xf32> to vector<8x128xf32>
    %159 = arith.negf %158 : vector<8x128xf32>
    %160 = math.exp %159 : vector<8x128xf32>
    %cst_74 = arith.constant 1.000000e+00 : f32
    %161 = vector.broadcast %cst_74 : f32 to vector<8x128xf32>
    %162 = arith.addf %161, %160 : vector<8x128xf32>
    %163 = arith.divf %161, %162 : vector<8x128xf32>
    %164 = vector.extract_strided_slice %157 {offsets = [0, 128], sizes = [8, 128], strides = [1, 1]} : vector<8x512xf32> to vector<8x128xf32>
    %165 = arith.negf %164 : vector<8x128xf32>
    %166 = math.exp %165 : vector<8x128xf32>
    %cst_75 = arith.constant 1.000000e+00 : f32
    %167 = vector.broadcast %cst_75 : f32 to vector<8x128xf32>
    %168 = arith.addf %167, %166 : vector<8x128xf32>
    %169 = arith.divf %167, %168 : vector<8x128xf32>
    %170 = vector.extract_strided_slice %157 {offsets = [0, 256], sizes = [8, 128], strides = [1, 1]} : vector<8x512xf32> to vector<8x128xf32>
    %171 = math.tanh %170 : vector<8x128xf32>
    %172 = vector.extract_strided_slice %157 {offsets = [0, 384], sizes = [8, 128], strides = [1, 1]} : vector<8x512xf32> to vector<8x128xf32>
    %173 = arith.negf %172 : vector<8x128xf32>
    %174 = math.exp %173 : vector<8x128xf32>
    %cst_76 = arith.constant 1.000000e+00 : f32
    %175 = vector.broadcast %cst_76 : f32 to vector<8x128xf32>
    %176 = arith.addf %175, %174 : vector<8x128xf32>
    %177 = arith.divf %175, %176 : vector<8x128xf32>
    %178 = arith.mulf %169, %154 : vector<8x128xf32>
    %179 = arith.mulf %163, %171 : vector<8x128xf32>
    %180 = arith.addf %178, %179 : vector<8x128xf32>
    %181 = math.tanh %180 : vector<8x128xf32>
    %182 = arith.mulf %177, %181 : vector<8x128xf32>
    %c0_77 = arith.constant 0 : index
    %c0_78 = arith.constant 0 : index
    %183 = vector.load %arg24[%c0_77, %c0_78] : memref<32x128xf32, #tpu.memory_space<vmem>>, vector<8x128xf32>
    tpu.vector_store %arg24[%c0_77, %c0_78], %182 {strides = array<i32>} : memref<32x128xf32, #tpu.memory_space<vmem>>, vector<8x128xf32>,
    %c8_79 = arith.constant 8 : index
    %c0_80 = arith.constant 0 : index
    %184 = vector.load %arg23[%c8_79, %c0_80] : memref<32x512xf32, #tpu.memory_space<vmem>>, vector<8x512xf32>
    %cst_81 = arith.constant dense<0.000000e+00> : vector<8x512xf32>
    %185 = tpu.matmul %182, %144, %cst_81 {dimension_numbers = #tpu.dot_dimension_numbers<[1], [0], [0], [1], [0, 0, 1, 1], [], []>} : vector<8x128xf32>, vector<128x512xf32>, vector<8x512xf32> -> vector<8x512xf32>
    %186 = arith.addf %184, %185 : vector<8x512xf32>
    %187 = vector.extract_strided_slice %186 {offsets = [0, 0], sizes = [8, 128], strides = [1, 1]} : vector<8x512xf32> to vector<8x128xf32>
    %188 = arith.negf %187 : vector<8x128xf32>
    %189 = math.exp %188 : vector<8x128xf32>
    %cst_82 = arith.constant 1.000000e+00 : f32
    %190 = vector.broadcast %cst_82 : f32 to vector<8x128xf32>
    %191 = arith.addf %190, %189 : vector<8x128xf32>
    %192 = arith.divf %190, %191 : vector<8x128xf32>
    %193 = vector.extract_strided_slice %186 {offsets = [0, 128], sizes = [8, 128], strides = [1, 1]} : vector<8x512xf32> to vector<8x128xf32>
    %194 = arith.negf %193 : vector<8x128xf32>
    %195 = math.exp %194 : vector<8x128xf32>
    %cst_83 = arith.constant 1.000000e+00 : f32
    %196 = vector.broadcast %cst_83 : f32 to vector<8x128xf32>
    %197 = arith.addf %196, %195 : vector<8x128xf32>
    %198 = arith.divf %196, %197 : vector<8x128xf32>
    %199 = vector.extract_strided_slice %186 {offsets = [0, 256], sizes = [8, 128], strides = [1, 1]} : vector<8x512xf32> to vector<8x128xf32>
    %200 = math.tanh %199 : vector<8x128xf32>
    %201 = vector.extract_strided_slice %186 {offsets = [0, 384], sizes = [8, 128], strides = [1, 1]} : vector<8x512xf32> to vector<8x128xf32>
    %202 = arith.negf %201 : vector<8x128xf32>
    %203 = math.exp %202 : vector<8x128xf32>
    %cst_84 = arith.constant 1.000000e+00 : f32
    %204 = vector.broadcast %cst_84 : f32 to vector<8x128xf32>
    %205 = arith.addf %204, %203 : vector<8x128xf32>
    %206 = arith.divf %204, %205 : vector<8x128xf32>
    %207 = arith.mulf %198, %180 : vector<8x128xf32>
    %208 = arith.mulf %192, %200 : vector<8x128xf32>
    %209 = arith.addf %207, %208 : vector<8x128xf32>
    %210 = math.tanh %209 : vector<8x128xf32>
    %211 = arith.mulf %206, %210 : vector<8x128xf32>
    %c8_85 = arith.constant 8 : index
    %c0_86 = arith.constant 0 : index
    %212 = vector.load %arg24[%c8_85, %c0_86] : memref<32x128xf32, #tpu.memory_space<vmem>>, vector<8x128xf32>
    tpu.vector_store %arg24[%c8_85, %c0_86], %211 {strides = array<i32>} : memref<32x128xf32, #tpu.memory_space<vmem>>, vector<8x128xf32>,
    %c16_87 = arith.constant 16 : index
    %c0_88 = arith.constant 0 : index
    %213 = vector.load %arg23[%c16_87, %c0_88] : memref<32x512xf32, #tpu.memory_space<vmem>>, vector<8x512xf32>
    %cst_89 = arith.constant dense<0.000000e+00> : vector<8x512xf32>
    %214 = tpu.matmul %211, %144, %cst_89 {dimension_numbers = #tpu.dot_dimension_numbers<[1], [0], [0], [1], [0, 0, 1, 1], [], []>} : vector<8x128xf32>, vector<128x512xf32>, vector<8x512xf32> -> vector<8x512xf32>
    %215 = arith.addf %213, %214 : vector<8x512xf32>
    %216 = vector.extract_strided_slice %215 {offsets = [0, 0], sizes = [8, 128], strides = [1, 1]} : vector<8x512xf32> to vector<8x128xf32>
    %217 = arith.negf %216 : vector<8x128xf32>
    %218 = math.exp %217 : vector<8x128xf32>
    %cst_90 = arith.constant 1.000000e+00 : f32
    %219 = vector.broadcast %cst_90 : f32 to vector<8x128xf32>
    %220 = arith.addf %219, %218 : vector<8x128xf32>
    %221 = arith.divf %219, %220 : vector<8x128xf32>
    %222 = vector.extract_strided_slice %215 {offsets = [0, 128], sizes = [8, 128], strides = [1, 1]} : vector<8x512xf32> to vector<8x128xf32>
    %223 = arith.negf %222 : vector<8x128xf32>
    %224 = math.exp %223 : vector<8x128xf32>
    %cst_91 = arith.constant 1.000000e+00 : f32
    %225 = vector.broadcast %cst_91 : f32 to vector<8x128xf32>
    %226 = arith.addf %225, %224 : vector<8x128xf32>
    %227 = arith.divf %225, %226 : vector<8x128xf32>
    %228 = vector.extract_strided_slice %215 {offsets = [0, 256], sizes = [8, 128], strides = [1, 1]} : vector<8x512xf32> to vector<8x128xf32>
    %229 = math.tanh %228 : vector<8x128xf32>
    %230 = vector.extract_strided_slice %215 {offsets = [0, 384], sizes = [8, 128], strides = [1, 1]} : vector<8x512xf32> to vector<8x128xf32>
    %231 = arith.negf %230 : vector<8x128xf32>
    %232 = math.exp %231 : vector<8x128xf32>
    %cst_92 = arith.constant 1.000000e+00 : f32
    %233 = vector.broadcast %cst_92 : f32 to vector<8x128xf32>
    %234 = arith.addf %233, %232 : vector<8x128xf32>
    %235 = arith.divf %233, %234 : vector<8x128xf32>
    %236 = arith.mulf %227, %209 : vector<8x128xf32>
    %237 = arith.mulf %221, %229 : vector<8x128xf32>
    %238 = arith.addf %236, %237 : vector<8x128xf32>
    %239 = math.tanh %238 : vector<8x128xf32>
    %240 = arith.mulf %235, %239 : vector<8x128xf32>
    %c16_93 = arith.constant 16 : index
    %c0_94 = arith.constant 0 : index
    %241 = vector.load %arg24[%c16_93, %c0_94] : memref<32x128xf32, #tpu.memory_space<vmem>>, vector<8x128xf32>
    tpu.vector_store %arg24[%c16_93, %c0_94], %240 {strides = array<i32>} : memref<32x128xf32, #tpu.memory_space<vmem>>, vector<8x128xf32>,
    %c24_95 = arith.constant 24 : index
    %c0_96 = arith.constant 0 : index
    %242 = vector.load %arg23[%c24_95, %c0_96] : memref<32x512xf32, #tpu.memory_space<vmem>>, vector<8x512xf32>
    %cst_97 = arith.constant dense<0.000000e+00> : vector<8x512xf32>
    %243 = tpu.matmul %240, %144, %cst_97 {dimension_numbers = #tpu.dot_dimension_numbers<[1], [0], [0], [1], [0, 0, 1, 1], [], []>} : vector<8x128xf32>, vector<128x512xf32>, vector<8x512xf32> -> vector<8x512xf32>
    %244 = arith.addf %242, %243 : vector<8x512xf32>
    %245 = vector.extract_strided_slice %244 {offsets = [0, 0], sizes = [8, 128], strides = [1, 1]} : vector<8x512xf32> to vector<8x128xf32>
    %246 = arith.negf %245 : vector<8x128xf32>
    %247 = math.exp %246 : vector<8x128xf32>
    %cst_98 = arith.constant 1.000000e+00 : f32
    %248 = vector.broadcast %cst_98 : f32 to vector<8x128xf32>
    %249 = arith.addf %248, %247 : vector<8x128xf32>
    %250 = arith.divf %248, %249 : vector<8x128xf32>
    %251 = vector.extract_strided_slice %244 {offsets = [0, 128], sizes = [8, 128], strides = [1, 1]} : vector<8x512xf32> to vector<8x128xf32>
    %252 = arith.negf %251 : vector<8x128xf32>
    %253 = math.exp %252 : vector<8x128xf32>
    %cst_99 = arith.constant 1.000000e+00 : f32
    %254 = vector.broadcast %cst_99 : f32 to vector<8x128xf32>
    %255 = arith.addf %254, %253 : vector<8x128xf32>
    %256 = arith.divf %254, %255 : vector<8x128xf32>
    %257 = vector.extract_strided_slice %244 {offsets = [0, 256], sizes = [8, 128], strides = [1, 1]} : vector<8x512xf32> to vector<8x128xf32>
    %258 = math.tanh %257 : vector<8x128xf32>
    %259 = vector.extract_strided_slice %244 {offsets = [0, 384], sizes = [8, 128], strides = [1, 1]} : vector<8x512xf32> to vector<8x128xf32>
    %260 = arith.negf %259 : vector<8x128xf32>
    %261 = math.exp %260 : vector<8x128xf32>
    %cst_100 = arith.constant 1.000000e+00 : f32
    %262 = vector.broadcast %cst_100 : f32 to vector<8x128xf32>
    %263 = arith.addf %262, %261 : vector<8x128xf32>
    %264 = arith.divf %262, %263 : vector<8x128xf32>
    %265 = arith.mulf %256, %238 : vector<8x128xf32>
    %266 = arith.mulf %250, %258 : vector<8x128xf32>
    %267 = arith.addf %265, %266 : vector<8x128xf32>
    %268 = math.tanh %267 : vector<8x128xf32>
    %269 = arith.mulf %264, %268 : vector<8x128xf32>
    %c24_101 = arith.constant 24 : index
    %c0_102 = arith.constant 0 : index
    %270 = vector.load %arg24[%c24_101, %c0_102] : memref<32x128xf32, #tpu.memory_space<vmem>>, vector<8x128xf32>
    tpu.vector_store %arg24[%c24_101, %c0_102], %269 {strides = array<i32>} : memref<32x128xf32, #tpu.memory_space<vmem>>, vector<8x128xf32>,
    %c1_103 = arith.constant 1 : index
    %c0_104 = arith.constant 0 : index
    %c0_105 = arith.constant 0 : index
    %271 = vector.load %arg21[%c1_103, %c0_104, %c0_105] : memref<3x8x128xf32, #tpu.memory_space<vmem>>, vector<1x8x128xf32>
    %272 = vector.shape_cast %271 : vector<1x8x128xf32> to vector<8x128xf32>
    %273 = vector.shape_cast %269 : vector<8x128xf32> to vector<1x8x128xf32>
    tpu.vector_store %arg21[%c1_103, %c0_104, %c0_105], %273 {strides = array<i32>} : memref<3x8x128xf32, #tpu.memory_space<vmem>>, vector<1x8x128xf32>,
    %c1_106 = arith.constant 1 : index
    %c0_107 = arith.constant 0 : index
    %c0_108 = arith.constant 0 : index
    %274 = vector.load %arg22[%c1_106, %c0_107, %c0_108] : memref<3x8x128xf32, #tpu.memory_space<vmem>>, vector<1x8x128xf32>
    %275 = vector.shape_cast %274 : vector<1x8x128xf32> to vector<8x128xf32>
    %276 = vector.shape_cast %267 : vector<8x128xf32> to vector<1x8x128xf32>
    tpu.vector_store %arg22[%c1_106, %c0_107, %c0_108], %276 {strides = array<i32>} : memref<3x8x128xf32, #tpu.memory_space<vmem>>, vector<1x8x128xf32>,
    %c0_i32_109 = arith.constant 0 : i32
    %277 = arith.cmpi eq, %arg0, %c0_i32_109 : i32
    %278 = arith.extui %277 : i1 to i32
    %c0_i32_110 = arith.constant 0 : i32
    %279 = arith.cmpi ne, %278, %c0_i32_110 : i32
    scf.if %279 {
      %c6_i32 = arith.constant 6 : i32
      %411 = tpu.memref_slice %arg25[%c6_i32] : memref<9x!tpu.dma_semaphore, #tpu.memory_space<semaphore_mem>> -> memref<1x!tpu.dma_semaphore, #tpu.memory_space<semaphore_mem>>
      %412 = tpu.memref_squeeze %411 : memref<1x!tpu.dma_semaphore, #tpu.memory_space<semaphore_mem>> -> memref<!tpu.dma_semaphore, #tpu.memory_space<semaphore_mem>>
      tpu.wait_dma2 semaphore(%412 : memref<!tpu.dma_semaphore, #tpu.memory_space<semaphore_mem>>) src(%arg8 : memref<128x512xf32, #tpu.memory_space<any>>) dst(%arg18 : memref<128x512xf32, #tpu.memory_space<vmem>>)
      %c7_i32 = arith.constant 7 : i32
      %413 = tpu.memref_slice %arg25[%c7_i32] : memref<9x!tpu.dma_semaphore, #tpu.memory_space<semaphore_mem>> -> memref<1x!tpu.dma_semaphore, #tpu.memory_space<semaphore_mem>>
      %414 = tpu.memref_squeeze %413 : memref<1x!tpu.dma_semaphore, #tpu.memory_space<semaphore_mem>> -> memref<!tpu.dma_semaphore, #tpu.memory_space<semaphore_mem>>
      tpu.wait_dma2 semaphore(%414 : memref<!tpu.dma_semaphore, #tpu.memory_space<semaphore_mem>>) src(%arg9 : memref<128x512xf32, #tpu.memory_space<any>>) dst(%arg19 : memref<128x512xf32, #tpu.memory_space<vmem>>)
      %c8_i32 = arith.constant 8 : i32
      %415 = tpu.memref_slice %arg25[%c8_i32] : memref<9x!tpu.dma_semaphore, #tpu.memory_space<semaphore_mem>> -> memref<1x!tpu.dma_semaphore, #tpu.memory_space<semaphore_mem>>
      %416 = tpu.memref_squeeze %415 : memref<1x!tpu.dma_semaphore, #tpu.memory_space<semaphore_mem>> -> memref<!tpu.dma_semaphore, #tpu.memory_space<semaphore_mem>>
      tpu.wait_dma2 semaphore(%416 : memref<!tpu.dma_semaphore, #tpu.memory_space<semaphore_mem>>) src(%arg10 : memref<1x512xf32, #tpu.memory_space<any>>) dst(%arg20 : memref<1x512xf32, #tpu.memory_space<vmem>>)
    } else {
    }
    %c0_111 = arith.constant 0 : index
    %c0_112 = arith.constant 0 : index
    %280 = vector.load %arg18[%c0_111, %c0_112] : memref<128x512xf32, #tpu.memory_space<vmem>>, vector<128x512xf32>
    %c0_113 = arith.constant 0 : index
    %c0_114 = arith.constant 0 : index
    %281 = vector.load %arg19[%c0_113, %c0_114] : memref<128x512xf32, #tpu.memory_space<vmem>>, vector<128x512xf32>
    %c0_115 = arith.constant 0 : index
    %c0_116 = arith.constant 0 : index
    %282 = vector.load %arg20[%c0_115, %c0_116] : memref<1x512xf32, #tpu.memory_space<vmem>>, vector<1x512xf32>
    %c0_117 = arith.constant 0 : index
    %c0_118 = arith.constant 0 : index
    %283 = vector.load %arg24[%c0_117, %c0_118] : memref<32x128xf32, #tpu.memory_space<vmem>>, vector<32x128xf32>
    %cst_119 = arith.constant dense<0.000000e+00> : vector<32x512xf32>
    %284 = tpu.matmul %283, %280, %cst_119 {dimension_numbers = #tpu.dot_dimension_numbers<[1], [0], [0], [1], [0, 0, 1, 1], [], []>} : vector<32x128xf32>, vector<128x512xf32>, vector<32x512xf32> -> vector<32x512xf32>
    %285 = vector.broadcast %282 : vector<1x512xf32> to vector<32x512xf32>
    %286 = arith.addf %284, %285 : vector<32x512xf32>
    %c0_120 = arith.constant 0 : index
    %c0_121 = arith.constant 0 : index
    %287 = vector.load %arg23[%c0_120, %c0_121] : memref<32x512xf32, #tpu.memory_space<vmem>>, vector<32x512xf32>
    tpu.vector_store %arg23[%c0_120, %c0_121], %286 {strides = array<i32>} : memref<32x512xf32, #tpu.memory_space<vmem>>, vector<32x512xf32>,
    %c2 = arith.constant 2 : index
    %c0_122 = arith.constant 0 : index
    %c0_123 = arith.constant 0 : index
    %288 = vector.load %arg21[%c2, %c0_122, %c0_123] : memref<3x8x128xf32, #tpu.memory_space<vmem>>, vector<1x8x128xf32>
    %289 = vector.shape_cast %288 : vector<1x8x128xf32> to vector<8x128xf32>
    %c2_124 = arith.constant 2 : index
    %c0_125 = arith.constant 0 : index
    %c0_126 = arith.constant 0 : index
    %290 = vector.load %arg22[%c2_124, %c0_125, %c0_126] : memref<3x8x128xf32, #tpu.memory_space<vmem>>, vector<1x8x128xf32>
    %291 = vector.shape_cast %290 : vector<1x8x128xf32> to vector<8x128xf32>
    %c0_127 = arith.constant 0 : index
    %c0_128 = arith.constant 0 : index
    %292 = vector.load %arg23[%c0_127, %c0_128] : memref<32x512xf32, #tpu.memory_space<vmem>>, vector<8x512xf32>
    %cst_129 = arith.constant dense<0.000000e+00> : vector<8x512xf32>
    %293 = tpu.matmul %289, %281, %cst_129 {dimension_numbers = #tpu.dot_dimension_numbers<[1], [0], [0], [1], [0, 0, 1, 1], [], []>} : vector<8x128xf32>, vector<128x512xf32>, vector<8x512xf32> -> vector<8x512xf32>
    %294 = arith.addf %292, %293 : vector<8x512xf32>
    %295 = vector.extract_strided_slice %294 {offsets = [0, 0], sizes = [8, 128], strides = [1, 1]} : vector<8x512xf32> to vector<8x128xf32>
    %296 = arith.negf %295 : vector<8x128xf32>
    %297 = math.exp %296 : vector<8x128xf32>
    %cst_130 = arith.constant 1.000000e+00 : f32
    %298 = vector.broadcast %cst_130 : f32 to vector<8x128xf32>
    %299 = arith.addf %298, %297 : vector<8x128xf32>
    %300 = arith.divf %298, %299 : vector<8x128xf32>
    %301 = vector.extract_strided_slice %294 {offsets = [0, 128], sizes = [8, 128], strides = [1, 1]} : vector<8x512xf32> to vector<8x128xf32>
    %302 = arith.negf %301 : vector<8x128xf32>
    %303 = math.exp %302 : vector<8x128xf32>
    %cst_131 = arith.constant 1.000000e+00 : f32
    %304 = vector.broadcast %cst_131 : f32 to vector<8x128xf32>
    %305 = arith.addf %304, %303 : vector<8x128xf32>
    %306 = arith.divf %304, %305 : vector<8x128xf32>
    %307 = vector.extract_strided_slice %294 {offsets = [0, 256], sizes = [8, 128], strides = [1, 1]} : vector<8x512xf32> to vector<8x128xf32>
    %308 = math.tanh %307 : vector<8x128xf32>
    %309 = vector.extract_strided_slice %294 {offsets = [0, 384], sizes = [8, 128], strides = [1, 1]} : vector<8x512xf32> to vector<8x128xf32>
    %310 = arith.negf %309 : vector<8x128xf32>
    %311 = math.exp %310 : vector<8x128xf32>
    %cst_132 = arith.constant 1.000000e+00 : f32
    %312 = vector.broadcast %cst_132 : f32 to vector<8x128xf32>
    %313 = arith.addf %312, %311 : vector<8x128xf32>
    %314 = arith.divf %312, %313 : vector<8x128xf32>
    %315 = arith.mulf %306, %291 : vector<8x128xf32>
    %316 = arith.mulf %300, %308 : vector<8x128xf32>
    %317 = arith.addf %315, %316 : vector<8x128xf32>
    %318 = math.tanh %317 : vector<8x128xf32>
    %319 = arith.mulf %314, %318 : vector<8x128xf32>
    %c8_133 = arith.constant 8 : index
    %c0_134 = arith.constant 0 : index
    %320 = vector.load %arg23[%c8_133, %c0_134] : memref<32x512xf32, #tpu.memory_space<vmem>>, vector<8x512xf32>
    %cst_135 = arith.constant dense<0.000000e+00> : vector<8x512xf32>
    %321 = tpu.matmul %319, %281, %cst_135 {dimension_numbers = #tpu.dot_dimension_numbers<[1], [0], [0], [1], [0, 0, 1, 1], [], []>} : vector<8x128xf32>, vector<128x512xf32>, vector<8x512xf32> -> vector<8x512xf32>
    %322 = arith.addf %320, %321 : vector<8x512xf32>
    %323 = vector.extract_strided_slice %322 {offsets = [0, 0], sizes = [8, 128], strides = [1, 1]} : vector<8x512xf32> to vector<8x128xf32>
    %324 = arith.negf %323 : vector<8x128xf32>
    %325 = math.exp %324 : vector<8x128xf32>
    %cst_136 = arith.constant 1.000000e+00 : f32
    %326 = vector.broadcast %cst_136 : f32 to vector<8x128xf32>
    %327 = arith.addf %326, %325 : vector<8x128xf32>
    %328 = arith.divf %326, %327 : vector<8x128xf32>
    %329 = vector.extract_strided_slice %322 {offsets = [0, 128], sizes = [8, 128], strides = [1, 1]} : vector<8x512xf32> to vector<8x128xf32>
    %330 = arith.negf %329 : vector<8x128xf32>
    %331 = math.exp %330 : vector<8x128xf32>
    %cst_137 = arith.constant 1.000000e+00 : f32
    %332 = vector.broadcast %cst_137 : f32 to vector<8x128xf32>
    %333 = arith.addf %332, %331 : vector<8x128xf32>
    %334 = arith.divf %332, %333 : vector<8x128xf32>
    %335 = vector.extract_strided_slice %322 {offsets = [0, 256], sizes = [8, 128], strides = [1, 1]} : vector<8x512xf32> to vector<8x128xf32>
    %336 = math.tanh %335 : vector<8x128xf32>
    %337 = vector.extract_strided_slice %322 {offsets = [0, 384], sizes = [8, 128], strides = [1, 1]} : vector<8x512xf32> to vector<8x128xf32>
    %338 = arith.negf %337 : vector<8x128xf32>
    %339 = math.exp %338 : vector<8x128xf32>
    %cst_138 = arith.constant 1.000000e+00 : f32
    %340 = vector.broadcast %cst_138 : f32 to vector<8x128xf32>
    %341 = arith.addf %340, %339 : vector<8x128xf32>
    %342 = arith.divf %340, %341 : vector<8x128xf32>
    %343 = arith.mulf %334, %317 : vector<8x128xf32>
    %344 = arith.mulf %328, %336 : vector<8x128xf32>
    %345 = arith.addf %343, %344 : vector<8x128xf32>
    %346 = math.tanh %345 : vector<8x128xf32>
    %347 = arith.mulf %342, %346 : vector<8x128xf32>
    %c16_139 = arith.constant 16 : index
    %c0_140 = arith.constant 0 : index
    %348 = vector.load %arg23[%c16_139, %c0_140] : memref<32x512xf32, #tpu.memory_space<vmem>>, vector<8x512xf32>
    %cst_141 = arith.constant dense<0.000000e+00> : vector<8x512xf32>
    %349 = tpu.matmul %347, %281, %cst_141 {dimension_numbers = #tpu.dot_dimension_numbers<[1], [0], [0], [1], [0, 0, 1, 1], [], []>} : vector<8x128xf32>, vector<128x512xf32>, vector<8x512xf32> -> vector<8x512xf32>
    %350 = arith.addf %348, %349 : vector<8x512xf32>
    %351 = vector.extract_strided_slice %350 {offsets = [0, 0], sizes = [8, 128], strides = [1, 1]} : vector<8x512xf32> to vector<8x128xf32>
    %352 = arith.negf %351 : vector<8x128xf32>
    %353 = math.exp %352 : vector<8x128xf32>
    %cst_142 = arith.constant 1.000000e+00 : f32
    %354 = vector.broadcast %cst_142 : f32 to vector<8x128xf32>
    %355 = arith.addf %354, %353 : vector<8x128xf32>
    %356 = arith.divf %354, %355 : vector<8x128xf32>
    %357 = vector.extract_strided_slice %350 {offsets = [0, 128], sizes = [8, 128], strides = [1, 1]} : vector<8x512xf32> to vector<8x128xf32>
    %358 = arith.negf %357 : vector<8x128xf32>
    %359 = math.exp %358 : vector<8x128xf32>
    %cst_143 = arith.constant 1.000000e+00 : f32
    %360 = vector.broadcast %cst_143 : f32 to vector<8x128xf32>
    %361 = arith.addf %360, %359 : vector<8x128xf32>
    %362 = arith.divf %360, %361 : vector<8x128xf32>
    %363 = vector.extract_strided_slice %350 {offsets = [0, 256], sizes = [8, 128], strides = [1, 1]} : vector<8x512xf32> to vector<8x128xf32>
    %364 = math.tanh %363 : vector<8x128xf32>
    %365 = vector.extract_strided_slice %350 {offsets = [0, 384], sizes = [8, 128], strides = [1, 1]} : vector<8x512xf32> to vector<8x128xf32>
    %366 = arith.negf %365 : vector<8x128xf32>
    %367 = math.exp %366 : vector<8x128xf32>
    %cst_144 = arith.constant 1.000000e+00 : f32
    %368 = vector.broadcast %cst_144 : f32 to vector<8x128xf32>
    %369 = arith.addf %368, %367 : vector<8x128xf32>
    %370 = arith.divf %368, %369 : vector<8x128xf32>
    %371 = arith.mulf %362, %345 : vector<8x128xf32>
    %372 = arith.mulf %356, %364 : vector<8x128xf32>
    %373 = arith.addf %371, %372 : vector<8x128xf32>
    %374 = math.tanh %373 : vector<8x128xf32>
    %375 = arith.mulf %370, %374 : vector<8x128xf32>
    %c24_145 = arith.constant 24 : index
    %c0_146 = arith.constant 0 : index
    %376 = vector.load %arg23[%c24_145, %c0_146] : memref<32x512xf32, #tpu.memory_space<vmem>>, vector<8x512xf32>
    %cst_147 = arith.constant dense<0.000000e+00> : vector<8x512xf32>
    %377 = tpu.matmul %375, %281, %cst_147 {dimension_numbers = #tpu.dot_dimension_numbers<[1], [0], [0], [1], [0, 0, 1, 1], [], []>} : vector<8x128xf32>, vector<128x512xf32>, vector<8x512xf32> -> vector<8x512xf32>
    %378 = arith.addf %376, %377 : vector<8x512xf32>
    %379 = vector.extract_strided_slice %378 {offsets = [0, 0], sizes = [8, 128], strides = [1, 1]} : vector<8x512xf32> to vector<8x128xf32>
    %380 = arith.negf %379 : vector<8x128xf32>
    %381 = math.exp %380 : vector<8x128xf32>
    %cst_148 = arith.constant 1.000000e+00 : f32
    %382 = vector.broadcast %cst_148 : f32 to vector<8x128xf32>
    %383 = arith.addf %382, %381 : vector<8x128xf32>
    %384 = arith.divf %382, %383 : vector<8x128xf32>
    %385 = vector.extract_strided_slice %378 {offsets = [0, 128], sizes = [8, 128], strides = [1, 1]} : vector<8x512xf32> to vector<8x128xf32>
    %386 = arith.negf %385 : vector<8x128xf32>
    %387 = math.exp %386 : vector<8x128xf32>
    %cst_149 = arith.constant 1.000000e+00 : f32
    %388 = vector.broadcast %cst_149 : f32 to vector<8x128xf32>
    %389 = arith.addf %388, %387 : vector<8x128xf32>
    %390 = arith.divf %388, %389 : vector<8x128xf32>
    %391 = vector.extract_strided_slice %378 {offsets = [0, 256], sizes = [8, 128], strides = [1, 1]} : vector<8x512xf32> to vector<8x128xf32>
    %392 = math.tanh %391 : vector<8x128xf32>
    %393 = vector.extract_strided_slice %378 {offsets = [0, 384], sizes = [8, 128], strides = [1, 1]} : vector<8x512xf32> to vector<8x128xf32>
    %394 = arith.negf %393 : vector<8x128xf32>
    %395 = math.exp %394 : vector<8x128xf32>
    %cst_150 = arith.constant 1.000000e+00 : f32
    %396 = vector.broadcast %cst_150 : f32 to vector<8x128xf32>
    %397 = arith.addf %396, %395 : vector<8x128xf32>
    %398 = arith.divf %396, %397 : vector<8x128xf32>
    %399 = arith.mulf %390, %373 : vector<8x128xf32>
    %400 = arith.mulf %384, %392 : vector<8x128xf32>
    %401 = arith.addf %399, %400 : vector<8x128xf32>
    %402 = math.tanh %401 : vector<8x128xf32>
    %403 = arith.mulf %398, %402 : vector<8x128xf32>
    %c2_151 = arith.constant 2 : index
    %c0_152 = arith.constant 0 : index
    %c0_153 = arith.constant 0 : index
    %404 = vector.load %arg21[%c2_151, %c0_152, %c0_153] : memref<3x8x128xf32, #tpu.memory_space<vmem>>, vector<1x8x128xf32>
    %405 = vector.shape_cast %404 : vector<1x8x128xf32> to vector<8x128xf32>
    %406 = vector.shape_cast %403 : vector<8x128xf32> to vector<1x8x128xf32>
    tpu.vector_store %arg21[%c2_151, %c0_152, %c0_153], %406 {strides = array<i32>} : memref<3x8x128xf32, #tpu.memory_space<vmem>>, vector<1x8x128xf32>,
    %c2_154 = arith.constant 2 : index
    %c0_155 = arith.constant 0 : index
    %c0_156 = arith.constant 0 : index
    %407 = vector.load %arg22[%c2_154, %c0_155, %c0_156] : memref<3x8x128xf32, #tpu.memory_space<vmem>>, vector<1x8x128xf32>
    %408 = vector.shape_cast %407 : vector<1x8x128xf32> to vector<8x128xf32>
    %409 = vector.shape_cast %401 : vector<8x128xf32> to vector<1x8x128xf32>
    tpu.vector_store %arg22[%c2_154, %c0_155, %c0_156], %409 {strides = array<i32>} : memref<3x8x128xf32, #tpu.memory_space<vmem>>, vector<1x8x128xf32>,
    %c0_157 = arith.constant 0 : index
    %c0_158 = arith.constant 0 : index
    %410 = vector.load %arg11[%c0_157, %c0_158] : memref<8x128xf32, #tpu.memory_space<vmem>>, vector<8x128xf32>
    tpu.vector_store %arg11[%c0_157, %c0_158], %403 {strides = array<i32>} : memref<8x128xf32, #tpu.memory_space<vmem>>, vector<8x128xf32>,
    return
  }
  func.func @transform_0(%arg0: i32) -> (i32, i32) {
    %c0_i32 = arith.constant 0 : i32
    %c0_i32_0 = arith.constant 0 : i32
    return %arg0, %c0_i32 : i32, i32
  }
  func.func @transform_10(%arg0: i32) -> (i32, i32) {
    %c0_i32 = arith.constant 0 : i32
    %c0_i32_0 = arith.constant 0 : i32
    %c0_i32_1 = arith.constant 0 : i32
    return %c0_i32, %c0_i32_0 : i32, i32
  }
}

</mosaic_0001>

<llo_original>
// kernel: lstm_by_split_forward.1
$region0: #{lstm_by_split_forward.1}
  #allocation0 [shape = 'u32[]', space=smem, size = 0x4, offset = 0x4, fixed_abs, tag = 'smem constant byte address 0x4 - core index']
  #allocation1 [shape = 'u32[144,128]{1,0:T(1,128)}', space=vmem, size = 0x12000, scoped, tag = 'internal scratch']
  #allocation2 [shape = 'f32[16,512]{1,0:T(8,128)}', space=vmem, size = 0x8000, scoped, tag = 'scratch operand']
  #allocation3 [shape = 'f32[128,512]{1,0:T(8,128)}', space=vmem, size = 0x40000, scoped, tag = 'scratch operand']
  #allocation4 [shape = 'f32[1,512]{1,0:T(1,128)}', space=vmem, size = 0x800, scoped, tag = 'scratch operand']
  #allocation5 [shape = 'f32[128,512]{1,0:T(8,128)}', space=vmem, size = 0x40000, scoped, tag = 'scratch operand']
  #allocation6 [shape = 'f32[128,512]{1,0:T(8,128)}', space=vmem, size = 0x40000, scoped, tag = 'scratch operand']
  #allocation7 [shape = 'f32[1,512]{1,0:T(1,128)}', space=vmem, size = 0x800, scoped, tag = 'scratch operand']
  #allocation8 [shape = 'f32[128,512]{1,0:T(8,128)}', space=vmem, size = 0x40000, scoped, tag = 'scratch operand']
  #allocation9 [shape = 'f32[128,512]{1,0:T(8,128)}', space=vmem, size = 0x40000, scoped, tag = 'scratch operand']
  #allocation10 [shape = 'f32[1,512]{1,0:T(1,128)}', space=vmem, size = 0x800, scoped, tag = 'scratch operand']
  #allocation11 [shape = 'f32[3,8,128]{2,1,0:T(8,128)}', space=vmem, size = 0x3000, scoped, tag = 'scratch operand']
  #allocation12 [shape = 'f32[3,8,128]{2,1,0:T(8,128)}', space=vmem, size = 0x3000, scoped, tag = 'scratch operand']
  #allocation13 [shape = 'f32[32,512]{1,0:T(8,128)}', space=vmem, size = 0x10000, scoped, tag = 'scratch operand']
  #allocation14 [shape = 'f32[32,128]{1,0:T(8,128)}', space=vmem, size = 0x4000, scoped, tag = 'scratch operand']
  #allocation15 [shape = 's32[9]{0}', space=sflag, size = 0x24, scoped, tag = 'scratch operand']
  #allocation16 [shape = 's32[]', space=sflag, size = 0x4, offset = 0, fixed_abs, tag = 'sflag constant byte address 0x0 - dummy sync flag']
  #allocation17 [shape = 's32[]', space=sflag, size = 0x4, offset = 0, fixed_abs, tag = 'sflag constant byte address 0x0 - dummy sync flag']
  #allocation18 [shape = 's32[]', space=sflag, size = 0x4, offset = 0, fixed_abs, tag = 'sflag constant byte address 0x0 - dummy sync flag']
  #allocation19 [shape = 's32[]', space=sflag, size = 0x4, offset = 0, fixed_abs, tag = 'sflag constant byte address 0x0 - dummy sync flag']
  #allocation20 [shape = 's32[]', space=sflag, size = 0x4, offset = 0, fixed_abs, tag = 'sflag constant byte address 0x0 - dummy sync flag']
  #allocation21 [shape = 's32[]', space=sflag, size = 0x4, offset = 0, fixed_abs, tag = 'sflag constant byte address 0x0 - dummy sync flag']
  #allocation22 [shape = 's32[]', space=sflag, size = 0x4, offset = 0, fixed_abs, tag = 'sflag constant byte address 0x0 - dummy sync flag']
  #allocation23 [shape = 's32[]', space=sflag, size = 0x4, offset = 0, fixed_abs, tag = 'sflag constant byte address 0x0 - dummy sync flag']
  #allocation24 [shape = 's32[]', space=sflag, size = 0x4, offset = 0, fixed_abs, tag = 'sflag constant byte address 0x0 - dummy sync flag']
  %s0 = inlined_call_operand.vmem [shape: f32[64,16], index: 0, kind: input, shape index: {}]
  %s1 = inlined_call_operand.vmem [shape: f32[16,512], index: 1, kind: input, shape index: {}]
  %s2 = inlined_call_operand.vmem [shape: f32[128,512], index: 2, kind: input, shape index: {}]
  %s3 = inlined_call_operand.vmem [shape: f32[1,512], index: 3, kind: input, shape index: {}]
  %s4 = inlined_call_operand.vmem [shape: f32[128,512], index: 4, kind: input, shape index: {}]
  %s5 = inlined_call_operand.vmem [shape: f32[128,512], index: 5, kind: input, shape index: {}]
  %s6 = inlined_call_operand.vmem [shape: f32[1,512], index: 6, kind: input, shape index: {}]
  %s7 = inlined_call_operand.vmem [shape: f32[128,512], index: 7, kind: input, shape index: {}]
  %s8 = inlined_call_operand.vmem [shape: f32[128,512], index: 8, kind: input, shape index: {}]
  %s9 = inlined_call_operand.vmem [shape: f32[1,512], index: 9, kind: input, shape index: {}]
  %s10 = inlined_call_operand.vmem [shape: f32[8,128], index: 10, kind: output, shape index: {}]
  %s11 = sld [smem:[#allocation0]]
  $region343: #{lstm_by_split_forward.1} parent=0
    _
  %s13 = ssub.s32 1, %s11
  %s14 = scalar_select 0, %s13, %s11
  loop: start=0, step=1, limit=4
  $region2: #{lstm_by_split_forward.1} parent=0 // loop_pre_header
    _
  $region3: #{lstm_by_split_forward.1} parent=0 // loop_header
    %s16 = sphi 0, %s20
    %p17 = scmp.ge.s32.totalorder %s16, 4
    %s26 = sphi 0, %s28
    %s29 = sphi 0, %s26
    %s30 = sphi 0, %s29
    %s46 = sphi 0, %s30
    %s50 = sphi 0, %s50
    %s52 = sphi 0, %s50
    %s53 = sphi 0, %s52
    %s67 = sphi 0, %s53
  $region4: #{lstm_by_split_forward.1} parent=0 // loop_header_branch
    %19 = sbr.rel (%p17) target = $region8
  $region5: #{lstm_by_split_forward.1} parent=0 // loop_body
    %s21 = ssub.s32 %s16, 1
    %s22 = ssub.s32 %s16, 2
    %s23 = sadd.s32 %s16, 1
    %s24 = ssub.s32 %s16, %s23
    %p25 = scmp.eq.s32.totalorder %s24, 0
    %s27 = sadd.s32 %s26, 1
    %s28 = scalar_select %p25, %s26, %s27
    %p31 = pneg %p25
    %p32 = scmp.eq.s32.totalorder %s16, 1
    %p33 = por %p31, %p32
    %p34 = scmp.ne.s32.totalorder %s26, %s29
    %p35 = scmp.eq.s32.totalorder %s16, 0
    %p36 = por %p34, %p35
    %p37 = scmp.ne.s32.totalorder %s26, %s29
    %p38 = scmp.eq.s32.totalorder %s21, 1
    %p39 = por %p37, %p38
    %p40 = scmp.ne.s32.totalorder %s29, %s30
    %p41 = scmp.eq.s32.totalorder %s21, 0
    %p42 = por %p40, %p41
    %p43 = scmp.ne.s32.totalorder %s29, %s30
    %p44 = scmp.eq.s32.totalorder %s22, 1
    %p45 = por %p43, %p44
    %p47 = scmp.ne.s32.totalorder %s30, %s46
    %p48 = scmp.eq.s32.totalorder %s22, 0
    %p49 = por %p47, %p48
    %s51 = sadd.s32 %s50, 1
    %p54 = scmp.eq.s32.totalorder %s16, 1
    %p55 = scmp.ne.s32.totalorder %s50, %s52
    %p56 = scmp.eq.s32.totalorder %s16, 0
    %p57 = por %p55, %p56
    %p58 = scmp.ne.s32.totalorder %s50, %s52
    %p59 = scmp.eq.s32.totalorder %s21, 1
    %p60 = por %p58, %p59
    %p61 = scmp.ne.s32.totalorder %s52, %s53
    %p62 = scmp.eq.s32.totalorder %s21, 0
    %p63 = por %p61, %p62
    %p64 = scmp.ne.s32.totalorder %s52, %s53
    %p65 = scmp.eq.s32.totalorder %s22, 1
    %p66 = por %p64, %p65
    %p68 = scmp.ne.s32.totalorder %s53, %s67
    %p69 = scmp.eq.s32.totalorder %s22, 0
    %p70 = por %p68, %p69
    %p71 = scmp.le.s32.totalorder 1, %s16
    %p72 = scmp.lt.s32.totalorder %s16, 3
    %p73 = pnand %p71, %p72
    %p74 = pneg %p73
    // Predicated region
    $region9: #{lstm_by_split_forward.1} parent=5 // pred_check
      _
    $region10: #{lstm_by_split_forward.1} parent=5 // pred_check_branch
      %76 = sbr.rel (%p73) target = $region12
    $region11: #{lstm_by_split_forward.1} parent=5 // pred_region
      %s77 = ssub.s32 %s16, 1
    $region12: #{lstm_by_split_forward.1} parent=5 // pred_fallthru
      _
    %p78 = scmp.lt.s32.totalorder %s16, 2
    // Predicated region
    $region13: #{lstm_by_split_forward.1} parent=5 // pred_check
      %p79 = pneg %p78
    $region14: #{lstm_by_split_forward.1} parent=5 // pred_check_branch
      %81 = sbr.rel (%p79) target = $region16
    $region15: #{lstm_by_split_forward.1} parent=5 // pred_region
      // Predicated region
      $region17: #{lstm_by_split_forward.1} parent=15 // pred_check
        %p82 = pneg %p36
      $region18: #{lstm_by_split_forward.1} parent=15 // pred_check_branch
        %84 = sbr.rel (%p82) target = $region20
      $region19: #{lstm_by_split_forward.1} parent=15 // pred_region
        %s85 = smul.u32 4, %s16
        %p86 = scmp.lt.s32.totalorder %s85, 7
        %s87 = scalar_select %p86, %s85, 7
        %s88 = smul.addr %s87, 8
        %s89 = scalar_lea.vmem %s0, %s88
        %s90 = smul.u32 4, %s16
      $region20: #{lstm_by_split_forward.1} parent=15 // pred_fallthru
        _
    $region16: #{lstm_by_split_forward.1} parent=5 // pred_fallthru
      _
    %p91 = scmp.le.s32.totalorder 1, %s16
    %p92 = scmp.lt.s32.totalorder %s16, 3
    %p93 = pnand %p91, %p92
    %p94 = pneg %p93
    // Predicated region
    $region21: #{lstm_by_split_forward.1} parent=5 // pred_check
      _
    $region22: #{lstm_by_split_forward.1} parent=5 // pred_check_branch
      %96 = sbr.rel (%p93) target = $region24
    $region23: #{lstm_by_split_forward.1} parent=5 // pred_region
      %s97 = ssub.s32 %s16, 1
      %s98 = smul.u32 4, %s21
      %p99 = scmp.lt.s32.totalorder %s98, 7
      %s100 = scalar_select %p99, %s98, 7
      %s101 = smul.addr %s100, 8
      %s102 = scalar_lea.vmem %s0, %s101
      %p103 = pneg %p42
      %p104 = pneg %p39
      %p105 = pneg %p63
      %p106 = pneg %p60
      %s107 = smul.u32 4, %s21
      %p108 = scmp.lt.s32.totalorder %s107, 7
      %s109 = scalar_select %p108, %s107, 7
      %s110 = smul.addr %s109, 8
      %s111 = scalar_lea.vmem %s0, %s110
      %s112 = smul.u32 4, %s21
      %p113 = scmp.eq.s32.totalorder %s21, 0
      // Predicated region
      $region25: #{lstm_by_split_forward.1} parent=23 // pred_check
        %p114 = pneg %p113
      $region26: #{lstm_by_split_forward.1} parent=23 // pred_check_branch
        %116 = sbr.rel (%p114) target = $region28
      $region27: #{lstm_by_split_forward.1} parent=23 // pred_region
        %117 = vst [vmem:[#allocation11] sm:$0xff] 0.0
        %118 = vst [vmem:[#allocation11 + $0x8] sm:$0xff] 0.0
        %119 = vst [vmem:[#allocation11 + $0x10] sm:$0xff] 0.0
        %120 = vst [vmem:[#allocation12] sm:$0xff] 0.0
        %121 = vst [vmem:[#allocation12 + $0x8] sm:$0xff] 0.0
        %122 = vst [vmem:[#allocation12 + $0x10] sm:$0xff] 0.0
        %p124 = scmp.lt.u32.totalorder 64, 8
        %p125 = pneg %p124
        // Predicated region
        $region29: #{lstm_by_split_forward.1} parent=27 // pred_check
          _
        $region30: #{lstm_by_split_forward.1} parent=27 // pred_check_branch
          %127 = sbr.rel (%p124) target = $region32
        $region31: #{lstm_by_split_forward.1} parent=27 // pred_region
          %s142 = sand.u32 64, 7
          %p143 = scmp.eq.s32.totalorder %s142, 0
          // Predicated region
          $region44: #{lstm_by_split_forward.1} parent=31 // pred_check
            %p144 = pneg %p143
          $region45: #{lstm_by_split_forward.1} parent=31 // pred_check_branch
            %146 = sbr.rel (%p144) target = $region47
          $region46: #{lstm_by_split_forward.1} parent=31 // pred_region
            loop: start=0, step=1, limit=1
            $region48: #{lstm_by_split_forward.1} parent=46 // loop_pre_header
              _
            $region49: #{lstm_by_split_forward.1} parent=46 // loop_header
              %s148 = sphi 0, %s152
              %p149 = scmp.ge.s32.totalorder %s148, 1
              %s153 = sphi %s1, %s1
              %s154 = sphi [#allocation2], [#allocation2]
            $region50: #{lstm_by_split_forward.1} parent=46 // loop_header_branch
              %151 = sbr.rel (%p149) target = $region54
            $region51: #{lstm_by_split_forward.1} parent=46 // loop_body
              %v155 = vld [vmem:[%s153] sm:$0xff]
              %156 = vst [vmem:[%s154] sm:$0xff] %v155
              %v157 = vld [vmem:[%s153 + $0x8] sm:$0xff]
              %158 = vst [vmem:[%s154 + $0x8] sm:$0xff] %v157
              %v159 = vld [vmem:[%s153 + $0x10] sm:$0xff]
              %160 = vst [vmem:[%s154 + $0x10] sm:$0xff] %v159
              %v161 = vld [vmem:[%s153 + $0x18] sm:$0xff]
              %162 = vst [vmem:[%s154 + $0x18] sm:$0xff] %v161
              %v163 = vld [vmem:[%s153 + $0x20] sm:$0xff]
              %164 = vst [vmem:[%s154 + $0x20] sm:$0xff] %v163
              %v165 = vld [vmem:[%s153 + $0x28] sm:$0xff]
              %166 = vst [vmem:[%s154 + $0x28] sm:$0xff] %v165
              %v167 = vld [vmem:[%s153 + $0x30] sm:$0xff]
              %168 = vst [vmem:[%s154 + $0x30] sm:$0xff] %v167
              %v169 = vld [vmem:[%s153 + $0x38] sm:$0xff]
              %170 = vst [vmem:[%s154 + $0x38] sm:$0xff] %v169
            $region52: #{lstm_by_split_forward.1} parent=46 // loop_footer
              %s152 = sadd.s32 1, %s148
            $region53: #{lstm_by_split_forward.1} parent=46 // loop_footer_branch
              %147 = sbr.rel target = $region49
            $region54: #{lstm_by_split_forward.1} parent=46 // loop_exit
              _
          $region47: #{lstm_by_split_forward.1} parent=31 // pred_fallthru
            _
          %p171 = pneg %p143
          // Predicated region
          $region55: #{lstm_by_split_forward.1} parent=31 // pred_check
            _
          $region56: #{lstm_by_split_forward.1} parent=31 // pred_check_branch
            %173 = sbr.rel (%p143) target = $region58
          $region57: #{lstm_by_split_forward.1} parent=31 // pred_region
            %s174 = sand.u32 64, 7
          $region58: #{lstm_by_split_forward.1} parent=31 // pred_fallthru
            _
        $region32: #{lstm_by_split_forward.1} parent=27 // pred_fallthru
          _
        // Predicated region
        $region33: #{lstm_by_split_forward.1} parent=27 // pred_check
          %p128 = pneg %p124
        $region34: #{lstm_by_split_forward.1} parent=27 // pred_check_branch
          %130 = sbr.rel (%p128) target = $region36
        $region35: #{lstm_by_split_forward.1} parent=27 // pred_region
          %s131 = sshllo.u32 0, 64
          loop: start=0, step=1, limit=1
          $region37: #{lstm_by_split_forward.1} parent=35 // loop_pre_header
            _
          $region38: #{lstm_by_split_forward.1} parent=35 // loop_header
            %s133 = sphi 0, %s137
            %p134 = scmp.ge.s32.totalorder %s133, 1
            %s138 = sphi %s1, %s1
            %s139 = sphi [#allocation2], [#allocation2]
          $region39: #{lstm_by_split_forward.1} parent=35 // loop_header_branch
            %136 = sbr.rel (%p134) target = $region43
          $region40: #{lstm_by_split_forward.1} parent=35 // loop_body
            %v140 = vld [vmem:[%s138] sm:%s131]
            %141 = vst [vmem:[%s139] sm:%s131] %v140
          $region41: #{lstm_by_split_forward.1} parent=35 // loop_footer
            %s137 = sadd.s32 1, %s133
          $region42: #{lstm_by_split_forward.1} parent=35 // loop_footer_branch
            %132 = sbr.rel target = $region38
          $region43: #{lstm_by_split_forward.1} parent=35 // loop_exit
            _
        $region36: #{lstm_by_split_forward.1} parent=27 // pred_fallthru
          _
        // Predicated region
        $region59: #{lstm_by_split_forward.1} parent=27 // pred_check
          _
        $region60: #{lstm_by_split_forward.1} parent=27 // pred_check_branch
          %177 = sbr.rel (0) target = $region62
        $region61: #{lstm_by_split_forward.1} parent=27 // pred_region
          %178 = vsyncadd [#allocation15], 1024
        $region62: #{lstm_by_split_forward.1} parent=27 // pred_fallthru
          _
        %s179 = scalar_lea.sflag [#allocation15], 1
        %p181 = scmp.lt.u32.totalorder 512, 8
        %p182 = pneg %p181
        // Predicated region
        $region63: #{lstm_by_split_forward.1} parent=27 // pred_check
          _
        $region64: #{lstm_by_split_forward.1} parent=27 // pred_check_branch
          %184 = sbr.rel (%p181) target = $region66
        $region65: #{lstm_by_split_forward.1} parent=27 // pred_region
          %s199 = sand.u32 512, 7
          %p200 = scmp.eq.s32.totalorder %s199, 0
          // Predicated region
          $region78: #{lstm_by_split_forward.1} parent=65 // pred_check
            %p201 = pneg %p200
          $region79: #{lstm_by_split_forward.1} parent=65 // pred_check_branch
            %203 = sbr.rel (%p201) target = $region81
          $region80: #{lstm_by_split_forward.1} parent=65 // pred_region
            loop: start=0, step=1, limit=1
            $region82: #{lstm_by_split_forward.1} parent=80 // loop_pre_header
              _
            $region83: #{lstm_by_split_forward.1} parent=80 // loop_header
              %s205 = sphi 0, %s209
              %p206 = scmp.ge.s32.totalorder %s205, 1
              %s210 = sphi %s2, %s2
              %s211 = sphi [#allocation3], [#allocation3]
            $region84: #{lstm_by_split_forward.1} parent=80 // loop_header_branch
              %208 = sbr.rel (%p206) target = $region88
            $region85: #{lstm_by_split_forward.1} parent=80 // loop_body
              %v212 = vld [vmem:[%s210] sm:$0xff]
              %213 = vst [vmem:[%s211] sm:$0xff] %v212
              %v214 = vld [vmem:[%s210 + $0x8] sm:$0xff]
              %215 = vst [vmem:[%s211 + $0x8] sm:$0xff] %v214
              %v216 = vld [vmem:[%s210 + $0x10] sm:$0xff]
              %217 = vst [vmem:[%s211 + $0x10] sm:$0xff] %v216
              %v218 = vld [vmem:[%s210 + $0x18] sm:$0xff]
              %219 = vst [vmem:[%s211 + $0x18] sm:$0xff] %v218
              %v220 = vld [vmem:[%s210 + $0x20] sm:$0xff]
              %221 = vst [vmem:[%s211 + $0x20] sm:$0xff] %v220
              %v222 = vld [vmem:[%s210 + $0x28] sm:$0xff]
              %223 = vst [vmem:[%s211 + $0x28] sm:$0xff] %v222
              %v224 = vld [vmem:[%s210 + $0x30] sm:$0xff]
              %225 = vst [vmem:[%s211 + $0x30] sm:$0xff] %v224
              %v226 = vld [vmem:[%s210 + $0x38] sm:$0xff]
              %227 = vst [vmem:[%s211 + $0x38] sm:$0xff] %v226
              %v228 = vld [vmem:[%s210 + $0x40] sm:$0xff]
              %229 = vst [vmem:[%s211 + $0x40] sm:$0xff] %v228
              %v230 = vld [vmem:[%s210 + $0x48] sm:$0xff]
              %231 = vst [vmem:[%s211 + $0x48] sm:$0xff] %v230
              %v232 = vld [vmem:[%s210 + $0x50] sm:$0xff]
              %233 = vst [vmem:[%s211 + $0x50] sm:$0xff] %v232
              %v234 = vld [vmem:[%s210 + $0x58] sm:$0xff]
              %235 = vst [vmem:[%s211 + $0x58] sm:$0xff] %v234
              %v236 = vld [vmem:[%s210 + $0x60] sm:$0xff]
              %237 = vst [vmem:[%s211 + $0x60] sm:$0xff] %v236
              %v238 = vld [vmem:[%s210 + $0x68] sm:$0xff]
              %239 = vst [vmem:[%s211 + $0x68] sm:$0xff] %v238
              %v240 = vld [vmem:[%s210 + $0x70] sm:$0xff]
              %241 = vst [vmem:[%s211 + $0x70] sm:$0xff] %v240
              %v242 = vld [vmem:[%s210 + $0x78] sm:$0xff]
              %243 = vst [vmem:[%s211 + $0x78] sm:$0xff] %v242
              %v244 = vld [vmem:[%s210 + $0x80] sm:$0xff]
              %245 = vst [vmem:[%s211 + $0x80] sm:$0xff] %v244
              %v246 = vld [vmem:[%s210 + $0x88] sm:$0xff]
              %247 = vst [vmem:[%s211 + $0x88] sm:$0xff] %v246
              %v248 = vld [vmem:[%s210 + $0x90] sm:$0xff]
              %249 = vst [vmem:[%s211 + $0x90] sm:$0xff] %v248
              %v250 = vld [vmem:[%s210 + $0x98] sm:$0xff]
              %251 = vst [vmem:[%s211 + $0x98] sm:$0xff] %v250
              %v252 = vld [vmem:[%s210 + $0xa0] sm:$0xff]
              %253 = vst [vmem:[%s211 + $0xa0] sm:$0xff] %v252
              %v254 = vld [vmem:[%s210 + $0xa8] sm:$0xff]
              %255 = vst [vmem:[%s211 + $0xa8] sm:$0xff] %v254
              %v256 = vld [vmem:[%s210 + $0xb0] sm:$0xff]
              %257 = vst [vmem:[%s211 + $0xb0] sm:$0xff] %v256
              %v258 = vld [vmem:[%s210 + $0xb8] sm:$0xff]
              %259 = vst [vmem:[%s211 + $0xb8] sm:$0xff] %v258
              %v260 = vld [vmem:[%s210 + $0xc0] sm:$0xff]
              %261 = vst [vmem:[%s211 + $0xc0] sm:$0xff] %v260
              %v262 = vld [vmem:[%s210 + $0xc8] sm:$0xff]
              %263 = vst [vmem:[%s211 + $0xc8] sm:$0xff] %v262
              %v264 = vld [vmem:[%s210 + $0xd0] sm:$0xff]
              %265 = vst [vmem:[%s211 + $0xd0] sm:$0xff] %v264
              %v266 = vld [vmem:[%s210 + $0xd8] sm:$0xff]
              %267 = vst [vmem:[%s211 + $0xd8] sm:$0xff] %v266
              %v268 = vld [vmem:[%s210 + $0xe0] sm:$0xff]
              %269 = vst [vmem:[%s211 + $0xe0] sm:$0xff] %v268
              %v270 = vld [vmem:[%s210 + $0xe8] sm:$0xff]
              %271 = vst [vmem:[%s211 + $0xe8] sm:$0xff] %v270
              %v272 = vld [vmem:[%s210 + $0xf0] sm:$0xff]
              %273 = vst [vmem:[%s211 + $0xf0] sm:$0xff] %v272
              %v274 = vld [vmem:[%s210 + $0xf8] sm:$0xff]
              %275 = vst [vmem:[%s211 + $0xf8] sm:$0xff] %v274
              %v276 = vld [vmem:[%s210 + $0x100] sm:$0xff]
              %277 = vst [vmem:[%s211 + $0x100] sm:$0xff] %v276
              %v278 = vld [vmem:[%s210 + $0x108] sm:$0xff]
              %279 = vst [vmem:[%s211 + $0x108] sm:$0xff] %v278
              %v280 = vld [vmem:[%s210 + $0x110] sm:$0xff]
              %281 = vst [vmem:[%s211 + $0x110] sm:$0xff] %v280
              %v282 = vld [vmem:[%s210 + $0x118] sm:$0xff]
              %283 = vst [vmem:[%s211 + $0x118] sm:$0xff] %v282
              %v284 = vld [vmem:[%s210 + $0x120] sm:$0xff]
              %285 = vst [vmem:[%s211 + $0x120] sm:$0xff] %v284
              %v286 = vld [vmem:[%s210 + $0x128] sm:$0xff]
              %287 = vst [vmem:[%s211 + $0x128] sm:$0xff] %v286
              %v288 = vld [vmem:[%s210 + $0x130] sm:$0xff]
              %289 = vst [vmem:[%s211 + $0x130] sm:$0xff] %v288
              %v290 = vld [vmem:[%s210 + $0x138] sm:$0xff]
              %291 = vst [vmem:[%s211 + $0x138] sm:$0xff] %v290
              %v292 = vld [vmem:[%s210 + $0x140] sm:$0xff]
              %293 = vst [vmem:[%s211 + $0x140] sm:$0xff] %v292
              %v294 = vld [vmem:[%s210 + $0x148] sm:$0xff]
              %295 = vst [vmem:[%s211 + $0x148] sm:$0xff] %v294
              %v296 = vld [vmem:[%s210 + $0x150] sm:$0xff]
              %297 = vst [vmem:[%s211 + $0x150] sm:$0xff] %v296
              %v298 = vld [vmem:[%s210 + $0x158] sm:$0xff]
              %299 = vst [vmem:[%s211 + $0x158] sm:$0xff] %v298
              %v300 = vld [vmem:[%s210 + $0x160] sm:$0xff]
              %301 = vst [vmem:[%s211 + $0x160] sm:$0xff] %v300
              %v302 = vld [vmem:[%s210 + $0x168] sm:$0xff]
              %303 = vst [vmem:[%s211 + $0x168] sm:$0xff] %v302
              %v304 = vld [vmem:[%s210 + $0x170] sm:$0xff]
              %305 = vst [vmem:[%s211 + $0x170] sm:$0xff] %v304
              %v306 = vld [vmem:[%s210 + $0x178] sm:$0xff]
              %307 = vst [vmem:[%s211 + $0x178] sm:$0xff] %v306
              %v308 = vld [vmem:[%s210 + $0x180] sm:$0xff]
              %309 = vst [vmem:[%s211 + $0x180] sm:$0xff] %v308
              %v310 = vld [vmem:[%s210 + $0x188] sm:$0xff]
              %311 = vst [vmem:[%s211 + $0x188] sm:$0xff] %v310
              %v312 = vld [vmem:[%s210 + $0x190] sm:$0xff]
              %313 = vst [vmem:[%s211 + $0x190] sm:$0xff] %v312
              %v314 = vld [vmem:[%s210 + $0x198] sm:$0xff]
              %315 = vst [vmem:[%s211 + $0x198] sm:$0xff] %v314
              %v316 = vld [vmem:[%s210 + $0x1a0] sm:$0xff]
              %317 = vst [vmem:[%s211 + $0x1a0] sm:$0xff] %v316
              %v318 = vld [vmem:[%s210 + $0x1a8] sm:$0xff]
              %319 = vst [vmem:[%s211 + $0x1a8] sm:$0xff] %v318
              %v320 = vld [vmem:[%s210 + $0x1b0] sm:$0xff]
              %321 = vst [vmem:[%s211 + $0x1b0] sm:$0xff] %v320
              %v322 = vld [vmem:[%s210 + $0x1b8] sm:$0xff]
              %323 = vst [vmem:[%s211 + $0x1b8] sm:$0xff] %v322
              %v324 = vld [vmem:[%s210 + $0x1c0] sm:$0xff]
              %325 = vst [vmem:[%s211 + $0x1c0] sm:$0xff] %v324
              %v326 = vld [vmem:[%s210 + $0x1c8] sm:$0xff]
              %327 = vst [vmem:[%s211 + $0x1c8] sm:$0xff] %v326
              %v328 = vld [vmem:[%s210 + $0x1d0] sm:$0xff]
              %329 = vst [vmem:[%s211 + $0x1d0] sm:$0xff] %v328
              %v330 = vld [vmem:[%s210 + $0x1d8] sm:$0xff]
              %331 = vst [vmem:[%s211 + $0x1d8] sm:$0xff] %v330
              %v332 = vld [vmem:[%s210 + $0x1e0] sm:$0xff]
              %333 = vst [vmem:[%s211 + $0x1e0] sm:$0xff] %v332
              %v334 = vld [vmem:[%s210 + $0x1e8] sm:$0xff]
              %335 = vst [vmem:[%s211 + $0x1e8] sm:$0xff] %v334
              %v336 = vld [vmem:[%s210 + $0x1f0] sm:$0xff]
              %337 = vst [vmem:[%s211 + $0x1f0] sm:$0xff] %v336
              %v338 = vld [vmem:[%s210 + $0x1f8] sm:$0xff]
              %339 = vst [vmem:[%s211 + $0x1f8] sm:$0xff] %v338
            $region86: #{lstm_by_split_forward.1} parent=80 // loop_footer
              %s209 = sadd.s32 1, %s205
            $region87: #{lstm_by_split_forward.1} parent=80 // loop_footer_branch
              %204 = sbr.rel target = $region83
            $region88: #{lstm_by_split_forward.1} parent=80 // loop_exit
              _
          $region81: #{lstm_by_split_forward.1} parent=65 // pred_fallthru
            _
          %p340 = pneg %p200
          // Predicated region
          $region89: #{lstm_by_split_forward.1} parent=65 // pred_check
            _
          $region90: #{lstm_by_split_forward.1} parent=65 // pred_check_branch
            %342 = sbr.rel (%p200) target = $region92
          $region91: #{lstm_by_split_forward.1} parent=65 // pred_region
            %s343 = sand.u32 512, 7
          $region92: #{lstm_by_split_forward.1} parent=65 // pred_fallthru
            _
        $region66: #{lstm_by_split_forward.1} parent=27 // pred_fallthru
          _
        // Predicated region
        $region67: #{lstm_by_split_forward.1} parent=27 // pred_check
          %p185 = pneg %p181
        $region68: #{lstm_by_split_forward.1} parent=27 // pred_check_branch
          %187 = sbr.rel (%p185) target = $region70
        $region69: #{lstm_by_split_forward.1} parent=27 // pred_region
          %s188 = sshllo.u32 0, 512
          loop: start=0, step=1, limit=1
          $region71: #{lstm_by_split_forward.1} parent=69 // loop_pre_header
            _
          $region72: #{lstm_by_split_forward.1} parent=69 // loop_header
            %s190 = sphi 0, %s194
            %p191 = scmp.ge.s32.totalorder %s190, 1
            %s195 = sphi %s2, %s2
            %s196 = sphi [#allocation3], [#allocation3]
          $region73: #{lstm_by_split_forward.1} parent=69 // loop_header_branch
            %193 = sbr.rel (%p191) target = $region77
          $region74: #{lstm_by_split_forward.1} parent=69 // loop_body
            %v197 = vld [vmem:[%s195] sm:%s188]
            %198 = vst [vmem:[%s196] sm:%s188] %v197
          $region75: #{lstm_by_split_forward.1} parent=69 // loop_footer
            %s194 = sadd.s32 1, %s190
          $region76: #{lstm_by_split_forward.1} parent=69 // loop_footer_branch
            %189 = sbr.rel target = $region72
          $region77: #{lstm_by_split_forward.1} parent=69 // loop_exit
            _
        $region70: #{lstm_by_split_forward.1} parent=27 // pred_fallthru
          _
        // Predicated region
        $region93: #{lstm_by_split_forward.1} parent=27 // pred_check
          _
        $region94: #{lstm_by_split_forward.1} parent=27 // pred_check_branch
          %346 = sbr.rel (0) target = $region96
        $region95: #{lstm_by_split_forward.1} parent=27 // pred_region
          %347 = vsyncadd %s179, 8192
        $region96: #{lstm_by_split_forward.1} parent=27 // pred_fallthru
          _
        %s348 = scalar_lea.sflag [#allocation15], 2
        %p350 = scmp.lt.u32.totalorder 4, 8
        %p351 = pneg %p350
        // Predicated region
        $region97: #{lstm_by_split_forward.1} parent=27 // pred_check
          _
        $region98: #{lstm_by_split_forward.1} parent=27 // pred_check_branch
          %353 = sbr.rel (%p350) target = $region100
        $region99: #{lstm_by_split_forward.1} parent=27 // pred_region
          %s368 = sand.u32 4, 7
          %p369 = scmp.eq.s32.totalorder %s368, 0
          %p370 = pneg %p369
          // Predicated region
          $region112: #{lstm_by_split_forward.1} parent=99 // pred_check
            _
          $region113: #{lstm_by_split_forward.1} parent=99 // pred_check_branch
            %372 = sbr.rel (%p369) target = $region115
          $region114: #{lstm_by_split_forward.1} parent=99 // pred_region
            %s373 = sand.u32 4, 7
            %s374 = ssub.s32 4, %s373
            %s375 = scalar_lea.vmem %s3, %s374
            %s376 = ssub.s32 4, %s373
            %s377 = scalar_lea.vmem [#allocation4], %s376
            %s378 = sshllo.u32 0, %s373
            loop: start=0, step=1, limit=1
            $region116: #{lstm_by_split_forward.1} parent=114 // loop_pre_header
              _
            $region117: #{lstm_by_split_forward.1} parent=114 // loop_header
              %s380 = sphi 0, %s384
              %p381 = scmp.ge.s32.totalorder %s380, 1
              %s385 = sphi %s375, %s375
              %s386 = sphi %s377, %s377
            $region118: #{lstm_by_split_forward.1} parent=114 // loop_header_branch
              %383 = sbr.rel (%p381) target = $region122
            $region119: #{lstm_by_split_forward.1} parent=114 // loop_body
              %v387 = vld [vmem:[%s385] sm:%s378]
              %388 = vst [vmem:[%s386] sm:%s378] %v387
            $region120: #{lstm_by_split_forward.1} parent=114 // loop_footer
              %s384 = sadd.s32 1, %s380
            $region121: #{lstm_by_split_forward.1} parent=114 // loop_footer_branch
              %379 = sbr.rel target = $region117
            $region122: #{lstm_by_split_forward.1} parent=114 // loop_exit
              _
          $region115: #{lstm_by_split_forward.1} parent=99 // pred_fallthru
            _
        $region100: #{lstm_by_split_forward.1} parent=27 // pred_fallthru
          _
        // Predicated region
        $region101: #{lstm_by_split_forward.1} parent=27 // pred_check
          %p354 = pneg %p350
        $region102: #{lstm_by_split_forward.1} parent=27 // pred_check_branch
          %356 = sbr.rel (%p354) target = $region104
        $region103: #{lstm_by_split_forward.1} parent=27 // pred_region
          %s357 = sshllo.u32 0, 4
          loop: start=0, step=1, limit=1
          $region105: #{lstm_by_split_forward.1} parent=103 // loop_pre_header
            _
          $region106: #{lstm_by_split_forward.1} parent=103 // loop_header
            %s359 = sphi 0, %s363
            %p360 = scmp.ge.s32.totalorder %s359, 1
            %s364 = sphi %s3, %s3
            %s365 = sphi [#allocation4], [#allocation4]
          $region107: #{lstm_by_split_forward.1} parent=103 // loop_header_branch
            %362 = sbr.rel (%p360) target = $region111
          $region108: #{lstm_by_split_forward.1} parent=103 // loop_body
            %v366 = vld [vmem:[%s364] sm:%s357]
            %367 = vst [vmem:[%s365] sm:%s357] %v366
          $region109: #{lstm_by_split_forward.1} parent=103 // loop_footer
            %s363 = sadd.s32 1, %s359
          $region110: #{lstm_by_split_forward.1} parent=103 // loop_footer_branch
            %358 = sbr.rel target = $region106
          $region111: #{lstm_by_split_forward.1} parent=103 // loop_exit
            _
        $region104: #{lstm_by_split_forward.1} parent=27 // pred_fallthru
          _
        // Predicated region
        $region123: #{lstm_by_split_forward.1} parent=27 // pred_check
          _
        $region124: #{lstm_by_split_forward.1} parent=27 // pred_check_branch
          %391 = sbr.rel (0) target = $region126
        $region125: #{lstm_by_split_forward.1} parent=27 // pred_region
          %392 = vsyncadd %s348, 64
        $region126: #{lstm_by_split_forward.1} parent=27 // pred_fallthru
          _
        %s393 = scalar_lea.sflag [#allocation15], 3
        %p395 = scmp.lt.u32.totalorder 512, 8
        %p396 = pneg %p395
        // Predicated region
        $region127: #{lstm_by_split_forward.1} parent=27 // pred_check
          _
        $region128: #{lstm_by_split_forward.1} parent=27 // pred_check_branch
          %398 = sbr.rel (%p395) target = $region130
        $region129: #{lstm_by_split_forward.1} parent=27 // pred_region
          %s413 = sand.u32 512, 7
          %p414 = scmp.eq.s32.totalorder %s413, 0
          // Predicated region
          $region142: #{lstm_by_split_forward.1} parent=129 // pred_check
            %p415 = pneg %p414
          $region143: #{lstm_by_split_forward.1} parent=129 // pred_check_branch
            %417 = sbr.rel (%p415) target = $region145
          $region144: #{lstm_by_split_forward.1} parent=129 // pred_region
            loop: start=0, step=1, limit=1
            $region146: #{lstm_by_split_forward.1} parent=144 // loop_pre_header
              _
            $region147: #{lstm_by_split_forward.1} parent=144 // loop_header
              %s419 = sphi 0, %s423
              %p420 = scmp.ge.s32.totalorder %s419, 1
              %s424 = sphi %s4, %s4
              %s425 = sphi [#allocation5], [#allocation5]
            $region148: #{lstm_by_split_forward.1} parent=144 // loop_header_branch
              %422 = sbr.rel (%p420) target = $region152
            $region149: #{lstm_by_split_forward.1} parent=144 // loop_body
              %v426 = vld [vmem:[%s424] sm:$0xff]
              %427 = vst [vmem:[%s425] sm:$0xff] %v426
              %v428 = vld [vmem:[%s424 + $0x8] sm:$0xff]
              %429 = vst [vmem:[%s425 + $0x8] sm:$0xff] %v428
              %v430 = vld [vmem:[%s424 + $0x10] sm:$0xff]
              %431 = vst [vmem:[%s425 + $0x10] sm:$0xff] %v430
              %v432 = vld [vmem:[%s424 + $0x18] sm:$0xff]
              %433 = vst [vmem:[%s425 + $0x18] sm:$0xff] %v432
              %v434 = vld [vmem:[%s424 + $0x20] sm:$0xff]
              %435 = vst [vmem:[%s425 + $0x20] sm:$0xff] %v434
              %v436 = vld [vmem:[%s424 + $0x28] sm:$0xff]
              %437 = vst [vmem:[%s425 + $0x28] sm:$0xff] %v436
              %v438 = vld [vmem:[%s424 + $0x30] sm:$0xff]
              %439 = vst [vmem:[%s425 + $0x30] sm:$0xff] %v438
              %v440 = vld [vmem:[%s424 + $0x38] sm:$0xff]
              %441 = vst [vmem:[%s425 + $0x38] sm:$0xff] %v440
              %v442 = vld [vmem:[%s424 + $0x40] sm:$0xff]
              %443 = vst [vmem:[%s425 + $0x40] sm:$0xff] %v442
              %v444 = vld [vmem:[%s424 + $0x48] sm:$0xff]
              %445 = vst [vmem:[%s425 + $0x48] sm:$0xff] %v444
              %v446 = vld [vmem:[%s424 + $0x50] sm:$0xff]
              %447 = vst [vmem:[%s425 + $0x50] sm:$0xff] %v446
              %v448 = vld [vmem:[%s424 + $0x58] sm:$0xff]
              %449 = vst [vmem:[%s425 + $0x58] sm:$0xff] %v448
              %v450 = vld [vmem:[%s424 + $0x60] sm:$0xff]
              %451 = vst [vmem:[%s425 + $0x60] sm:$0xff] %v450
              %v452 = vld [vmem:[%s424 + $0x68] sm:$0xff]
              %453 = vst [vmem:[%s425 + $0x68] sm:$0xff] %v452
              %v454 = vld [vmem:[%s424 + $0x70] sm:$0xff]
              %455 = vst [vmem:[%s425 + $0x70] sm:$0xff] %v454
              %v456 = vld [vmem:[%s424 + $0x78] sm:$0xff]
              %457 = vst [vmem:[%s425 + $0x78] sm:$0xff] %v456
              %v458 = vld [vmem:[%s424 + $0x80] sm:$0xff]
              %459 = vst [vmem:[%s425 + $0x80] sm:$0xff] %v458
              %v460 = vld [vmem:[%s424 + $0x88] sm:$0xff]
              %461 = vst [vmem:[%s425 + $0x88] sm:$0xff] %v460
              %v462 = vld [vmem:[%s424 + $0x90] sm:$0xff]
              %463 = vst [vmem:[%s425 + $0x90] sm:$0xff] %v462
              %v464 = vld [vmem:[%s424 + $0x98] sm:$0xff]
              %465 = vst [vmem:[%s425 + $0x98] sm:$0xff] %v464
              %v466 = vld [vmem:[%s424 + $0xa0] sm:$0xff]
              %467 = vst [vmem:[%s425 + $0xa0] sm:$0xff] %v466
              %v468 = vld [vmem:[%s424 + $0xa8] sm:$0xff]
              %469 = vst [vmem:[%s425 + $0xa8] sm:$0xff] %v468
              %v470 = vld [vmem:[%s424 + $0xb0] sm:$0xff]
              %471 = vst [vmem:[%s425 + $0xb0] sm:$0xff] %v470
              %v472 = vld [vmem:[%s424 + $0xb8] sm:$0xff]
              %473 = vst [vmem:[%s425 + $0xb8] sm:$0xff] %v472
              %v474 = vld [vmem:[%s424 + $0xc0] sm:$0xff]
              %475 = vst [vmem:[%s425 + $0xc0] sm:$0xff] %v474
              %v476 = vld [vmem:[%s424 + $0xc8] sm:$0xff]
              %477 = vst [vmem:[%s425 + $0xc8] sm:$0xff] %v476
              %v478 = vld [vmem:[%s424 + $0xd0] sm:$0xff]
              %479 = vst [vmem:[%s425 + $0xd0] sm:$0xff] %v478
              %v480 = vld [vmem:[%s424 + $0xd8] sm:$0xff]
              %481 = vst [vmem:[%s425 + $0xd8] sm:$0xff] %v480
              %v482 = vld [vmem:[%s424 + $0xe0] sm:$0xff]
              %483 = vst [vmem:[%s425 + $0xe0] sm:$0xff] %v482
              %v484 = vld [vmem:[%s424 + $0xe8] sm:$0xff]
              %485 = vst [vmem:[%s425 + $0xe8] sm:$0xff] %v484
              %v486 = vld [vmem:[%s424 + $0xf0] sm:$0xff]
              %487 = vst [vmem:[%s425 + $0xf0] sm:$0xff] %v486
              %v488 = vld [vmem:[%s424 + $0xf8] sm:$0xff]
              %489 = vst [vmem:[%s425 + $0xf8] sm:$0xff] %v488
              %v490 = vld [vmem:[%s424 + $0x100] sm:$0xff]
              %491 = vst [vmem:[%s425 + $0x100] sm:$0xff] %v490
              %v492 = vld [vmem:[%s424 + $0x108] sm:$0xff]
              %493 = vst [vmem:[%s425 + $0x108] sm:$0xff] %v492
              %v494 = vld [vmem:[%s424 + $0x110] sm:$0xff]
              %495 = vst [vmem:[%s425 + $0x110] sm:$0xff] %v494
              %v496 = vld [vmem:[%s424 + $0x118] sm:$0xff]
              %497 = vst [vmem:[%s425 + $0x118] sm:$0xff] %v496
              %v498 = vld [vmem:[%s424 + $0x120] sm:$0xff]
              %499 = vst [vmem:[%s425 + $0x120] sm:$0xff] %v498
              %v500 = vld [vmem:[%s424 + $0x128] sm:$0xff]
              %501 = vst [vmem:[%s425 + $0x128] sm:$0xff] %v500
              %v502 = vld [vmem:[%s424 + $0x130] sm:$0xff]
              %503 = vst [vmem:[%s425 + $0x130] sm:$0xff] %v502
              %v504 = vld [vmem:[%s424 + $0x138] sm:$0xff]
              %505 = vst [vmem:[%s425 + $0x138] sm:$0xff] %v504
              %v506 = vld [vmem:[%s424 + $0x140] sm:$0xff]
              %507 = vst [vmem:[%s425 + $0x140] sm:$0xff] %v506
              %v508 = vld [vmem:[%s424 + $0x148] sm:$0xff]
              %509 = vst [vmem:[%s425 + $0x148] sm:$0xff] %v508
              %v510 = vld [vmem:[%s424 + $0x150] sm:$0xff]
              %511 = vst [vmem:[%s425 + $0x150] sm:$0xff] %v510
              %v512 = vld [vmem:[%s424 + $0x158] sm:$0xff]
              %513 = vst [vmem:[%s425 + $0x158] sm:$0xff] %v512
              %v514 = vld [vmem:[%s424 + $0x160] sm:$0xff]
              %515 = vst [vmem:[%s425 + $0x160] sm:$0xff] %v514
              %v516 = vld [vmem:[%s424 + $0x168] sm:$0xff]
              %517 = vst [vmem:[%s425 + $0x168] sm:$0xff] %v516
              %v518 = vld [vmem:[%s424 + $0x170] sm:$0xff]
              %519 = vst [vmem:[%s425 + $0x170] sm:$0xff] %v518
              %v520 = vld [vmem:[%s424 + $0x178] sm:$0xff]
              %521 = vst [vmem:[%s425 + $0x178] sm:$0xff] %v520
              %v522 = vld [vmem:[%s424 + $0x180] sm:$0xff]
              %523 = vst [vmem:[%s425 + $0x180] sm:$0xff] %v522
              %v524 = vld [vmem:[%s424 + $0x188] sm:$0xff]
              %525 = vst [vmem:[%s425 + $0x188] sm:$0xff] %v524
              %v526 = vld [vmem:[%s424 + $0x190] sm:$0xff]
              %527 = vst [vmem:[%s425 + $0x190] sm:$0xff] %v526
              %v528 = vld [vmem:[%s424 + $0x198] sm:$0xff]
              %529 = vst [vmem:[%s425 + $0x198] sm:$0xff] %v528
              %v530 = vld [vmem:[%s424 + $0x1a0] sm:$0xff]
              %531 = vst [vmem:[%s425 + $0x1a0] sm:$0xff] %v530
              %v532 = vld [vmem:[%s424 + $0x1a8] sm:$0xff]
              %533 = vst [vmem:[%s425 + $0x1a8] sm:$0xff] %v532
              %v534 = vld [vmem:[%s424 + $0x1b0] sm:$0xff]
              %535 = vst [vmem:[%s425 + $0x1b0] sm:$0xff] %v534
              %v536 = vld [vmem:[%s424 + $0x1b8] sm:$0xff]
              %537 = vst [vmem:[%s425 + $0x1b8] sm:$0xff] %v536
              %v538 = vld [vmem:[%s424 + $0x1c0] sm:$0xff]
              %539 = vst [vmem:[%s425 + $0x1c0] sm:$0xff] %v538
              %v540 = vld [vmem:[%s424 + $0x1c8] sm:$0xff]
              %541 = vst [vmem:[%s425 + $0x1c8] sm:$0xff] %v540
              %v542 = vld [vmem:[%s424 + $0x1d0] sm:$0xff]
              %543 = vst [vmem:[%s425 + $0x1d0] sm:$0xff] %v542
              %v544 = vld [vmem:[%s424 + $0x1d8] sm:$0xff]
              %545 = vst [vmem:[%s425 + $0x1d8] sm:$0xff] %v544
              %v546 = vld [vmem:[%s424 + $0x1e0] sm:$0xff]
              %547 = vst [vmem:[%s425 + $0x1e0] sm:$0xff] %v546
              %v548 = vld [vmem:[%s424 + $0x1e8] sm:$0xff]
              %549 = vst [vmem:[%s425 + $0x1e8] sm:$0xff] %v548
              %v550 = vld [vmem:[%s424 + $0x1f0] sm:$0xff]
              %551 = vst [vmem:[%s425 + $0x1f0] sm:$0xff] %v550
              %v552 = vld [vmem:[%s424 + $0x1f8] sm:$0xff]
              %553 = vst [vmem:[%s425 + $0x1f8] sm:$0xff] %v552
            $region150: #{lstm_by_split_forward.1} parent=144 // loop_footer
              %s423 = sadd.s32 1, %s419
            $region151: #{lstm_by_split_forward.1} parent=144 // loop_footer_branch
              %418 = sbr.rel target = $region147
            $region152: #{lstm_by_split_forward.1} parent=144 // loop_exit
              _
          $region145: #{lstm_by_split_forward.1} parent=129 // pred_fallthru
            _
          %p554 = pneg %p414
          // Predicated region
          $region153: #{lstm_by_split_forward.1} parent=129 // pred_check
            _
          $region154: #{lstm_by_split_forward.1} parent=129 // pred_check_branch
            %556 = sbr.rel (%p414) target = $region156
          $region155: #{lstm_by_split_forward.1} parent=129 // pred_region
            %s557 = sand.u32 512, 7
          $region156: #{lstm_by_split_forward.1} parent=129 // pred_fallthru
            _
        $region130: #{lstm_by_split_forward.1} parent=27 // pred_fallthru
          _
        // Predicated region
        $region131: #{lstm_by_split_forward.1} parent=27 // pred_check
          %p399 = pneg %p395
        $region132: #{lstm_by_split_forward.1} parent=27 // pred_check_branch
          %401 = sbr.rel (%p399) target = $region134
        $region133: #{lstm_by_split_forward.1} parent=27 // pred_region
          %s402 = sshllo.u32 0, 512
          loop: start=0, step=1, limit=1
          $region135: #{lstm_by_split_forward.1} parent=133 // loop_pre_header
            _
          $region136: #{lstm_by_split_forward.1} parent=133 // loop_header
            %s404 = sphi 0, %s408
            %p405 = scmp.ge.s32.totalorder %s404, 1
            %s409 = sphi %s4, %s4
            %s410 = sphi [#allocation5], [#allocation5]
          $region137: #{lstm_by_split_forward.1} parent=133 // loop_header_branch
            %407 = sbr.rel (%p405) target = $region141
          $region138: #{lstm_by_split_forward.1} parent=133 // loop_body
            %v411 = vld [vmem:[%s409] sm:%s402]
            %412 = vst [vmem:[%s410] sm:%s402] %v411
          $region139: #{lstm_by_split_forward.1} parent=133 // loop_footer
            %s408 = sadd.s32 1, %s404
          $region140: #{lstm_by_split_forward.1} parent=133 // loop_footer_branch
            %403 = sbr.rel target = $region136
          $region141: #{lstm_by_split_forward.1} parent=133 // loop_exit
            _
        $region134: #{lstm_by_split_forward.1} parent=27 // pred_fallthru
          _
        // Predicated region
        $region157: #{lstm_by_split_forward.1} parent=27 // pred_check
          _
        $region158: #{lstm_by_split_forward.1} parent=27 // pred_check_branch
          %560 = sbr.rel (0) target = $region160
        $region159: #{lstm_by_split_forward.1} parent=27 // pred_region
          %561 = vsyncadd %s393, 8192
        $region160: #{lstm_by_split_forward.1} parent=27 // pred_fallthru
          _
        %s562 = scalar_lea.sflag [#allocation15], 4
        %p564 = scmp.lt.u32.totalorder 512, 8
        %p565 = pneg %p564
        // Predicated region
        $region161: #{lstm_by_split_forward.1} parent=27 // pred_check
          _
        $region162: #{lstm_by_split_forward.1} parent=27 // pred_check_branch
          %567 = sbr.rel (%p564) target = $region164
        $region163: #{lstm_by_split_forward.1} parent=27 // pred_region
          %s582 = sand.u32 512, 7
          %p583 = scmp.eq.s32.totalorder %s582, 0
          // Predicated region
          $region176: #{lstm_by_split_forward.1} parent=163 // pred_check
            %p584 = pneg %p583
          $region177: #{lstm_by_split_forward.1} parent=163 // pred_check_branch
            %586 = sbr.rel (%p584) target = $region179
          $region178: #{lstm_by_split_forward.1} parent=163 // pred_region
            loop: start=0, step=1, limit=1
            $region180: #{lstm_by_split_forward.1} parent=178 // loop_pre_header
              _
            $region181: #{lstm_by_split_forward.1} parent=178 // loop_header
              %s588 = sphi 0, %s592
              %p589 = scmp.ge.s32.totalorder %s588, 1
              %s593 = sphi %s5, %s5
              %s594 = sphi [#allocation6], [#allocation6]
            $region182: #{lstm_by_split_forward.1} parent=178 // loop_header_branch
              %591 = sbr.rel (%p589) target = $region186
            $region183: #{lstm_by_split_forward.1} parent=178 // loop_body
              %v595 = vld [vmem:[%s593] sm:$0xff]
              %596 = vst [vmem:[%s594] sm:$0xff] %v595
              %v597 = vld [vmem:[%s593 + $0x8] sm:$0xff]
              %598 = vst [vmem:[%s594 + $0x8] sm:$0xff] %v597
              %v599 = vld [vmem:[%s593 + $0x10] sm:$0xff]
              %600 = vst [vmem:[%s594 + $0x10] sm:$0xff] %v599
              %v601 = vld [vmem:[%s593 + $0x18] sm:$0xff]
              %602 = vst [vmem:[%s594 + $0x18] sm:$0xff] %v601
              %v603 = vld [vmem:[%s593 + $0x20] sm:$0xff]
              %604 = vst [vmem:[%s594 + $0x20] sm:$0xff] %v603
              %v605 = vld [vmem:[%s593 + $0x28] sm:$0xff]
              %606 = vst [vmem:[%s594 + $0x28] sm:$0xff] %v605
              %v607 = vld [vmem:[%s593 + $0x30] sm:$0xff]
              %608 = vst [vmem:[%s594 + $0x30] sm:$0xff] %v607
              %v609 = vld [vmem:[%s593 + $0x38] sm:$0xff]
              %610 = vst [vmem:[%s594 + $0x38] sm:$0xff] %v609
              %v611 = vld [vmem:[%s593 + $0x40] sm:$0xff]
              %612 = vst [vmem:[%s594 + $0x40] sm:$0xff] %v611
              %v613 = vld [vmem:[%s593 + $0x48] sm:$0xff]
              %614 = vst [vmem:[%s594 + $0x48] sm:$0xff] %v613
              %v615 = vld [vmem:[%s593 + $0x50] sm:$0xff]
              %616 = vst [vmem:[%s594 + $0x50] sm:$0xff] %v615
              %v617 = vld [vmem:[%s593 + $0x58] sm:$0xff]
              %618 = vst [vmem:[%s594 + $0x58] sm:$0xff] %v617
              %v619 = vld [vmem:[%s593 + $0x60] sm:$0xff]
              %620 = vst [vmem:[%s594 + $0x60] sm:$0xff] %v619
              %v621 = vld [vmem:[%s593 + $0x68] sm:$0xff]
              %622 = vst [vmem:[%s594 + $0x68] sm:$0xff] %v621
              %v623 = vld [vmem:[%s593 + $0x70] sm:$0xff]
              %624 = vst [vmem:[%s594 + $0x70] sm:$0xff] %v623
              %v625 = vld [vmem:[%s593 + $0x78] sm:$0xff]
              %626 = vst [vmem:[%s594 + $0x78] sm:$0xff] %v625
              %v627 = vld [vmem:[%s593 + $0x80] sm:$0xff]
              %628 = vst [vmem:[%s594 + $0x80] sm:$0xff] %v627
              %v629 = vld [vmem:[%s593 + $0x88] sm:$0xff]
              %630 = vst [vmem:[%s594 + $0x88] sm:$0xff] %v629
              %v631 = vld [vmem:[%s593 + $0x90] sm:$0xff]
              %632 = vst [vmem:[%s594 + $0x90] sm:$0xff] %v631
              %v633 = vld [vmem:[%s593 + $0x98] sm:$0xff]
              %634 = vst [vmem:[%s594 + $0x98] sm:$0xff] %v633
              %v635 = vld [vmem:[%s593 + $0xa0] sm:$0xff]
              %636 = vst [vmem:[%s594 + $0xa0] sm:$0xff] %v635
              %v637 = vld [vmem:[%s593 + $0xa8] sm:$0xff]
              %638 = vst [vmem:[%s594 + $0xa8] sm:$0xff] %v637
              %v639 = vld [vmem:[%s593 + $0xb0] sm:$0xff]
              %640 = vst [vmem:[%s594 + $0xb0] sm:$0xff] %v639
              %v641 = vld [vmem:[%s593 + $0xb8] sm:$0xff]
              %642 = vst [vmem:[%s594 + $0xb8] sm:$0xff] %v641
              %v643 = vld [vmem:[%s593 + $0xc0] sm:$0xff]
              %644 = vst [vmem:[%s594 + $0xc0] sm:$0xff] %v643
              %v645 = vld [vmem:[%s593 + $0xc8] sm:$0xff]
              %646 = vst [vmem:[%s594 + $0xc8] sm:$0xff] %v645
              %v647 = vld [vmem:[%s593 + $0xd0] sm:$0xff]
              %648 = vst [vmem:[%s594 + $0xd0] sm:$0xff] %v647
              %v649 = vld [vmem:[%s593 + $0xd8] sm:$0xff]
              %650 = vst [vmem:[%s594 + $0xd8] sm:$0xff] %v649
              %v651 = vld [vmem:[%s593 + $0xe0] sm:$0xff]
              %652 = vst [vmem:[%s594 + $0xe0] sm:$0xff] %v651
              %v653 = vld [vmem:[%s593 + $0xe8] sm:$0xff]
              %654 = vst [vmem:[%s594 + $0xe8] sm:$0xff] %v653
              %v655 = vld [vmem:[%s593 + $0xf0] sm:$0xff]
              %656 = vst [vmem:[%s594 + $0xf0] sm:$0xff] %v655
              %v657 = vld [vmem:[%s593 + $0xf8] sm:$0xff]
              %658 = vst [vmem:[%s594 + $0xf8] sm:$0xff] %v657
              %v659 = vld [vmem:[%s593 + $0x100] sm:$0xff]
              %660 = vst [vmem:[%s594 + $0x100] sm:$0xff] %v659
              %v661 = vld [vmem:[%s593 + $0x108] sm:$0xff]
              %662 = vst [vmem:[%s594 + $0x108] sm:$0xff] %v661
              %v663 = vld [vmem:[%s593 + $0x110] sm:$0xff]
              %664 = vst [vmem:[%s594 + $0x110] sm:$0xff] %v663
              %v665 = vld [vmem:[%s593 + $0x118] sm:$0xff]
              %666 = vst [vmem:[%s594 + $0x118] sm:$0xff] %v665
              %v667 = vld [vmem:[%s593 + $0x120] sm:$0xff]
              %668 = vst [vmem:[%s594 + $0x120] sm:$0xff] %v667
              %v669 = vld [vmem:[%s593 + $0x128] sm:$0xff]
              %670 = vst [vmem:[%s594 + $0x128] sm:$0xff] %v669
              %v671 = vld [vmem:[%s593 + $0x130] sm:$0xff]
              %672 = vst [vmem:[%s594 + $0x130] sm:$0xff] %v671
              %v673 = vld [vmem:[%s593 + $0x138] sm:$0xff]
              %674 = vst [vmem:[%s594 + $0x138] sm:$0xff] %v673
              %v675 = vld [vmem:[%s593 + $0x140] sm:$0xff]
              %676 = vst [vmem:[%s594 + $0x140] sm:$0xff] %v675
              %v677 = vld [vmem:[%s593 + $0x148] sm:$0xff]
              %678 = vst [vmem:[%s594 + $0x148] sm:$0xff] %v677
              %v679 = vld [vmem:[%s593 + $0x150] sm:$0xff]
              %680 = vst [vmem:[%s594 + $0x150] sm:$0xff] %v679
              %v681 = vld [vmem:[%s593 + $0x158] sm:$0xff]
              %682 = vst [vmem:[%s594 + $0x158] sm:$0xff] %v681
              %v683 = vld [vmem:[%s593 + $0x160] sm:$0xff]
              %684 = vst [vmem:[%s594 + $0x160] sm:$0xff] %v683
              %v685 = vld [vmem:[%s593 + $0x168] sm:$0xff]
              %686 = vst [vmem:[%s594 + $0x168] sm:$0xff] %v685
              %v687 = vld [vmem:[%s593 + $0x170] sm:$0xff]
              %688 = vst [vmem:[%s594 + $0x170] sm:$0xff] %v687
              %v689 = vld [vmem:[%s593 + $0x178] sm:$0xff]
              %690 = vst [vmem:[%s594 + $0x178] sm:$0xff] %v689
              %v691 = vld [vmem:[%s593 + $0x180] sm:$0xff]
              %692 = vst [vmem:[%s594 + $0x180] sm:$0xff] %v691
              %v693 = vld [vmem:[%s593 + $0x188] sm:$0xff]
              %694 = vst [vmem:[%s594 + $0x188] sm:$0xff] %v693
              %v695 = vld [vmem:[%s593 + $0x190] sm:$0xff]
              %696 = vst [vmem:[%s594 + $0x190] sm:$0xff] %v695
              %v697 = vld [vmem:[%s593 + $0x198] sm:$0xff]
              %698 = vst [vmem:[%s594 + $0x198] sm:$0xff] %v697
              %v699 = vld [vmem:[%s593 + $0x1a0] sm:$0xff]
              %700 = vst [vmem:[%s594 + $0x1a0] sm:$0xff] %v699
              %v701 = vld [vmem:[%s593 + $0x1a8] sm:$0xff]
              %702 = vst [vmem:[%s594 + $0x1a8] sm:$0xff] %v701
              %v703 = vld [vmem:[%s593 + $0x1b0] sm:$0xff]
              %704 = vst [vmem:[%s594 + $0x1b0] sm:$0xff] %v703
              %v705 = vld [vmem:[%s593 + $0x1b8] sm:$0xff]
              %706 = vst [vmem:[%s594 + $0x1b8] sm:$0xff] %v705
              %v707 = vld [vmem:[%s593 + $0x1c0] sm:$0xff]
              %708 = vst [vmem:[%s594 + $0x1c0] sm:$0xff] %v707
              %v709 = vld [vmem:[%s593 + $0x1c8] sm:$0xff]
              %710 = vst [vmem:[%s594 + $0x1c8] sm:$0xff] %v709
              %v711 = vld [vmem:[%s593 + $0x1d0] sm:$0xff]
              %712 = vst [vmem:[%s594 + $0x1d0] sm:$0xff] %v711
              %v713 = vld [vmem:[%s593 + $0x1d8] sm:$0xff]
              %714 = vst [vmem:[%s594 + $0x1d8] sm:$0xff] %v713
              %v715 = vld [vmem:[%s593 + $0x1e0] sm:$0xff]
              %716 = vst [vmem:[%s594 + $0x1e0] sm:$0xff] %v715
              %v717 = vld [vmem:[%s593 + $0x1e8] sm:$0xff]
              %718 = vst [vmem:[%s594 + $0x1e8] sm:$0xff] %v717
              %v719 = vld [vmem:[%s593 + $0x1f0] sm:$0xff]
              %720 = vst [vmem:[%s594 + $0x1f0] sm:$0xff] %v719
              %v721 = vld [vmem:[%s593 + $0x1f8] sm:$0xff]
              %722 = vst [vmem:[%s594 + $0x1f8] sm:$0xff] %v721
            $region184: #{lstm_by_split_forward.1} parent=178 // loop_footer
              %s592 = sadd.s32 1, %s588
            $region185: #{lstm_by_split_forward.1} parent=178 // loop_footer_branch
              %587 = sbr.rel target = $region181
            $region186: #{lstm_by_split_forward.1} parent=178 // loop_exit
              _
          $region179: #{lstm_by_split_forward.1} parent=163 // pred_fallthru
            _
          %p723 = pneg %p583
          // Predicated region
          $region187: #{lstm_by_split_forward.1} parent=163 // pred_check
            _
          $region188: #{lstm_by_split_forward.1} parent=163 // pred_check_branch
            %725 = sbr.rel (%p583) target = $region190
          $region189: #{lstm_by_split_forward.1} parent=163 // pred_region
            %s726 = sand.u32 512, 7
          $region190: #{lstm_by_split_forward.1} parent=163 // pred_fallthru
            _
        $region164: #{lstm_by_split_forward.1} parent=27 // pred_fallthru
          _
        // Predicated region
        $region165: #{lstm_by_split_forward.1} parent=27 // pred_check
          %p568 = pneg %p564
        $region166: #{lstm_by_split_forward.1} parent=27 // pred_check_branch
          %570 = sbr.rel (%p568) target = $region168
        $region167: #{lstm_by_split_forward.1} parent=27 // pred_region
          %s571 = sshllo.u32 0, 512
          loop: start=0, step=1, limit=1
          $region169: #{lstm_by_split_forward.1} parent=167 // loop_pre_header
            _
          $region170: #{lstm_by_split_forward.1} parent=167 // loop_header
            %s573 = sphi 0, %s577
            %p574 = scmp.ge.s32.totalorder %s573, 1
            %s578 = sphi %s5, %s5
            %s579 = sphi [#allocation6], [#allocation6]
          $region171: #{lstm_by_split_forward.1} parent=167 // loop_header_branch
            %576 = sbr.rel (%p574) target = $region175
          $region172: #{lstm_by_split_forward.1} parent=167 // loop_body
            %v580 = vld [vmem:[%s578] sm:%s571]
            %581 = vst [vmem:[%s579] sm:%s571] %v580
          $region173: #{lstm_by_split_forward.1} parent=167 // loop_footer
            %s577 = sadd.s32 1, %s573
          $region174: #{lstm_by_split_forward.1} parent=167 // loop_footer_branch
            %572 = sbr.rel target = $region170
          $region175: #{lstm_by_split_forward.1} parent=167 // loop_exit
            _
        $region168: #{lstm_by_split_forward.1} parent=27 // pred_fallthru
          _
        // Predicated region
        $region191: #{lstm_by_split_forward.1} parent=27 // pred_check
          _
        $region192: #{lstm_by_split_forward.1} parent=27 // pred_check_branch
          %729 = sbr.rel (0) target = $region194
        $region193: #{lstm_by_split_forward.1} parent=27 // pred_region
          %730 = vsyncadd %s562, 8192
        $region194: #{lstm_by_split_forward.1} parent=27 // pred_fallthru
          _
        %s731 = scalar_lea.sflag [#allocation15], 5
        %p733 = scmp.lt.u32.totalorder 4, 8
        %p734 = pneg %p733
        // Predicated region
        $region195: #{lstm_by_split_forward.1} parent=27 // pred_check
          _
        $region196: #{lstm_by_split_forward.1} parent=27 // pred_check_branch
          %736 = sbr.rel (%p733) target = $region198
        $region197: #{lstm_by_split_forward.1} parent=27 // pred_region
          %s751 = sand.u32 4, 7
          %p752 = scmp.eq.s32.totalorder %s751, 0
          %p753 = pneg %p752
          // Predicated region
          $region210: #{lstm_by_split_forward.1} parent=197 // pred_check
            _
          $region211: #{lstm_by_split_forward.1} parent=197 // pred_check_branch
            %755 = sbr.rel (%p752) target = $region213
          $region212: #{lstm_by_split_forward.1} parent=197 // pred_region
            %s756 = sand.u32 4, 7
            %s757 = ssub.s32 4, %s756
            %s758 = scalar_lea.vmem %s6, %s757
            %s759 = ssub.s32 4, %s756
            %s760 = scalar_lea.vmem [#allocation7], %s759
            %s761 = sshllo.u32 0, %s756
            loop: start=0, step=1, limit=1
            $region214: #{lstm_by_split_forward.1} parent=212 // loop_pre_header
              _
            $region215: #{lstm_by_split_forward.1} parent=212 // loop_header
              %s763 = sphi 0, %s767
              %p764 = scmp.ge.s32.totalorder %s763, 1
              %s768 = sphi %s758, %s758
              %s769 = sphi %s760, %s760
            $region216: #{lstm_by_split_forward.1} parent=212 // loop_header_branch
              %766 = sbr.rel (%p764) target = $region220
            $region217: #{lstm_by_split_forward.1} parent=212 // loop_body
              %v770 = vld [vmem:[%s768] sm:%s761]
              %771 = vst [vmem:[%s769] sm:%s761] %v770
            $region218: #{lstm_by_split_forward.1} parent=212 // loop_footer
              %s767 = sadd.s32 1, %s763
            $region219: #{lstm_by_split_forward.1} parent=212 // loop_footer_branch
              %762 = sbr.rel target = $region215
            $region220: #{lstm_by_split_forward.1} parent=212 // loop_exit
              _
          $region213: #{lstm_by_split_forward.1} parent=197 // pred_fallthru
            _
        $region198: #{lstm_by_split_forward.1} parent=27 // pred_fallthru
          _
        // Predicated region
        $region199: #{lstm_by_split_forward.1} parent=27 // pred_check
          %p737 = pneg %p733
        $region200: #{lstm_by_split_forward.1} parent=27 // pred_check_branch
          %739 = sbr.rel (%p737) target = $region202
        $region201: #{lstm_by_split_forward.1} parent=27 // pred_region
          %s740 = sshllo.u32 0, 4
          loop: start=0, step=1, limit=1
          $region203: #{lstm_by_split_forward.1} parent=201 // loop_pre_header
            _
          $region204: #{lstm_by_split_forward.1} parent=201 // loop_header
            %s742 = sphi 0, %s746
            %p743 = scmp.ge.s32.totalorder %s742, 1
            %s747 = sphi %s6, %s6
            %s748 = sphi [#allocation7], [#allocation7]
          $region205: #{lstm_by_split_forward.1} parent=201 // loop_header_branch
            %745 = sbr.rel (%p743) target = $region209
          $region206: #{lstm_by_split_forward.1} parent=201 // loop_body
            %v749 = vld [vmem:[%s747] sm:%s740]
            %750 = vst [vmem:[%s748] sm:%s740] %v749
          $region207: #{lstm_by_split_forward.1} parent=201 // loop_footer
            %s746 = sadd.s32 1, %s742
          $region208: #{lstm_by_split_forward.1} parent=201 // loop_footer_branch
            %741 = sbr.rel target = $region204
          $region209: #{lstm_by_split_forward.1} parent=201 // loop_exit
            _
        $region202: #{lstm_by_split_forward.1} parent=27 // pred_fallthru
          _
        // Predicated region
        $region221: #{lstm_by_split_forward.1} parent=27 // pred_check
          _
        $region222: #{lstm_by_split_forward.1} parent=27 // pred_check_branch
          %774 = sbr.rel (0) target = $region224
        $region223: #{lstm_by_split_forward.1} parent=27 // pred_region
          %775 = vsyncadd %s731, 64
        $region224: #{lstm_by_split_forward.1} parent=27 // pred_fallthru
          _
        %s776 = scalar_lea.sflag [#allocation15], 6
        %p778 = scmp.lt.u32.totalorder 512, 8
        %p779 = pneg %p778
        // Predicated region
        $region225: #{lstm_by_split_forward.1} parent=27 // pred_check
          _
        $region226: #{lstm_by_split_forward.1} parent=27 // pred_check_branch
          %781 = sbr.rel (%p778) target = $region228
        $region227: #{lstm_by_split_forward.1} parent=27 // pred_region
          %s796 = sand.u32 512, 7
          %p797 = scmp.eq.s32.totalorder %s796, 0
          // Predicated region
          $region240: #{lstm_by_split_forward.1} parent=227 // pred_check
            %p798 = pneg %p797
          $region241: #{lstm_by_split_forward.1} parent=227 // pred_check_branch
            %800 = sbr.rel (%p798) target = $region243
          $region242: #{lstm_by_split_forward.1} parent=227 // pred_region
            loop: start=0, step=1, limit=1
            $region244: #{lstm_by_split_forward.1} parent=242 // loop_pre_header
              _
            $region245: #{lstm_by_split_forward.1} parent=242 // loop_header
              %s802 = sphi 0, %s806
              %p803 = scmp.ge.s32.totalorder %s802, 1
              %s807 = sphi %s7, %s7
              %s808 = sphi [#allocation8], [#allocation8]
            $region246: #{lstm_by_split_forward.1} parent=242 // loop_header_branch
              %805 = sbr.rel (%p803) target = $region250
            $region247: #{lstm_by_split_forward.1} parent=242 // loop_body
              %v809 = vld [vmem:[%s807] sm:$0xff]
              %810 = vst [vmem:[%s808] sm:$0xff] %v809
              %v811 = vld [vmem:[%s807 + $0x8] sm:$0xff]
              %812 = vst [vmem:[%s808 + $0x8] sm:$0xff] %v811
              %v813 = vld [vmem:[%s807 + $0x10] sm:$0xff]
              %814 = vst [vmem:[%s808 + $0x10] sm:$0xff] %v813
              %v815 = vld [vmem:[%s807 + $0x18] sm:$0xff]
              %816 = vst [vmem:[%s808 + $0x18] sm:$0xff] %v815
              %v817 = vld [vmem:[%s807 + $0x20] sm:$0xff]
              %818 = vst [vmem:[%s808 + $0x20] sm:$0xff] %v817
              %v819 = vld [vmem:[%s807 + $0x28] sm:$0xff]
              %820 = vst [vmem:[%s808 + $0x28] sm:$0xff] %v819
              %v821 = vld [vmem:[%s807 + $0x30] sm:$0xff]
              %822 = vst [vmem:[%s808 + $0x30] sm:$0xff] %v821
              %v823 = vld [vmem:[%s807 + $0x38] sm:$0xff]
              %824 = vst [vmem:[%s808 + $0x38] sm:$0xff] %v823
              %v825 = vld [vmem:[%s807 + $0x40] sm:$0xff]
              %826 = vst [vmem:[%s808 + $0x40] sm:$0xff] %v825
              %v827 = vld [vmem:[%s807 + $0x48] sm:$0xff]
              %828 = vst [vmem:[%s808 + $0x48] sm:$0xff] %v827
              %v829 = vld [vmem:[%s807 + $0x50] sm:$0xff]
              %830 = vst [vmem:[%s808 + $0x50] sm:$0xff] %v829
              %v831 = vld [vmem:[%s807 + $0x58] sm:$0xff]
              %832 = vst [vmem:[%s808 + $0x58] sm:$0xff] %v831
              %v833 = vld [vmem:[%s807 + $0x60] sm:$0xff]
              %834 = vst [vmem:[%s808 + $0x60] sm:$0xff] %v833
              %v835 = vld [vmem:[%s807 + $0x68] sm:$0xff]
              %836 = vst [vmem:[%s808 + $0x68] sm:$0xff] %v835
              %v837 = vld [vmem:[%s807 + $0x70] sm:$0xff]
              %838 = vst [vmem:[%s808 + $0x70] sm:$0xff] %v837
              %v839 = vld [vmem:[%s807 + $0x78] sm:$0xff]
              %840 = vst [vmem:[%s808 + $0x78] sm:$0xff] %v839
              %v841 = vld [vmem:[%s807 + $0x80] sm:$0xff]
              %842 = vst [vmem:[%s808 + $0x80] sm:$0xff] %v841
              %v843 = vld [vmem:[%s807 + $0x88] sm:$0xff]
              %844 = vst [vmem:[%s808 + $0x88] sm:$0xff] %v843
              %v845 = vld [vmem:[%s807 + $0x90] sm:$0xff]
              %846 = vst [vmem:[%s808 + $0x90] sm:$0xff] %v845
              %v847 = vld [vmem:[%s807 + $0x98] sm:$0xff]
              %848 = vst [vmem:[%s808 + $0x98] sm:$0xff] %v847
              %v849 = vld [vmem:[%s807 + $0xa0] sm:$0xff]
              %850 = vst [vmem:[%s808 + $0xa0] sm:$0xff] %v849
              %v851 = vld [vmem:[%s807 + $0xa8] sm:$0xff]
              %852 = vst [vmem:[%s808 + $0xa8] sm:$0xff] %v851
              %v853 = vld [vmem:[%s807 + $0xb0] sm:$0xff]
              %854 = vst [vmem:[%s808 + $0xb0] sm:$0xff] %v853
              %v855 = vld [vmem:[%s807 + $0xb8] sm:$0xff]
              %856 = vst [vmem:[%s808 + $0xb8] sm:$0xff] %v855
              %v857 = vld [vmem:[%s807 + $0xc0] sm:$0xff]
              %858 = vst [vmem:[%s808 + $0xc0] sm:$0xff] %v857
              %v859 = vld [vmem:[%s807 + $0xc8] sm:$0xff]
              %860 = vst [vmem:[%s808 + $0xc8] sm:$0xff] %v859
              %v861 = vld [vmem:[%s807 + $0xd0] sm:$0xff]
              %862 = vst [vmem:[%s808 + $0xd0] sm:$0xff] %v861
              %v863 = vld [vmem:[%s807 + $0xd8] sm:$0xff]
              %864 = vst [vmem:[%s808 + $0xd8] sm:$0xff] %v863
              %v865 = vld [vmem:[%s807 + $0xe0] sm:$0xff]
              %866 = vst [vmem:[%s808 + $0xe0] sm:$0xff] %v865
              %v867 = vld [vmem:[%s807 + $0xe8] sm:$0xff]
              %868 = vst [vmem:[%s808 + $0xe8] sm:$0xff] %v867
              %v869 = vld [vmem:[%s807 + $0xf0] sm:$0xff]
              %870 = vst [vmem:[%s808 + $0xf0] sm:$0xff] %v869
              %v871 = vld [vmem:[%s807 + $0xf8] sm:$0xff]
              %872 = vst [vmem:[%s808 + $0xf8] sm:$0xff] %v871
              %v873 = vld [vmem:[%s807 + $0x100] sm:$0xff]
              %874 = vst [vmem:[%s808 + $0x100] sm:$0xff] %v873
              %v875 = vld [vmem:[%s807 + $0x108] sm:$0xff]
              %876 = vst [vmem:[%s808 + $0x108] sm:$0xff] %v875
              %v877 = vld [vmem:[%s807 + $0x110] sm:$0xff]
              %878 = vst [vmem:[%s808 + $0x110] sm:$0xff] %v877
              %v879 = vld [vmem:[%s807 + $0x118] sm:$0xff]
              %880 = vst [vmem:[%s808 + $0x118] sm:$0xff] %v879
              %v881 = vld [vmem:[%s807 + $0x120] sm:$0xff]
              %882 = vst [vmem:[%s808 + $0x120] sm:$0xff] %v881
              %v883 = vld [vmem:[%s807 + $0x128] sm:$0xff]
              %884 = vst [vmem:[%s808 + $0x128] sm:$0xff] %v883
              %v885 = vld [vmem:[%s807 + $0x130] sm:$0xff]
              %886 = vst [vmem:[%s808 + $0x130] sm:$0xff] %v885
              %v887 = vld [vmem:[%s807 + $0x138] sm:$0xff]
              %888 = vst [vmem:[%s808 + $0x138] sm:$0xff] %v887
              %v889 = vld [vmem:[%s807 + $0x140] sm:$0xff]
              %890 = vst [vmem:[%s808 + $0x140] sm:$0xff] %v889
              %v891 = vld [vmem:[%s807 + $0x148] sm:$0xff]
              %892 = vst [vmem:[%s808 + $0x148] sm:$0xff] %v891
              %v893 = vld [vmem:[%s807 + $0x150] sm:$0xff]
              %894 = vst [vmem:[%s808 + $0x150] sm:$0xff] %v893
              %v895 = vld [vmem:[%s807 + $0x158] sm:$0xff]
              %896 = vst [vmem:[%s808 + $0x158] sm:$0xff] %v895
              %v897 = vld [vmem:[%s807 + $0x160] sm:$0xff]
              %898 = vst [vmem:[%s808 + $0x160] sm:$0xff] %v897
              %v899 = vld [vmem:[%s807 + $0x168] sm:$0xff]
              %900 = vst [vmem:[%s808 + $0x168] sm:$0xff] %v899
              %v901 = vld [vmem:[%s807 + $0x170] sm:$0xff]
              %902 = vst [vmem:[%s808 + $0x170] sm:$0xff] %v901
              %v903 = vld [vmem:[%s807 + $0x178] sm:$0xff]
              %904 = vst [vmem:[%s808 + $0x178] sm:$0xff] %v903
              %v905 = vld [vmem:[%s807 + $0x180] sm:$0xff]
              %906 = vst [vmem:[%s808 + $0x180] sm:$0xff] %v905
              %v907 = vld [vmem:[%s807 + $0x188] sm:$0xff]
              %908 = vst [vmem:[%s808 + $0x188] sm:$0xff] %v907
              %v909 = vld [vmem:[%s807 + $0x190] sm:$0xff]
              %910 = vst [vmem:[%s808 + $0x190] sm:$0xff] %v909
              %v911 = vld [vmem:[%s807 + $0x198] sm:$0xff]
              %912 = vst [vmem:[%s808 + $0x198] sm:$0xff] %v911
              %v913 = vld [vmem:[%s807 + $0x1a0] sm:$0xff]
              %914 = vst [vmem:[%s808 + $0x1a0] sm:$0xff] %v913
              %v915 = vld [vmem:[%s807 + $0x1a8] sm:$0xff]
              %916 = vst [vmem:[%s808 + $0x1a8] sm:$0xff] %v915
              %v917 = vld [vmem:[%s807 + $0x1b0] sm:$0xff]
              %918 = vst [vmem:[%s808 + $0x1b0] sm:$0xff] %v917
              %v919 = vld [vmem:[%s807 + $0x1b8] sm:$0xff]
              %920 = vst [vmem:[%s808 + $0x1b8] sm:$0xff] %v919
              %v921 = vld [vmem:[%s807 + $0x1c0] sm:$0xff]
              %922 = vst [vmem:[%s808 + $0x1c0] sm:$0xff] %v921
              %v923 = vld [vmem:[%s807 + $0x1c8] sm:$0xff]
              %924 = vst [vmem:[%s808 + $0x1c8] sm:$0xff] %v923
              %v925 = vld [vmem:[%s807 + $0x1d0] sm:$0xff]
              %926 = vst [vmem:[%s808 + $0x1d0] sm:$0xff] %v925
              %v927 = vld [vmem:[%s807 + $0x1d8] sm:$0xff]
              %928 = vst [vmem:[%s808 + $0x1d8] sm:$0xff] %v927
              %v929 = vld [vmem:[%s807 + $0x1e0] sm:$0xff]
              %930 = vst [vmem:[%s808 + $0x1e0] sm:$0xff] %v929
              %v931 = vld [vmem:[%s807 + $0x1e8] sm:$0xff]
              %932 = vst [vmem:[%s808 + $0x1e8] sm:$0xff] %v931
              %v933 = vld [vmem:[%s807 + $0x1f0] sm:$0xff]
              %934 = vst [vmem:[%s808 + $0x1f0] sm:$0xff] %v933
              %v935 = vld [vmem:[%s807 + $0x1f8] sm:$0xff]
              %936 = vst [vmem:[%s808 + $0x1f8] sm:$0xff] %v935
            $region248: #{lstm_by_split_forward.1} parent=242 // loop_footer
              %s806 = sadd.s32 1, %s802
            $region249: #{lstm_by_split_forward.1} parent=242 // loop_footer_branch
              %801 = sbr.rel target = $region245
            $region250: #{lstm_by_split_forward.1} parent=242 // loop_exit
              _
          $region243: #{lstm_by_split_forward.1} parent=227 // pred_fallthru
            _
          %p937 = pneg %p797
          // Predicated region
          $region251: #{lstm_by_split_forward.1} parent=227 // pred_check
            _
          $region252: #{lstm_by_split_forward.1} parent=227 // pred_check_branch
            %939 = sbr.rel (%p797) target = $region254
          $region253: #{lstm_by_split_forward.1} parent=227 // pred_region
            %s940 = sand.u32 512, 7
          $region254: #{lstm_by_split_forward.1} parent=227 // pred_fallthru
            _
        $region228: #{lstm_by_split_forward.1} parent=27 // pred_fallthru
          _
        // Predicated region
        $region229: #{lstm_by_split_forward.1} parent=27 // pred_check
          %p782 = pneg %p778
        $region230: #{lstm_by_split_forward.1} parent=27 // pred_check_branch
          %784 = sbr.rel (%p782) target = $region232
        $region231: #{lstm_by_split_forward.1} parent=27 // pred_region
          %s785 = sshllo.u32 0, 512
          loop: start=0, step=1, limit=1
          $region233: #{lstm_by_split_forward.1} parent=231 // loop_pre_header
            _
          $region234: #{lstm_by_split_forward.1} parent=231 // loop_header
            %s787 = sphi 0, %s791
            %p788 = scmp.ge.s32.totalorder %s787, 1
            %s792 = sphi %s7, %s7
            %s793 = sphi [#allocation8], [#allocation8]
          $region235: #{lstm_by_split_forward.1} parent=231 // loop_header_branch
            %790 = sbr.rel (%p788) target = $region239
          $region236: #{lstm_by_split_forward.1} parent=231 // loop_body
            %v794 = vld [vmem:[%s792] sm:%s785]
            %795 = vst [vmem:[%s793] sm:%s785] %v794
          $region237: #{lstm_by_split_forward.1} parent=231 // loop_footer
            %s791 = sadd.s32 1, %s787
          $region238: #{lstm_by_split_forward.1} parent=231 // loop_footer_branch
            %786 = sbr.rel target = $region234
          $region239: #{lstm_by_split_forward.1} parent=231 // loop_exit
            _
        $region232: #{lstm_by_split_forward.1} parent=27 // pred_fallthru
          _
        // Predicated region
        $region255: #{lstm_by_split_forward.1} parent=27 // pred_check
          _
        $region256: #{lstm_by_split_forward.1} parent=27 // pred_check_branch
          %943 = sbr.rel (0) target = $region258
        $region257: #{lstm_by_split_forward.1} parent=27 // pred_region
          %944 = vsyncadd %s776, 8192
        $region258: #{lstm_by_split_forward.1} parent=27 // pred_fallthru
          _
        %s945 = scalar_lea.sflag [#allocation15], 7
        %p947 = scmp.lt.u32.totalorder 512, 8
        %p948 = pneg %p947
        // Predicated region
        $region259: #{lstm_by_split_forward.1} parent=27 // pred_check
          _
        $region260: #{lstm_by_split_forward.1} parent=27 // pred_check_branch
          %950 = sbr.rel (%p947) target = $region262
        $region261: #{lstm_by_split_forward.1} parent=27 // pred_region
          %s965 = sand.u32 512, 7
          %p966 = scmp.eq.s32.totalorder %s965, 0
          // Predicated region
          $region274: #{lstm_by_split_forward.1} parent=261 // pred_check
            %p967 = pneg %p966
          $region275: #{lstm_by_split_forward.1} parent=261 // pred_check_branch
            %969 = sbr.rel (%p967) target = $region277
          $region276: #{lstm_by_split_forward.1} parent=261 // pred_region
            loop: start=0, step=1, limit=1
            $region278: #{lstm_by_split_forward.1} parent=276 // loop_pre_header
              _
            $region279: #{lstm_by_split_forward.1} parent=276 // loop_header
              %s971 = sphi 0, %s975
              %p972 = scmp.ge.s32.totalorder %s971, 1
              %s976 = sphi %s8, %s8
              %s977 = sphi [#allocation9], [#allocation9]
            $region280: #{lstm_by_split_forward.1} parent=276 // loop_header_branch
              %974 = sbr.rel (%p972) target = $region284
            $region281: #{lstm_by_split_forward.1} parent=276 // loop_body
              %v978 = vld [vmem:[%s976] sm:$0xff]
              %979 = vst [vmem:[%s977] sm:$0xff] %v978
              %v980 = vld [vmem:[%s976 + $0x8] sm:$0xff]
              %981 = vst [vmem:[%s977 + $0x8] sm:$0xff] %v980
              %v982 = vld [vmem:[%s976 + $0x10] sm:$0xff]
              %983 = vst [vmem:[%s977 + $0x10] sm:$0xff] %v982
              %v984 = vld [vmem:[%s976 + $0x18] sm:$0xff]
              %985 = vst [vmem:[%s977 + $0x18] sm:$0xff] %v984
              %v986 = vld [vmem:[%s976 + $0x20] sm:$0xff]
              %987 = vst [vmem:[%s977 + $0x20] sm:$0xff] %v986
              %v988 = vld [vmem:[%s976 + $0x28] sm:$0xff]
              %989 = vst [vmem:[%s977 + $0x28] sm:$0xff] %v988
              %v990 = vld [vmem:[%s976 + $0x30] sm:$0xff]
              %991 = vst [vmem:[%s977 + $0x30] sm:$0xff] %v990
              %v992 = vld [vmem:[%s976 + $0x38] sm:$0xff]
              %993 = vst [vmem:[%s977 + $0x38] sm:$0xff] %v992
              %v994 = vld [vmem:[%s976 + $0x40] sm:$0xff]
              %995 = vst [vmem:[%s977 + $0x40] sm:$0xff] %v994
              %v996 = vld [vmem:[%s976 + $0x48] sm:$0xff]
              %997 = vst [vmem:[%s977 + $0x48] sm:$0xff] %v996
              %v998 = vld [vmem:[%s976 + $0x50] sm:$0xff]
              %999 = vst [vmem:[%s977 + $0x50] sm:$0xff] %v998
              %v1000 = vld [vmem:[%s976 + $0x58] sm:$0xff]
              %1001 = vst [vmem:[%s977 + $0x58] sm:$0xff] %v1000
              %v1002 = vld [vmem:[%s976 + $0x60] sm:$0xff]
              %1003 = vst [vmem:[%s977 + $0x60] sm:$0xff] %v1002
              %v1004 = vld [vmem:[%s976 + $0x68] sm:$0xff]
              %1005 = vst [vmem:[%s977 + $0x68] sm:$0xff] %v1004
              %v1006 = vld [vmem:[%s976 + $0x70] sm:$0xff]
              %1007 = vst [vmem:[%s977 + $0x70] sm:$0xff] %v1006
              %v1008 = vld [vmem:[%s976 + $0x78] sm:$0xff]
              %1009 = vst [vmem:[%s977 + $0x78] sm:$0xff] %v1008
              %v1010 = vld [vmem:[%s976 + $0x80] sm:$0xff]
              %1011 = vst [vmem:[%s977 + $0x80] sm:$0xff] %v1010
              %v1012 = vld [vmem:[%s976 + $0x88] sm:$0xff]
              %1013 = vst [vmem:[%s977 + $0x88] sm:$0xff] %v1012
              %v1014 = vld [vmem:[%s976 + $0x90] sm:$0xff]
              %1015 = vst [vmem:[%s977 + $0x90] sm:$0xff] %v1014
              %v1016 = vld [vmem:[%s976 + $0x98] sm:$0xff]
              %1017 = vst [vmem:[%s977 + $0x98] sm:$0xff] %v1016
              %v1018 = vld [vmem:[%s976 + $0xa0] sm:$0xff]
              %1019 = vst [vmem:[%s977 + $0xa0] sm:$0xff] %v1018
              %v1020 = vld [vmem:[%s976 + $0xa8] sm:$0xff]
              %1021 = vst [vmem:[%s977 + $0xa8] sm:$0xff] %v1020
              %v1022 = vld [vmem:[%s976 + $0xb0] sm:$0xff]
              %1023 = vst [vmem:[%s977 + $0xb0] sm:$0xff] %v1022
              %v1024 = vld [vmem:[%s976 + $0xb8] sm:$0xff]
              %1025 = vst [vmem:[%s977 + $0xb8] sm:$0xff] %v1024
              %v1026 = vld [vmem:[%s976 + $0xc0] sm:$0xff]
              %1027 = vst [vmem:[%s977 + $0xc0] sm:$0xff] %v1026
              %v1028 = vld [vmem:[%s976 + $0xc8] sm:$0xff]
              %1029 = vst [vmem:[%s977 + $0xc8] sm:$0xff] %v1028
              %v1030 = vld [vmem:[%s976 + $0xd0] sm:$0xff]
              %1031 = vst [vmem:[%s977 + $0xd0] sm:$0xff] %v1030
              %v1032 = vld [vmem:[%s976 + $0xd8] sm:$0xff]
              %1033 = vst [vmem:[%s977 + $0xd8] sm:$0xff] %v1032
              %v1034 = vld [vmem:[%s976 + $0xe0] sm:$0xff]
              %1035 = vst [vmem:[%s977 + $0xe0] sm:$0xff] %v1034
              %v1036 = vld [vmem:[%s976 + $0xe8] sm:$0xff]
              %1037 = vst [vmem:[%s977 + $0xe8] sm:$0xff] %v1036
              %v1038 = vld [vmem:[%s976 + $0xf0] sm:$0xff]
              %1039 = vst [vmem:[%s977 + $0xf0] sm:$0xff] %v1038
              %v1040 = vld [vmem:[%s976 + $0xf8] sm:$0xff]
              %1041 = vst [vmem:[%s977 + $0xf8] sm:$0xff] %v1040
              %v1042 = vld [vmem:[%s976 + $0x100] sm:$0xff]
              %1043 = vst [vmem:[%s977 + $0x100] sm:$0xff] %v1042
              %v1044 = vld [vmem:[%s976 + $0x108] sm:$0xff]
              %1045 = vst [vmem:[%s977 + $0x108] sm:$0xff] %v1044
              %v1046 = vld [vmem:[%s976 + $0x110] sm:$0xff]
              %1047 = vst [vmem:[%s977 + $0x110] sm:$0xff] %v1046
              %v1048 = vld [vmem:[%s976 + $0x118] sm:$0xff]
              %1049 = vst [vmem:[%s977 + $0x118] sm:$0xff] %v1048
              %v1050 = vld [vmem:[%s976 + $0x120] sm:$0xff]
              %1051 = vst [vmem:[%s977 + $0x120] sm:$0xff] %v1050
              %v1052 = vld [vmem:[%s976 + $0x128] sm:$0xff]
              %1053 = vst [vmem:[%s977 + $0x128] sm:$0xff] %v1052
              %v1054 = vld [vmem:[%s976 + $0x130] sm:$0xff]
              %1055 = vst [vmem:[%s977 + $0x130] sm:$0xff] %v1054
              %v1056 = vld [vmem:[%s976 + $0x138] sm:$0xff]
              %1057 = vst [vmem:[%s977 + $0x138] sm:$0xff] %v1056
              %v1058 = vld [vmem:[%s976 + $0x140] sm:$0xff]
              %1059 = vst [vmem:[%s977 + $0x140] sm:$0xff] %v1058
              %v1060 = vld [vmem:[%s976 + $0x148] sm:$0xff]
              %1061 = vst [vmem:[%s977 + $0x148] sm:$0xff] %v1060
              %v1062 = vld [vmem:[%s976 + $0x150] sm:$0xff]
              %1063 = vst [vmem:[%s977 + $0x150] sm:$0xff] %v1062
              %v1064 = vld [vmem:[%s976 + $0x158] sm:$0xff]
              %1065 = vst [vmem:[%s977 + $0x158] sm:$0xff] %v1064
              %v1066 = vld [vmem:[%s976 + $0x160] sm:$0xff]
              %1067 = vst [vmem:[%s977 + $0x160] sm:$0xff] %v1066
              %v1068 = vld [vmem:[%s976 + $0x168] sm:$0xff]
              %1069 = vst [vmem:[%s977 + $0x168] sm:$0xff] %v1068
              %v1070 = vld [vmem:[%s976 + $0x170] sm:$0xff]
              %1071 = vst [vmem:[%s977 + $0x170] sm:$0xff] %v1070
              %v1072 = vld [vmem:[%s976 + $0x178] sm:$0xff]
              %1073 = vst [vmem:[%s977 + $0x178] sm:$0xff] %v1072
              %v1074 = vld [vmem:[%s976 + $0x180] sm:$0xff]
              %1075 = vst [vmem:[%s977 + $0x180] sm:$0xff] %v1074
              %v1076 = vld [vmem:[%s976 + $0x188] sm:$0xff]
              %1077 = vst [vmem:[%s977 + $0x188] sm:$0xff] %v1076
              %v1078 = vld [vmem:[%s976 + $0x190] sm:$0xff]
              %1079 = vst [vmem:[%s977 + $0x190] sm:$0xff] %v1078
              %v1080 = vld [vmem:[%s976 + $0x198] sm:$0xff]
              %1081 = vst [vmem:[%s977 + $0x198] sm:$0xff] %v1080
              %v1082 = vld [vmem:[%s976 + $0x1a0] sm:$0xff]
              %1083 = vst [vmem:[%s977 + $0x1a0] sm:$0xff] %v1082
              %v1084 = vld [vmem:[%s976 + $0x1a8] sm:$0xff]
              %1085 = vst [vmem:[%s977 + $0x1a8] sm:$0xff] %v1084
              %v1086 = vld [vmem:[%s976 + $0x1b0] sm:$0xff]
              %1087 = vst [vmem:[%s977 + $0x1b0] sm:$0xff] %v1086
              %v1088 = vld [vmem:[%s976 + $0x1b8] sm:$0xff]
              %1089 = vst [vmem:[%s977 + $0x1b8] sm:$0xff] %v1088
              %v1090 = vld [vmem:[%s976 + $0x1c0] sm:$0xff]
              %1091 = vst [vmem:[%s977 + $0x1c0] sm:$0xff] %v1090
              %v1092 = vld [vmem:[%s976 + $0x1c8] sm:$0xff]
              %1093 = vst [vmem:[%s977 + $0x1c8] sm:$0xff] %v1092
              %v1094 = vld [vmem:[%s976 + $0x1d0] sm:$0xff]
              %1095 = vst [vmem:[%s977 + $0x1d0] sm:$0xff] %v1094
              %v1096 = vld [vmem:[%s976 + $0x1d8] sm:$0xff]
              %1097 = vst [vmem:[%s977 + $0x1d8] sm:$0xff] %v1096
              %v1098 = vld [vmem:[%s976 + $0x1e0] sm:$0xff]
              %1099 = vst [vmem:[%s977 + $0x1e0] sm:$0xff] %v1098
              %v1100 = vld [vmem:[%s976 + $0x1e8] sm:$0xff]
              %1101 = vst [vmem:[%s977 + $0x1e8] sm:$0xff] %v1100
              %v1102 = vld [vmem:[%s976 + $0x1f0] sm:$0xff]
              %1103 = vst [vmem:[%s977 + $0x1f0] sm:$0xff] %v1102
              %v1104 = vld [vmem:[%s976 + $0x1f8] sm:$0xff]
              %1105 = vst [vmem:[%s977 + $0x1f8] sm:$0xff] %v1104
            $region282: #{lstm_by_split_forward.1} parent=276 // loop_footer
              %s975 = sadd.s32 1, %s971
            $region283: #{lstm_by_split_forward.1} parent=276 // loop_footer_branch
              %970 = sbr.rel target = $region279
            $region284: #{lstm_by_split_forward.1} parent=276 // loop_exit
              _
          $region277: #{lstm_by_split_forward.1} parent=261 // pred_fallthru
            _
          %p1106 = pneg %p966
          // Predicated region
          $region285: #{lstm_by_split_forward.1} parent=261 // pred_check
            _
          $region286: #{lstm_by_split_forward.1} parent=261 // pred_check_branch
            %1108 = sbr.rel (%p966) target = $region288
          $region287: #{lstm_by_split_forward.1} parent=261 // pred_region
            %s1109 = sand.u32 512, 7
          $region288: #{lstm_by_split_forward.1} parent=261 // pred_fallthru
            _
        $region262: #{lstm_by_split_forward.1} parent=27 // pred_fallthru
          _
        // Predicated region
        $region263: #{lstm_by_split_forward.1} parent=27 // pred_check
          %p951 = pneg %p947
        $region264: #{lstm_by_split_forward.1} parent=27 // pred_check_branch
          %953 = sbr.rel (%p951) target = $region266
        $region265: #{lstm_by_split_forward.1} parent=27 // pred_region
          %s954 = sshllo.u32 0, 512
          loop: start=0, step=1, limit=1
          $region267: #{lstm_by_split_forward.1} parent=265 // loop_pre_header
            _
          $region268: #{lstm_by_split_forward.1} parent=265 // loop_header
            %s956 = sphi 0, %s960
            %p957 = scmp.ge.s32.totalorder %s956, 1
            %s961 = sphi %s8, %s8
            %s962 = sphi [#allocation9], [#allocation9]
          $region269: #{lstm_by_split_forward.1} parent=265 // loop_header_branch
            %959 = sbr.rel (%p957) target = $region273
          $region270: #{lstm_by_split_forward.1} parent=265 // loop_body
            %v963 = vld [vmem:[%s961] sm:%s954]
            %964 = vst [vmem:[%s962] sm:%s954] %v963
          $region271: #{lstm_by_split_forward.1} parent=265 // loop_footer
            %s960 = sadd.s32 1, %s956
          $region272: #{lstm_by_split_forward.1} parent=265 // loop_footer_branch
            %955 = sbr.rel target = $region268
          $region273: #{lstm_by_split_forward.1} parent=265 // loop_exit
            _
        $region266: #{lstm_by_split_forward.1} parent=27 // pred_fallthru
          _
        // Predicated region
        $region289: #{lstm_by_split_forward.1} parent=27 // pred_check
          _
        $region290: #{lstm_by_split_forward.1} parent=27 // pred_check_branch
          %1112 = sbr.rel (0) target = $region292
        $region291: #{lstm_by_split_forward.1} parent=27 // pred_region
          %1113 = vsyncadd %s945, 8192
        $region292: #{lstm_by_split_forward.1} parent=27 // pred_fallthru
          _
        %s1114 = scalar_lea.sflag [#allocation15], 8
        %p1116 = scmp.lt.u32.totalorder 4, 8
        %p1117 = pneg %p1116
        // Predicated region
        $region293: #{lstm_by_split_forward.1} parent=27 // pred_check
          _
        $region294: #{lstm_by_split_forward.1} parent=27 // pred_check_branch
          %1119 = sbr.rel (%p1116) target = $region296
        $region295: #{lstm_by_split_forward.1} parent=27 // pred_region
          %s1134 = sand.u32 4, 7
          %p1135 = scmp.eq.s32.totalorder %s1134, 0
          %p1136 = pneg %p1135
          // Predicated region
          $region308: #{lstm_by_split_forward.1} parent=295 // pred_check
            _
          $region309: #{lstm_by_split_forward.1} parent=295 // pred_check_branch
            %1138 = sbr.rel (%p1135) target = $region311
          $region310: #{lstm_by_split_forward.1} parent=295 // pred_region
            %s1139 = sand.u32 4, 7
            %s1140 = ssub.s32 4, %s1139
            %s1141 = scalar_lea.vmem %s9, %s1140
            %s1142 = ssub.s32 4, %s1139
            %s1143 = scalar_lea.vmem [#allocation10], %s1142
            %s1144 = sshllo.u32 0, %s1139
            loop: start=0, step=1, limit=1
            $region312: #{lstm_by_split_forward.1} parent=310 // loop_pre_header
              _
            $region313: #{lstm_by_split_forward.1} parent=310 // loop_header
              %s1146 = sphi 0, %s1150
              %p1147 = scmp.ge.s32.totalorder %s1146, 1
              %s1151 = sphi %s1141, %s1141
              %s1152 = sphi %s1143, %s1143
            $region314: #{lstm_by_split_forward.1} parent=310 // loop_header_branch
              %1149 = sbr.rel (%p1147) target = $region318
            $region315: #{lstm_by_split_forward.1} parent=310 // loop_body
              %v1153 = vld [vmem:[%s1151] sm:%s1144]
              %1154 = vst [vmem:[%s1152] sm:%s1144] %v1153
            $region316: #{lstm_by_split_forward.1} parent=310 // loop_footer
              %s1150 = sadd.s32 1, %s1146
            $region317: #{lstm_by_split_forward.1} parent=310 // loop_footer_branch
              %1145 = sbr.rel target = $region313
            $region318: #{lstm_by_split_forward.1} parent=310 // loop_exit
              _
          $region311: #{lstm_by_split_forward.1} parent=295 // pred_fallthru
            _
        $region296: #{lstm_by_split_forward.1} parent=27 // pred_fallthru
          _
        // Predicated region
        $region297: #{lstm_by_split_forward.1} parent=27 // pred_check
          %p1120 = pneg %p1116
        $region298: #{lstm_by_split_forward.1} parent=27 // pred_check_branch
          %1122 = sbr.rel (%p1120) target = $region300
        $region299: #{lstm_by_split_forward.1} parent=27 // pred_region
          %s1123 = sshllo.u32 0, 4
          loop: start=0, step=1, limit=1
          $region301: #{lstm_by_split_forward.1} parent=299 // loop_pre_header
            _
          $region302: #{lstm_by_split_forward.1} parent=299 // loop_header
            %s1125 = sphi 0, %s1129
            %p1126 = scmp.ge.s32.totalorder %s1125, 1
            %s1130 = sphi %s9, %s9
            %s1131 = sphi [#allocation10], [#allocation10]
          $region303: #{lstm_by_split_forward.1} parent=299 // loop_header_branch
            %1128 = sbr.rel (%p1126) target = $region307
          $region304: #{lstm_by_split_forward.1} parent=299 // loop_body
            %v1132 = vld [vmem:[%s1130] sm:%s1123]
            %1133 = vst [vmem:[%s1131] sm:%s1123] %v1132
          $region305: #{lstm_by_split_forward.1} parent=299 // loop_footer
            %s1129 = sadd.s32 1, %s1125
          $region306: #{lstm_by_split_forward.1} parent=299 // loop_footer_branch
            %1124 = sbr.rel target = $region302
          $region307: #{lstm_by_split_forward.1} parent=299 // loop_exit
            _
        $region300: #{lstm_by_split_forward.1} parent=27 // pred_fallthru
          _
        // Predicated region
        $region319: #{lstm_by_split_forward.1} parent=27 // pred_check
          _
        $region320: #{lstm_by_split_forward.1} parent=27 // pred_check_branch
          %1157 = sbr.rel (0) target = $region322
        $region321: #{lstm_by_split_forward.1} parent=27 // pred_region
          %1158 = vsyncadd %s1114, 64
        $region322: #{lstm_by_split_forward.1} parent=27 // pred_fallthru
          _
        %s1159 = smul.u32 8, 2
        %s1160 = smul.u32 %s1159, 4
        %s1161 = sshll.u32 %s1160, 4
        %1162 = dma.done [#allocation15], %s1161
        %s1163 = smul.u32 8, 16
        %s1164 = smul.u32 %s1163, 4
        %s1165 = sshll.u32 %s1164, 4
        %1166 = dma.done %s179, %s1165
        %s1167 = smul.u32 1, 4
        %s1168 = sshll.u32 %s1167, 4
        %1169 = dma.done %s348, %s1168
      $region28: #{lstm_by_split_forward.1} parent=23 // pred_fallthru
        _
      %v1170 = vld [vmem:[#allocation2] sm:$0xff]
      %v1171 = vld [vmem:[#allocation2 + $0x8] sm:$0xff]
      %v1172 = vld [vmem:[#allocation2 + $0x10] sm:$0xff]
      %v1173 = vld [vmem:[#allocation2 + $0x18] sm:$0xff]
      %v1174 = vld [vmem:[#allocation2 + $0x20] sm:$0xff]
      %v1175 = vld [vmem:[#allocation2 + $0x28] sm:$0xff]
      %v1176 = vld [vmem:[#allocation2 + $0x30] sm:$0xff]
      %v1177 = vld [vmem:[#allocation2 + $0x38] sm:$0xff]
      %v1178 = vld [vmem:[#allocation3] sm:$0xff]
      %v1179 = vld [vmem:[#allocation3 + $0x8] sm:$0xff]
      %v1180 = vld [vmem:[#allocation3 + $0x10] sm:$0xff]
      %v1181 = vld [vmem:[#allocation3 + $0x18] sm:$0xff]
      %v1182 = vld [vmem:[#allocation3 + $0x20] sm:$0xff]
      %v1183 = vld [vmem:[#allocation3 + $0x28] sm:$0xff]
      %v1184 = vld [vmem:[#allocation3 + $0x30] sm:$0xff]
      %v1185 = vld [vmem:[#allocation3 + $0x38] sm:$0xff]
      %v1186 = vld [vmem:[#allocation3 + $0x40] sm:$0xff]
      %v1187 = vld [vmem:[#allocation3 + $0x48] sm:$0xff]
      %v1188 = vld [vmem:[#allocation3 + $0x50] sm:$0xff]
      %v1189 = vld [vmem:[#allocation3 + $0x58] sm:$0xff]
      %v1190 = vld [vmem:[#allocation3 + $0x60] sm:$0xff]
      %v1191 = vld [vmem:[#allocation3 + $0x68] sm:$0xff]
      %v1192 = vld [vmem:[#allocation3 + $0x70] sm:$0xff]
      %v1193 = vld [vmem:[#allocation3 + $0x78] sm:$0xff]
      %v1194 = vld [vmem:[#allocation3 + $0x80] sm:$0xff]
      %v1195 = vld [vmem:[#allocation3 + $0x88] sm:$0xff]
      %v1196 = vld [vmem:[#allocation3 + $0x90] sm:$0xff]
      %v1197 = vld [vmem:[#allocation3 + $0x98] sm:$0xff]
      %v1198 = vld [vmem:[#allocation3 + $0xa0] sm:$0xff]
      %v1199 = vld [vmem:[#allocation3 + $0xa8] sm:$0xff]
      %v1200 = vld [vmem:[#allocation3 + $0xb0] sm:$0xff]
      %v1201 = vld [vmem:[#allocation3 + $0xb8] sm:$0xff]
      %v1202 = vld [vmem:[#allocation3 + $0xc0] sm:$0xff]
      %v1203 = vld [vmem:[#allocation3 + $0xc8] sm:$0xff]
      %v1204 = vld [vmem:[#allocation3 + $0xd0] sm:$0xff]
      %v1205 = vld [vmem:[#allocation3 + $0xd8] sm:$0xff]
      %v1206 = vld [vmem:[#allocation3 + $0xe0] sm:$0xff]
      %v1207 = vld [vmem:[#allocation3 + $0xe8] sm:$0xff]
      %v1208 = vld [vmem:[#allocation3 + $0xf0] sm:$0xff]
      %v1209 = vld [vmem:[#allocation3 + $0xf8] sm:$0xff]
      %v1210 = vld [vmem:[#allocation3 + $0x100] sm:$0xff]
      %v1211 = vld [vmem:[#allocation3 + $0x108] sm:$0xff]
      %v1212 = vld [vmem:[#allocation3 + $0x110] sm:$0xff]
      %v1213 = vld [vmem:[#allocation3 + $0x118] sm:$0xff]
      %v1214 = vld [vmem:[#allocation3 + $0x120] sm:$0xff]
      %v1215 = vld [vmem:[#allocation3 + $0x128] sm:$0xff]
      %v1216 = vld [vmem:[#allocation3 + $0x130] sm:$0xff]
      %v1217 = vld [vmem:[#allocation3 + $0x138] sm:$0xff]
      %v1218 = vld [vmem:[#allocation3 + $0x140] sm:$0xff]
      %v1219 = vld [vmem:[#allocation3 + $0x148] sm:$0xff]
      %v1220 = vld [vmem:[#allocation3 + $0x150] sm:$0xff]
      %v1221 = vld [vmem:[#allocation3 + $0x158] sm:$0xff]
      %v1222 = vld [vmem:[#allocation3 + $0x160] sm:$0xff]
      %v1223 = vld [vmem:[#allocation3 + $0x168] sm:$0xff]
      %v1224 = vld [vmem:[#allocation3 + $0x170] sm:$0xff]
      %v1225 = vld [vmem:[#allocation3 + $0x178] sm:$0xff]
      %v1226 = vld [vmem:[#allocation3 + $0x180] sm:$0xff]
      %v1227 = vld [vmem:[#allocation3 + $0x188] sm:$0xff]
      %v1228 = vld [vmem:[#allocation3 + $0x190] sm:$0xff]
      %v1229 = vld [vmem:[#allocation3 + $0x198] sm:$0xff]
      %v1230 = vld [vmem:[#allocation3 + $0x1a0] sm:$0xff]
      %v1231 = vld [vmem:[#allocation3 + $0x1a8] sm:$0xff]
      %v1232 = vld [vmem:[#allocation3 + $0x1b0] sm:$0xff]
      %v1233 = vld [vmem:[#allocation3 + $0x1b8] sm:$0xff]
      %v1234 = vld [vmem:[#allocation3 + $0x1c0] sm:$0xff]
      %v1235 = vld [vmem:[#allocation3 + $0x1c8] sm:$0xff]
      %v1236 = vld [vmem:[#allocation3 + $0x1d0] sm:$0xff]
      %v1237 = vld [vmem:[#allocation3 + $0x1d8] sm:$0xff]
      %v1238 = vld [vmem:[#allocation3 + $0x1e0] sm:$0xff]
      %v1239 = vld [vmem:[#allocation3 + $0x1e8] sm:$0xff]
      %v1240 = vld [vmem:[#allocation3 + $0x1f0] sm:$0xff]
      %v1241 = vld [vmem:[#allocation3 + $0x1f8] sm:$0xff]
      %v1242 = vld [vmem:[#allocation4] sm:$0xf]
      %v1243 = vld [vmem:[%s111] sm:$0xff]
      %v1244 = vld [vmem:[%s111 + $0x8] sm:$0xff]
      %v1245 = vld [vmem:[%s111 + $0x10] sm:$0xff]
      %v1246 = vld [vmem:[%s111 + $0x18] sm:$0xff]
      %v1248 = vlaneseq
      %v1249 = vshrl.u32 %v1248, 7
      %v1250 = vsub.s32 0, %v1249
      %v1251 = vrot.slane %v1242, %v1250
      %v1252 = vlaneseq
      %v1253 = vshrl.u32 %v1252, 7
      %v1254 = vsub.s32 1, %v1253
      %v1255 = vrot.slane %v1242, %v1254
      %v1256 = vlaneseq
      %v1257 = vshrl.u32 %v1256, 7
      %v1258 = vsub.s32 2, %v1257
      %v1259 = vrot.slane %v1242, %v1258
      %v1260 = vlaneseq
      %v1261 = vshrl.u32 %v1260, 7
      %v1262 = vsub.s32 3, %v1261
      %v1263 = vrot.slane %v1242, %v1262
      %vm1268 = vcmask 130048
      %v1270 = vsel %vm1268, %v1243, 0
      %v1273 = vsel %vm1268, %v1244, 0
      %v1276 = vsel %vm1268, %v1245, 0
      %v1279 = vsel %vm1268, %v1246, 0
      %1281 = vmatprep.subr.mxu0 %v1171
      %1282 = vmatpush1.msra.mxu0 %v1170
      %1283 = vmatprep.subr.mxu0 %v1175
      %1284 = vmatpush1.msra.mxu0 %v1174
      %1285 = vmatprep.subr.mxu0 0.0
      %1286 = vmatpush1.msra.mxu0 0.0
      %1287 = vmatprep.subr.mxu0 0.0
      %1288 = vmatpush1.msra.mxu0 0.0
      %1289 = vmatprep.subr.mxu0 0.0
      %1290 = vmatpush1.msra.mxu0 0.0
      %1291 = vmatprep.subr.mxu0 0.0
      %1292 = vmatpush1.msra.mxu0 0.0
      %1293 = vmatprep.subr.mxu0 0.0
      %1294 = vmatpush1.msra.mxu0 0.0
      %1295 = vmatprep.subr.mxu0 0.0
      %1296 = vmatpush1.msra.mxu0 0.0
      %1297 = vmatprep.subr.mxu0 0.0
      %1298 = vmatpush1.msra.mxu0 0.0
      %1299 = vmatprep.subr.mxu0 0.0
      %1300 = vmatpush1.msra.mxu0 0.0
      %1301 = vmatprep.subr.mxu0 0.0
      %1302 = vmatpush1.msra.mxu0 0.0
      %1303 = vmatprep.subr.mxu0 0.0
      %1304 = vmatpush1.msra.mxu0 0.0
      %1305 = vmatprep.subr.mxu0 0.0
      %1306 = vmatpush1.msra.mxu0 0.0
      %1307 = vmatprep.subr.mxu0 0.0
      %1308 = vmatpush1.msra.mxu0 0.0
      %1309 = vmatprep.subr.mxu0 0.0
      %1310 = vmatpush1.msra.mxu0 0.0
      %1311 = vmatprep.subr.mxu0 0.0
      %1312 = vmatpush1.msra.mxu0 0.0
      %1313 = vmatprep.subr.mxu0 0.0
      %1314 = vmatpush1.msra.mxu0 0.0
      %1315 = vmatprep.subr.mxu0 0.0
      %1316 = vmatpush1.msra.mxu0 0.0
      %1317 = vmatprep.subr.mxu0 0.0
      %1318 = vmatpush1.msra.mxu0 0.0
      %1319 = vmatprep.subr.mxu0 0.0
      %1320 = vmatpush1.msra.mxu0 0.0
      %1321 = vmatprep.subr.mxu0 0.0
      %1322 = vmatpush1.msra.mxu0 0.0
      %1323 = vmatprep.subr.mxu0 0.0
      %1324 = vmatpush1.msra.mxu0 0.0
      %1325 = vmatprep.subr.mxu0 0.0
      %1326 = vmatpush1.msra.mxu0 0.0
      %1327 = vmatprep.subr.mxu0 0.0
      %1328 = vmatpush1.msra.mxu0 0.0
      %1329 = vmatprep.subr.mxu0 0.0
      %1330 = vmatpush1.msra.mxu0 0.0
      %1331 = vmatprep.subr.mxu0 0.0
      %1332 = vmatpush1.msra.mxu0 0.0
      %1333 = vmatprep.subr.mxu0 0.0
      %1334 = vmatpush1.msra.mxu0 0.0
      %1335 = vmatprep.subr.mxu0 0.0
      %1336 = vmatpush1.msra.mxu0 0.0
      %1337 = vmatprep.subr.mxu0 0.0
      %1338 = vmatpush1.msra.mxu0 0.0
      %1339 = vmatprep.subr.mxu0 0.0
      %1340 = vmatpush1.msra.mxu0 0.0
      %1341 = vmatprep.subr.mxu0 0.0
      %1342 = vmatpush1.msra.mxu0 0.0
      %1343 = vmatprep.subr.mxu0 0.0
      %1344 = vmatpush1.msra.mxu0 0.0
      %1345 = vmatprep.mubr.f32.mxu0 0.0
      %1346 = vmatmul.mubr.f32.gmra.mrb[0].mxu0 %v1270
      %v1347 = vpop.f32.mrb[0].mxu0
      %v1348 = vadd.f32 %v1251, %v1347
      %v1349 = vpop.f32.mrb[0].mxu0
      %v1350 = vadd.f32 %v1255, %v1349
      %1351 = vmatprep.mubr.f32.mxu0 0.0
      %1352 = vmatmul.mubr.f32.gmra.mrb[0].mxu0 %v1273
      %v1353 = vpop.f32.mrb[0].mxu0
      %v1354 = vadd.f32 %v1251, %v1353
      %v1355 = vpop.f32.mrb[0].mxu0
      %v1356 = vadd.f32 %v1255, %v1355
      %1357 = vmatprep.mubr.f32.mxu0 0.0
      %1358 = vmatmul.mubr.f32.gmra.mrb[0].mxu0 %v1276
      %v1359 = vpop.f32.mrb[0].mxu0
      %v1360 = vadd.f32 %v1251, %v1359
      %v1361 = vpop.f32.mrb[0].mxu0
      %v1362 = vadd.f32 %v1255, %v1361
      %1363 = vmatprep.mubr.f32.mxu0 0.0
      %1364 = vmatmul.mubr.f32.gmra.mrb[0].mxu0 %v1279
      %v1365 = vpop.f32.mrb[0].mxu0
      %v1366 = vadd.f32 %v1251, %v1365
      %v1367 = vpop.f32.mrb[0].mxu0
      %v1368 = vadd.f32 %v1255, %v1367
      %1369 = vdwg.mxu0
      %1370 = vmatprep.subr.mxu0 %v1173
      %1371 = vmatpush1.msra.mxu0 %v1172
      %1372 = vmatprep.subr.mxu0 %v1177
      %1373 = vmatpush1.msra.mxu0 %v1176
      %1374 = vmatprep.subr.mxu0 0.0
      %1375 = vmatpush1.msra.mxu0 0.0
      %1376 = vmatprep.subr.mxu0 0.0
      %1377 = vmatpush1.msra.mxu0 0.0
      %1378 = vmatprep.subr.mxu0 0.0
      %1379 = vmatpush1.msra.mxu0 0.0
      %1380 = vmatprep.subr.mxu0 0.0
      %1381 = vmatpush1.msra.mxu0 0.0
      %1382 = vmatprep.subr.mxu0 0.0
      %1383 = vmatpush1.msra.mxu0 0.0
      %1384 = vmatprep.subr.mxu0 0.0
      %1385 = vmatpush1.msra.mxu0 0.0
      %1386 = vmatprep.subr.mxu0 0.0
      %1387 = vmatpush1.msra.mxu0 0.0
      %1388 = vmatprep.subr.mxu0 0.0
      %1389 = vmatpush1.msra.mxu0 0.0
      %1390 = vmatprep.subr.mxu0 0.0
      %1391 = vmatpush1.msra.mxu0 0.0
      %1392 = vmatprep.subr.mxu0 0.0
      %1393 = vmatpush1.msra.mxu0 0.0
      %1394 = vmatprep.subr.mxu0 0.0
      %1395 = vmatpush1.msra.mxu0 0.0
      %1396 = vmatprep.subr.mxu0 0.0
      %1397 = vmatpush1.msra.mxu0 0.0
      %1398 = vmatprep.subr.mxu0 0.0
      %1399 = vmatpush1.msra.mxu0 0.0
      %1400 = vmatprep.subr.mxu0 0.0
      %1401 = vmatpush1.msra.mxu0 0.0
      %1402 = vmatprep.subr.mxu0 0.0
      %1403 = vmatpush1.msra.mxu0 0.0
      %1404 = vmatprep.subr.mxu0 0.0
      %1405 = vmatpush1.msra.mxu0 0.0
      %1406 = vmatprep.subr.mxu0 0.0
      %1407 = vmatpush1.msra.mxu0 0.0
      %1408 = vmatprep.subr.mxu0 0.0
      %1409 = vmatpush1.msra.mxu0 0.0
      %1410 = vmatprep.subr.mxu0 0.0
      %1411 = vmatpush1.msra.mxu0 0.0
      %1412 = vmatprep.subr.mxu0 0.0
      %1413 = vmatpush1.msra.mxu0 0.0
      %1414 = vmatprep.subr.mxu0 0.0
      %1415 = vmatpush1.msra.mxu0 0.0
      %1416 = vmatprep.subr.mxu0 0.0
      %1417 = vmatpush1.msra.mxu0 0.0
      %1418 = vmatprep.subr.mxu0 0.0
      %1419 = vmatpush1.msra.mxu0 0.0
      %1420 = vmatprep.subr.mxu0 0.0
      %1421 = vmatpush1.msra.mxu0 0.0
      %1422 = vmatprep.subr.mxu0 0.0
      %1423 = vmatpush1.msra.mxu0 0.0
      %1424 = vmatprep.subr.mxu0 0.0
      %1425 = vmatpush1.msra.mxu0 0.0
      %1426 = vmatprep.subr.mxu0 0.0
      %1427 = vmatpush1.msra.mxu0 0.0
      %1428 = vmatprep.subr.mxu0 0.0
      %1429 = vmatpush1.msra.mxu0 0.0
      %1430 = vmatprep.subr.mxu0 0.0
      %1431 = vmatpush1.msra.mxu0 0.0
      %1432 = vmatprep.subr.mxu0 0.0
      %1433 = vmatpush1.msra.mxu0 0.0
      %1434 = vmatprep.mubr.f32.mxu0 0.0
      %1435 = vmatmul.mubr.f32.gmra.mrb[0].mxu0 %v1270
      %v1436 = vpop.f32.mrb[0].mxu0
      %v1437 = vadd.f32 %v1259, %v1436
      %v1438 = vpop.f32.mrb[0].mxu0
      %v1439 = vadd.f32 %v1263, %v1438
      %1440 = vmatprep.mubr.f32.mxu0 0.0
      %1441 = vmatmul.mubr.f32.gmra.mrb[0].mxu0 %v1273
      %v1442 = vpop.f32.mrb[0].mxu0
      %v1443 = vadd.f32 %v1259, %v1442
      %v1444 = vpop.f32.mrb[0].mxu0
      %v1445 = vadd.f32 %v1263, %v1444
      %1446 = vmatprep.mubr.f32.mxu0 0.0
      %1447 = vmatmul.mubr.f32.gmra.mrb[0].mxu0 %v1276
      %v1448 = vpop.f32.mrb[0].mxu0
      %v1449 = vadd.f32 %v1259, %v1448
      %v1450 = vpop.f32.mrb[0].mxu0
      %v1451 = vadd.f32 %v1263, %v1450
      %1452 = vmatprep.mubr.f32.mxu0 0.0
      %1453 = vmatmul.mubr.f32.gmra.mrb[0].mxu0 %v1279
      %v1454 = vpop.f32.mrb[0].mxu0
      %v1455 = vadd.f32 %v1259, %v1454
      %v1456 = vpop.f32.mrb[0].mxu0
      %v1457 = vadd.f32 %v1263, %v1456
      %1458 = vdwg.mxu0
      %1459 = vst [vmem:[#allocation13] sm:$0xff] %v1348
      %1460 = vst [vmem:[#allocation13 + $0x8] sm:$0xff] %v1350
      %1461 = vst [vmem:[#allocation13 + $0x10] sm:$0xff] %v1437
      %1462 = vst [vmem:[#allocation13 + $0x18] sm:$0xff] %v1439
      %1463 = vst [vmem:[#allocation13 + $0x20] sm:$0xff] %v1354
      %1464 = vst [vmem:[#allocation13 + $0x28] sm:$0xff] %v1356
      %1465 = vst [vmem:[#allocation13 + $0x30] sm:$0xff] %v1443
      %1466 = vst [vmem:[#allocation13 + $0x38] sm:$0xff] %v1445
      %1467 = vst [vmem:[#allocation13 + $0x40] sm:$0xff] %v1360
      %1468 = vst [vmem:[#allocation13 + $0x48] sm:$0xff] %v1362
      %1469 = vst [vmem:[#allocation13 + $0x50] sm:$0xff] %v1449
      %1470 = vst [vmem:[#allocation13 + $0x58] sm:$0xff] %v1451
      %1471 = vst [vmem:[#allocation13 + $0x60] sm:$0xff] %v1366
      %1472 = vst [vmem:[#allocation13 + $0x68] sm:$0xff] %v1368
      %1473 = vst [vmem:[#allocation13 + $0x70] sm:$0xff] %v1455
      %1474 = vst [vmem:[#allocation13 + $0x78] sm:$0xff] %v1457
      %v1475 = vld [vmem:[#allocation11] sm:$0xff]
      %v1476 = vld [vmem:[#allocation12] sm:$0xff]
      %v1477 = vld [vmem:[#allocation13] sm:$0xff]
      %v1478 = vld [vmem:[#allocation13 + $0x8] sm:$0xff]
      %v1479 = vld [vmem:[#allocation13 + $0x10] sm:$0xff]
      %v1480 = vld [vmem:[#allocation13 + $0x18] sm:$0xff]
      %1481 = vmatprep.subr.mxu0 %v1179
      %1482 = vmatpush1.msra.mxu0 %v1178
      %1483 = vmatprep.subr.mxu0 %v1183
      %1484 = vmatpush1.msra.mxu0 %v1182
      %1485 = vmatprep.subr.mxu0 %v1187
      %1486 = vmatpush1.msra.mxu0 %v1186
      %1487 = vmatprep.subr.mxu0 %v1191
      %1488 = vmatpush1.msra.mxu0 %v1190
      %1489 = vmatprep.subr.mxu0 %v1195
      %1490 = vmatpush1.msra.mxu0 %v1194
      %1491 = vmatprep.subr.mxu0 %v1199
      %1492 = vmatpush1.msra.mxu0 %v1198
      %1493 = vmatprep.subr.mxu0 %v1203
      %1494 = vmatpush1.msra.mxu0 %v1202
      %1495 = vmatprep.subr.mxu0 %v1207
      %1496 = vmatpush1.msra.mxu0 %v1206
      %1497 = vmatprep.subr.mxu0 %v1211
      %1498 = vmatpush1.msra.mxu0 %v1210
      %1499 = vmatprep.subr.mxu0 %v1215
      %1500 = vmatpush1.msra.mxu0 %v1214
      %1501 = vmatprep.subr.mxu0 %v1219
      %1502 = vmatpush1.msra.mxu0 %v1218
      %1503 = vmatprep.subr.mxu0 %v1223
      %1504 = vmatpush1.msra.mxu0 %v1222
      %1505 = vmatprep.subr.mxu0 %v1227
      %1506 = vmatpush1.msra.mxu0 %v1226
      %1507 = vmatprep.subr.mxu0 %v1231
      %1508 = vmatpush1.msra.mxu0 %v1230
      %1509 = vmatprep.subr.mxu0 %v1235
      %1510 = vmatpush1.msra.mxu0 %v1234
      %1511 = vmatprep.subr.mxu0 %v1239
      %1512 = vmatpush1.msra.mxu0 %v1238
      %1513 = vmatprep.subr.mxu0 0.0
      %1514 = vmatpush1.msra.mxu0 0.0
      %1515 = vmatprep.subr.mxu0 0.0
      %1516 = vmatpush1.msra.mxu0 0.0
      %1517 = vmatprep.subr.mxu0 0.0
      %1518 = vmatpush1.msra.mxu0 0.0
      %1519 = vmatprep.subr.mxu0 0.0
      %1520 = vmatpush1.msra.mxu0 0.0
      %1521 = vmatprep.subr.mxu0 0.0
      %1522 = vmatpush1.msra.mxu0 0.0
      %1523 = vmatprep.subr.mxu0 0.0
      %1524 = vmatpush1.msra.mxu0 0.0
      %1525 = vmatprep.subr.mxu0 0.0
      %1526 = vmatpush1.msra.mxu0 0.0
      %1527 = vmatprep.subr.mxu0 0.0
      %1528 = vmatpush1.msra.mxu0 0.0
      %1529 = vmatprep.subr.mxu0 0.0
      %1530 = vmatpush1.msra.mxu0 0.0
      %1531 = vmatprep.subr.mxu0 0.0
      %1532 = vmatpush1.msra.mxu0 0.0
      %1533 = vmatprep.subr.mxu0 0.0
      %1534 = vmatpush1.msra.mxu0 0.0
      %1535 = vmatprep.subr.mxu0 0.0
      %1536 = vmatpush1.msra.mxu0 0.0
      %1537 = vmatprep.subr.mxu0 0.0
      %1538 = vmatpush1.msra.mxu0 0.0
      %1539 = vmatprep.subr.mxu0 0.0
      %1540 = vmatpush1.msra.mxu0 0.0
      %1541 = vmatprep.subr.mxu0 0.0
      %1542 = vmatpush1.msra.mxu0 0.0
      %1543 = vmatprep.subr.mxu0 0.0
      %1544 = vmatpush1.msra.mxu0 0.0
      %1545 = vmatprep.mubr.f32.mxu0 0.0
      %1546 = vmatmul.mubr.f32.gmra.mrb[0].mxu0 %v1475
      %v1547 = vpop.f32.mrb[0].mxu0
      %v1548 = vadd.f32 0.0, %v1547
      %v1549 = vpop.f32.mrb[0].mxu0
      %v1550 = vadd.f32 0.0, %v1549
      %1551 = vdwg.mxu0
      %1552 = vmatprep.subr.mxu0 %v1181
      %1553 = vmatpush1.msra.mxu0 %v1180
      %1554 = vmatprep.subr.mxu0 %v1185
      %1555 = vmatpush1.msra.mxu0 %v1184
      %1556 = vmatprep.subr.mxu0 %v1189
      %1557 = vmatpush1.msra.mxu0 %v1188
      %1558 = vmatprep.subr.mxu0 %v1193
      %1559 = vmatpush1.msra.mxu0 %v1192
      %1560 = vmatprep.subr.mxu0 %v1197
      %1561 = vmatpush1.msra.mxu0 %v1196
      %1562 = vmatprep.subr.mxu0 %v1201
      %1563 = vmatpush1.msra.mxu0 %v1200
      %1564 = vmatprep.subr.mxu0 %v1205
      %1565 = vmatpush1.msra.mxu0 %v1204
      %1566 = vmatprep.subr.mxu0 %v1209
      %1567 = vmatpush1.msra.mxu0 %v1208
      %1568 = vmatprep.subr.mxu0 %v1213
      %1569 = vmatpush1.msra.mxu0 %v1212
      %1570 = vmatprep.subr.mxu0 %v1217
      %1571 = vmatpush1.msra.mxu0 %v1216
      %1572 = vmatprep.subr.mxu0 %v1221
      %1573 = vmatpush1.msra.mxu0 %v1220
      %1574 = vmatprep.subr.mxu0 %v1225
      %1575 = vmatpush1.msra.mxu0 %v1224
      %1576 = vmatprep.subr.mxu0 %v1229
      %1577 = vmatpush1.msra.mxu0 %v1228
      %1578 = vmatprep.subr.mxu0 %v1233
      %1579 = vmatpush1.msra.mxu0 %v1232
      %1580 = vmatprep.subr.mxu0 %v1237
      %1581 = vmatpush1.msra.mxu0 %v1236
      %1582 = vmatprep.subr.mxu0 %v1241
      %1583 = vmatpush1.msra.mxu0 %v1240
      %1584 = vmatprep.subr.mxu0 0.0
      %1585 = vmatpush1.msra.mxu0 0.0
      %1586 = vmatprep.subr.mxu0 0.0
      %1587 = vmatpush1.msra.mxu0 0.0
      %1588 = vmatprep.subr.mxu0 0.0
      %1589 = vmatpush1.msra.mxu0 0.0
      %1590 = vmatprep.subr.mxu0 0.0
      %1591 = vmatpush1.msra.mxu0 0.0
      %1592 = vmatprep.subr.mxu0 0.0
      %1593 = vmatpush1.msra.mxu0 0.0
      %1594 = vmatprep.subr.mxu0 0.0
      %1595 = vmatpush1.msra.mxu0 0.0
      %1596 = vmatprep.subr.mxu0 0.0
      %1597 = vmatpush1.msra.mxu0 0.0
      %1598 = vmatprep.subr.mxu0 0.0
      %1599 = vmatpush1.msra.mxu0 0.0
      %1600 = vmatprep.subr.mxu0 0.0
      %1601 = vmatpush1.msra.mxu0 0.0
      %1602 = vmatprep.subr.mxu0 0.0
      %1603 = vmatpush1.msra.mxu0 0.0
      %1604 = vmatprep.subr.mxu0 0.0
      %1605 = vmatpush1.msra.mxu0 0.0
      %1606 = vmatprep.subr.mxu0 0.0
      %1607 = vmatpush1.msra.mxu0 0.0
      %1608 = vmatprep.subr.mxu0 0.0
      %1609 = vmatpush1.msra.mxu0 0.0
      %1610 = vmatprep.subr.mxu0 0.0
      %1611 = vmatpush1.msra.mxu0 0.0
      %1612 = vmatprep.subr.mxu0 0.0
      %1613 = vmatpush1.msra.mxu0 0.0
      %1614 = vmatprep.subr.mxu0 0.0
      %1615 = vmatpush1.msra.mxu0 0.0
      %1616 = vmatprep.mubr.f32.mxu0 0.0
      %1617 = vmatmul.mubr.f32.gmra.mrb[0].mxu0 %v1475
      %v1618 = vpop.f32.mrb[0].mxu0
      %v1619 = vadd.f32 0.0, %v1618
      %v1620 = vpop.f32.mrb[0].mxu0
      %v1621 = vadd.f32 0.0, %v1620
      %1622 = vdwg.mxu0
      %v1623 = vadd.f32 %v1477, %v1548
      %v1624 = vadd.f32 %v1478, %v1550
      %v1625 = vadd.f32 %v1479, %v1619
      %v1626 = vadd.f32 %v1480, %v1621
      %v1627 = vxor.u32 %v1623, 2147483648
      %v1628 = vmul.f32 %v1627, 1.442695
      %v1629 = vpow.pop %v1628
      %v1630 = vadd.f32 %v1629, 1.0
      %v1631 = vrcp.pop %v1630
      %v1632 = vmul.f32 1.0, %v1631
      %v1633 = vxor.u32 %v1624, 2147483648
      %v1634 = vmul.f32 %v1633, 1.442695
      %v1635 = vpow.pop %v1634
      %v1636 = vadd.f32 %v1635, 1.0
      %v1637 = vrcp.pop %v1636
      %v1638 = vmul.f32 1.0, %v1637
      %v1639 = vtanh.pop %v1625
      %v1640 = vxor.u32 %v1626, 2147483648
      %v1641 = vmul.f32 %v1640, 1.442695
      %v1642 = vpow.pop %v1641
      %v1643 = vadd.f32 %v1642, 1.0
      %v1644 = vrcp.pop %v1643
      %v1645 = vmul.f32 1.0, %v1644
      %v1646 = vmul.f32 %v1638, %v1476
      %v1647 = vmul.f32 %v1632, %v1639
      %v1648 = vadd.f32 %v1646, %v1647
      %v1649 = vtanh.pop %v1648
      %v1650 = vmul.f32 %v1645, %v1649
      %1651 = vst [vmem:[#allocation14] sm:$0xff] %v1650
      %v1652 = vld [vmem:[#allocation13 + $0x20] sm:$0xff]
      %v1653 = vld [vmem:[#allocation13 + $0x28] sm:$0xff]
      %v1654 = vld [vmem:[#allocation13 + $0x30] sm:$0xff]
      %v1655 = vld [vmem:[#allocation13 + $0x38] sm:$0xff]
      %1656 = vmatprep.subr.mxu0 %v1179
      %1657 = vmatpush1.msra.mxu0 %v1178
      %1658 = vmatprep.subr.mxu0 %v1183
      %1659 = vmatpush1.msra.mxu0 %v1182
      %1660 = vmatprep.subr.mxu0 %v1187
      %1661 = vmatpush1.msra.mxu0 %v1186
      %1662 = vmatprep.subr.mxu0 %v1191
      %1663 = vmatpush1.msra.mxu0 %v1190
      %1664 = vmatprep.subr.mxu0 %v1195
      %1665 = vmatpush1.msra.mxu0 %v1194
      %1666 = vmatprep.subr.mxu0 %v1199
      %1667 = vmatpush1.msra.mxu0 %v1198
      %1668 = vmatprep.subr.mxu0 %v1203
      %1669 = vmatpush1.msra.mxu0 %v1202
      %1670 = vmatprep.subr.mxu0 %v1207
      %1671 = vmatpush1.msra.mxu0 %v1206
      %1672 = vmatprep.subr.mxu0 %v1211
      %1673 = vmatpush1.msra.mxu0 %v1210
      %1674 = vmatprep.subr.mxu0 %v1215
      %1675 = vmatpush1.msra.mxu0 %v1214
      %1676 = vmatprep.subr.mxu0 %v1219
      %1677 = vmatpush1.msra.mxu0 %v1218
      %1678 = vmatprep.subr.mxu0 %v1223
      %1679 = vmatpush1.msra.mxu0 %v1222
      %1680 = vmatprep.subr.mxu0 %v1227
      %1681 = vmatpush1.msra.mxu0 %v1226
      %1682 = vmatprep.subr.mxu0 %v1231
      %1683 = vmatpush1.msra.mxu0 %v1230
      %1684 = vmatprep.subr.mxu0 %v1235
      %1685 = vmatpush1.msra.mxu0 %v1234
      %1686 = vmatprep.subr.mxu0 %v1239
      %1687 = vmatpush1.msra.mxu0 %v1238
      %1688 = vmatprep.subr.mxu0 0.0
      %1689 = vmatpush1.msra.mxu0 0.0
      %1690 = vmatprep.subr.mxu0 0.0
      %1691 = vmatpush1.msra.mxu0 0.0
      %1692 = vmatprep.subr.mxu0 0.0
      %1693 = vmatpush1.msra.mxu0 0.0
      %1694 = vmatprep.subr.mxu0 0.0
      %1695 = vmatpush1.msra.mxu0 0.0
      %1696 = vmatprep.subr.mxu0 0.0
      %1697 = vmatpush1.msra.mxu0 0.0
      %1698 = vmatprep.subr.mxu0 0.0
      %1699 = vmatpush1.msra.mxu0 0.0
      %1700 = vmatprep.subr.mxu0 0.0
      %1701 = vmatpush1.msra.mxu0 0.0
      %1702 = vmatprep.subr.mxu0 0.0
      %1703 = vmatpush1.msra.mxu0 0.0
      %1704 = vmatprep.subr.mxu0 0.0
      %1705 = vmatpush1.msra.mxu0 0.0
      %1706 = vmatprep.subr.mxu0 0.0
      %1707 = vmatpush1.msra.mxu0 0.0
      %1708 = vmatprep.subr.mxu0 0.0
      %1709 = vmatpush1.msra.mxu0 0.0
      %1710 = vmatprep.subr.mxu0 0.0
      %1711 = vmatpush1.msra.mxu0 0.0
      %1712 = vmatprep.subr.mxu0 0.0
      %1713 = vmatpush1.msra.mxu0 0.0
      %1714 = vmatprep.subr.mxu0 0.0
      %1715 = vmatpush1.msra.mxu0 0.0
      %1716 = vmatprep.subr.mxu0 0.0
      %1717 = vmatpush1.msra.mxu0 0.0
      %1718 = vmatprep.subr.mxu0 0.0
      %1719 = vmatpush1.msra.mxu0 0.0
      %1720 = vmatprep.mubr.f32.mxu0 0.0
      %1721 = vmatmul.mubr.f32.gmra.mrb[0].mxu0 %v1650
      %v1722 = vpop.f32.mrb[0].mxu0
      %v1723 = vadd.f32 0.0, %v1722
      %v1724 = vpop.f32.mrb[0].mxu0
      %v1725 = vadd.f32 0.0, %v1724
      %1726 = vdwg.mxu0
      %1727 = vmatprep.subr.mxu0 %v1181
      %1728 = vmatpush1.msra.mxu0 %v1180
      %1729 = vmatprep.subr.mxu0 %v1185
      %1730 = vmatpush1.msra.mxu0 %v1184
      %1731 = vmatprep.subr.mxu0 %v1189
      %1732 = vmatpush1.msra.mxu0 %v1188
      %1733 = vmatprep.subr.mxu0 %v1193
      %1734 = vmatpush1.msra.mxu0 %v1192
      %1735 = vmatprep.subr.mxu0 %v1197
      %1736 = vmatpush1.msra.mxu0 %v1196
      %1737 = vmatprep.subr.mxu0 %v1201
      %1738 = vmatpush1.msra.mxu0 %v1200
      %1739 = vmatprep.subr.mxu0 %v1205
      %1740 = vmatpush1.msra.mxu0 %v1204
      %1741 = vmatprep.subr.mxu0 %v1209
      %1742 = vmatpush1.msra.mxu0 %v1208
      %1743 = vmatprep.subr.mxu0 %v1213
      %1744 = vmatpush1.msra.mxu0 %v1212
      %1745 = vmatprep.subr.mxu0 %v1217
      %1746 = vmatpush1.msra.mxu0 %v1216
      %1747 = vmatprep.subr.mxu0 %v1221
      %1748 = vmatpush1.msra.mxu0 %v1220
      %1749 = vmatprep.subr.mxu0 %v1225
      %1750 = vmatpush1.msra.mxu0 %v1224
      %1751 = vmatprep.subr.mxu0 %v1229
      %1752 = vmatpush1.msra.mxu0 %v1228
      %1753 = vmatprep.subr.mxu0 %v1233
      %1754 = vmatpush1.msra.mxu0 %v1232
      %1755 = vmatprep.subr.mxu0 %v1237
      %1756 = vmatpush1.msra.mxu0 %v1236
      %1757 = vmatprep.subr.mxu0 %v1241
      %1758 = vmatpush1.msra.mxu0 %v1240
      %1759 = vmatprep.subr.mxu0 0.0
      %1760 = vmatpush1.msra.mxu0 0.0
      %1761 = vmatprep.subr.mxu0 0.0
      %1762 = vmatpush1.msra.mxu0 0.0
      %1763 = vmatprep.subr.mxu0 0.0
      %1764 = vmatpush1.msra.mxu0 0.0
      %1765 = vmatprep.subr.mxu0 0.0
      %1766 = vmatpush1.msra.mxu0 0.0
      %1767 = vmatprep.subr.mxu0 0.0
      %1768 = vmatpush1.msra.mxu0 0.0
      %1769 = vmatprep.subr.mxu0 0.0
      %1770 = vmatpush1.msra.mxu0 0.0
      %1771 = vmatprep.subr.mxu0 0.0
      %1772 = vmatpush1.msra.mxu0 0.0
      %1773 = vmatprep.subr.mxu0 0.0
      %1774 = vmatpush1.msra.mxu0 0.0
      %1775 = vmatprep.subr.mxu0 0.0
      %1776 = vmatpush1.msra.mxu0 0.0
      %1777 = vmatprep.subr.mxu0 0.0
      %1778 = vmatpush1.msra.mxu0 0.0
      %1779 = vmatprep.subr.mxu0 0.0
      %1780 = vmatpush1.msra.mxu0 0.0
      %1781 = vmatprep.subr.mxu0 0.0
      %1782 = vmatpush1.msra.mxu0 0.0
      %1783 = vmatprep.subr.mxu0 0.0
      %1784 = vmatpush1.msra.mxu0 0.0
      %1785 = vmatprep.subr.mxu0 0.0
      %1786 = vmatpush1.msra.mxu0 0.0
      %1787 = vmatprep.subr.mxu0 0.0
      %1788 = vmatpush1.msra.mxu0 0.0
      %1789 = vmatprep.subr.mxu0 0.0
      %1790 = vmatpush1.msra.mxu0 0.0
      %1791 = vmatprep.mubr.f32.mxu0 0.0
      %1792 = vmatmul.mubr.f32.gmra.mrb[0].mxu0 %v1650
      %v1793 = vpop.f32.mrb[0].mxu0
      %v1794 = vadd.f32 0.0, %v1793
      %v1795 = vpop.f32.mrb[0].mxu0
      %v1796 = vadd.f32 0.0, %v1795
      %1797 = vdwg.mxu0
      %v1798 = vadd.f32 %v1652, %v1723
      %v1799 = vadd.f32 %v1653, %v1725
      %v1800 = vadd.f32 %v1654, %v1794
      %v1801 = vadd.f32 %v1655, %v1796
      %v1802 = vxor.u32 %v1798, 2147483648
      %v1803 = vmul.f32 %v1802, 1.442695
      %v1804 = vpow.pop %v1803
      %v1805 = vadd.f32 %v1804, 1.0
      %v1806 = vrcp.pop %v1805
      %v1807 = vmul.f32 1.0, %v1806
      %v1808 = vxor.u32 %v1799, 2147483648
      %v1809 = vmul.f32 %v1808, 1.442695
      %v1810 = vpow.pop %v1809
      %v1811 = vadd.f32 %v1810, 1.0
      %v1812 = vrcp.pop %v1811
      %v1813 = vmul.f32 1.0, %v1812
      %v1814 = vtanh.pop %v1800
      %v1815 = vxor.u32 %v1801, 2147483648
      %v1816 = vmul.f32 %v1815, 1.442695
      %v1817 = vpow.pop %v1816
      %v1818 = vadd.f32 %v1817, 1.0
      %v1819 = vrcp.pop %v1818
      %v1820 = vmul.f32 1.0, %v1819
      %v1821 = vmul.f32 %v1813, %v1648
      %v1822 = vmul.f32 %v1807, %v1814
      %v1823 = vadd.f32 %v1821, %v1822
      %v1824 = vtanh.pop %v1823
      %v1825 = vmul.f32 %v1820, %v1824
      %1826 = vst [vmem:[#allocation14 + $0x8] sm:$0xff] %v1825
      %v1827 = vld [vmem:[#allocation13 + $0x40] sm:$0xff]
      %v1828 = vld [vmem:[#allocation13 + $0x48] sm:$0xff]
      %v1829 = vld [vmem:[#allocation13 + $0x50] sm:$0xff]
      %v1830 = vld [vmem:[#allocation13 + $0x58] sm:$0xff]
      %1831 = vmatprep.subr.mxu0 %v1179
      %1832 = vmatpush1.msra.mxu0 %v1178
      %1833 = vmatprep.subr.mxu0 %v1183
      %1834 = vmatpush1.msra.mxu0 %v1182
      %1835 = vmatprep.subr.mxu0 %v1187
      %1836 = vmatpush1.msra.mxu0 %v1186
      %1837 = vmatprep.subr.mxu0 %v1191
      %1838 = vmatpush1.msra.mxu0 %v1190
      %1839 = vmatprep.subr.mxu0 %v1195
      %1840 = vmatpush1.msra.mxu0 %v1194
      %1841 = vmatprep.subr.mxu0 %v1199
      %1842 = vmatpush1.msra.mxu0 %v1198
      %1843 = vmatprep.subr.mxu0 %v1203
      %1844 = vmatpush1.msra.mxu0 %v1202
      %1845 = vmatprep.subr.mxu0 %v1207
      %1846 = vmatpush1.msra.mxu0 %v1206
      %1847 = vmatprep.subr.mxu0 %v1211
      %1848 = vmatpush1.msra.mxu0 %v1210
      %1849 = vmatprep.subr.mxu0 %v1215
      %1850 = vmatpush1.msra.mxu0 %v1214
      %1851 = vmatprep.subr.mxu0 %v1219
      %1852 = vmatpush1.msra.mxu0 %v1218
      %1853 = vmatprep.subr.mxu0 %v1223
      %1854 = vmatpush1.msra.mxu0 %v1222
      %1855 = vmatprep.subr.mxu0 %v1227
      %1856 = vmatpush1.msra.mxu0 %v1226
      %1857 = vmatprep.subr.mxu0 %v1231
      %1858 = vmatpush1.msra.mxu0 %v1230
      %1859 = vmatprep.subr.mxu0 %v1235
      %1860 = vmatpush1.msra.mxu0 %v1234
      %1861 = vmatprep.subr.mxu0 %v1239
      %1862 = vmatpush1.msra.mxu0 %v1238
      %1863 = vmatprep.subr.mxu0 0.0
      %1864 = vmatpush1.msra.mxu0 0.0
      %1865 = vmatprep.subr.mxu0 0.0
      %1866 = vmatpush1.msra.mxu0 0.0
      %1867 = vmatprep.subr.mxu0 0.0
      %1868 = vmatpush1.msra.mxu0 0.0
      %1869 = vmatprep.subr.mxu0 0.0
      %1870 = vmatpush1.msra.mxu0 0.0
      %1871 = vmatprep.subr.mxu0 0.0
      %1872 = vmatpush1.msra.mxu0 0.0
      %1873 = vmatprep.subr.mxu0 0.0
      %1874 = vmatpush1.msra.mxu0 0.0
      %1875 = vmatprep.subr.mxu0 0.0
      %1876 = vmatpush1.msra.mxu0 0.0
      %1877 = vmatprep.subr.mxu0 0.0
      %1878 = vmatpush1.msra.mxu0 0.0
      %1879 = vmatprep.subr.mxu0 0.0
      %1880 = vmatpush1.msra.mxu0 0.0
      %1881 = vmatprep.subr.mxu0 0.0
      %1882 = vmatpush1.msra.mxu0 0.0
      %1883 = vmatprep.subr.mxu0 0.0
      %1884 = vmatpush1.msra.mxu0 0.0
      %1885 = vmatprep.subr.mxu0 0.0
      %1886 = vmatpush1.msra.mxu0 0.0
      %1887 = vmatprep.subr.mxu0 0.0
      %1888 = vmatpush1.msra.mxu0 0.0
      %1889 = vmatprep.subr.mxu0 0.0
      %1890 = vmatpush1.msra.mxu0 0.0
      %1891 = vmatprep.subr.mxu0 0.0
      %1892 = vmatpush1.msra.mxu0 0.0
      %1893 = vmatprep.subr.mxu0 0.0
      %1894 = vmatpush1.msra.mxu0 0.0
      %1895 = vmatprep.mubr.f32.mxu0 0.0
      %1896 = vmatmul.mubr.f32.gmra.mrb[0].mxu0 %v1825
      %v1897 = vpop.f32.mrb[0].mxu0
      %v1898 = vadd.f32 0.0, %v1897
      %v1899 = vpop.f32.mrb[0].mxu0
      %v1900 = vadd.f32 0.0, %v1899
      %1901 = vdwg.mxu0
      %1902 = vmatprep.subr.mxu0 %v1181
      %1903 = vmatpush1.msra.mxu0 %v1180
      %1904 = vmatprep.subr.mxu0 %v1185
      %1905 = vmatpush1.msra.mxu0 %v1184
      %1906 = vmatprep.subr.mxu0 %v1189
      %1907 = vmatpush1.msra.mxu0 %v1188
      %1908 = vmatprep.subr.mxu0 %v1193
      %1909 = vmatpush1.msra.mxu0 %v1192
      %1910 = vmatprep.subr.mxu0 %v1197
      %1911 = vmatpush1.msra.mxu0 %v1196
      %1912 = vmatprep.subr.mxu0 %v1201
      %1913 = vmatpush1.msra.mxu0 %v1200
      %1914 = vmatprep.subr.mxu0 %v1205
      %1915 = vmatpush1.msra.mxu0 %v1204
      %1916 = vmatprep.subr.mxu0 %v1209
      %1917 = vmatpush1.msra.mxu0 %v1208
      %1918 = vmatprep.subr.mxu0 %v1213
      %1919 = vmatpush1.msra.mxu0 %v1212
      %1920 = vmatprep.subr.mxu0 %v1217
      %1921 = vmatpush1.msra.mxu0 %v1216
      %1922 = vmatprep.subr.mxu0 %v1221
      %1923 = vmatpush1.msra.mxu0 %v1220
      %1924 = vmatprep.subr.mxu0 %v1225
      %1925 = vmatpush1.msra.mxu0 %v1224
      %1926 = vmatprep.subr.mxu0 %v1229
      %1927 = vmatpush1.msra.mxu0 %v1228
      %1928 = vmatprep.subr.mxu0 %v1233
      %1929 = vmatpush1.msra.mxu0 %v1232
      %1930 = vmatprep.subr.mxu0 %v1237
      %1931 = vmatpush1.msra.mxu0 %v1236
      %1932 = vmatprep.subr.mxu0 %v1241
      %1933 = vmatpush1.msra.mxu0 %v1240
      %1934 = vmatprep.subr.mxu0 0.0
      %1935 = vmatpush1.msra.mxu0 0.0
      %1936 = vmatprep.subr.mxu0 0.0
      %1937 = vmatpush1.msra.mxu0 0.0
      %1938 = vmatprep.subr.mxu0 0.0
      %1939 = vmatpush1.msra.mxu0 0.0
      %1940 = vmatprep.subr.mxu0 0.0
      %1941 = vmatpush1.msra.mxu0 0.0
      %1942 = vmatprep.subr.mxu0 0.0
      %1943 = vmatpush1.msra.mxu0 0.0
      %1944 = vmatprep.subr.mxu0 0.0
      %1945 = vmatpush1.msra.mxu0 0.0
      %1946 = vmatprep.subr.mxu0 0.0
      %1947 = vmatpush1.msra.mxu0 0.0
      %1948 = vmatprep.subr.mxu0 0.0
      %1949 = vmatpush1.msra.mxu0 0.0
      %1950 = vmatprep.subr.mxu0 0.0
      %1951 = vmatpush1.msra.mxu0 0.0
      %1952 = vmatprep.subr.mxu0 0.0
      %1953 = vmatpush1.msra.mxu0 0.0
      %1954 = vmatprep.subr.mxu0 0.0
      %1955 = vmatpush1.msra.mxu0 0.0
      %1956 = vmatprep.subr.mxu0 0.0
      %1957 = vmatpush1.msra.mxu0 0.0
      %1958 = vmatprep.subr.mxu0 0.0
      %1959 = vmatpush1.msra.mxu0 0.0
      %1960 = vmatprep.subr.mxu0 0.0
      %1961 = vmatpush1.msra.mxu0 0.0
      %1962 = vmatprep.subr.mxu0 0.0
      %1963 = vmatpush1.msra.mxu0 0.0
      %1964 = vmatprep.subr.mxu0 0.0
      %1965 = vmatpush1.msra.mxu0 0.0
      %1966 = vmatprep.mubr.f32.mxu0 0.0
      %1967 = vmatmul.mubr.f32.gmra.mrb[0].mxu0 %v1825
      %v1968 = vpop.f32.mrb[0].mxu0
      %v1969 = vadd.f32 0.0, %v1968
      %v1970 = vpop.f32.mrb[0].mxu0
      %v1971 = vadd.f32 0.0, %v1970
      %1972 = vdwg.mxu0
      %v1973 = vadd.f32 %v1827, %v1898
      %v1974 = vadd.f32 %v1828, %v1900
      %v1975 = vadd.f32 %v1829, %v1969
      %v1976 = vadd.f32 %v1830, %v1971
      %v1977 = vxor.u32 %v1973, 2147483648
      %v1978 = vmul.f32 %v1977, 1.442695
      %v1979 = vpow.pop %v1978
      %v1980 = vadd.f32 %v1979, 1.0
      %v1981 = vrcp.pop %v1980
      %v1982 = vmul.f32 1.0, %v1981
      %v1983 = vxor.u32 %v1974, 2147483648
      %v1984 = vmul.f32 %v1983, 1.442695
      %v1985 = vpow.pop %v1984
      %v1986 = vadd.f32 %v1985, 1.0
      %v1987 = vrcp.pop %v1986
      %v1988 = vmul.f32 1.0, %v1987
      %v1989 = vtanh.pop %v1975
      %v1990 = vxor.u32 %v1976, 2147483648
      %v1991 = vmul.f32 %v1990, 1.442695
      %v1992 = vpow.pop %v1991
      %v1993 = vadd.f32 %v1992, 1.0
      %v1994 = vrcp.pop %v1993
      %v1995 = vmul.f32 1.0, %v1994
      %v1996 = vmul.f32 %v1988, %v1823
      %v1997 = vmul.f32 %v1982, %v1989
      %v1998 = vadd.f32 %v1996, %v1997
      %v1999 = vtanh.pop %v1998
      %v2000 = vmul.f32 %v1995, %v1999
      %2001 = vst [vmem:[#allocation14 + $0x10] sm:$0xff] %v2000
      %v2002 = vld [vmem:[#allocation13 + $0x60] sm:$0xff]
      %v2003 = vld [vmem:[#allocation13 + $0x68] sm:$0xff]
      %v2004 = vld [vmem:[#allocation13 + $0x70] sm:$0xff]
      %v2005 = vld [vmem:[#allocation13 + $0x78] sm:$0xff]
      %2006 = vmatprep.subr.mxu0 %v1179
      %2007 = vmatpush1.msra.mxu0 %v1178
      %2008 = vmatprep.subr.mxu0 %v1183
      %2009 = vmatpush1.msra.mxu0 %v1182
      %2010 = vmatprep.subr.mxu0 %v1187
      %2011 = vmatpush1.msra.mxu0 %v1186
      %2012 = vmatprep.subr.mxu0 %v1191
      %2013 = vmatpush1.msra.mxu0 %v1190
      %2014 = vmatprep.subr.mxu0 %v1195
      %2015 = vmatpush1.msra.mxu0 %v1194
      %2016 = vmatprep.subr.mxu0 %v1199
      %2017 = vmatpush1.msra.mxu0 %v1198
      %2018 = vmatprep.subr.mxu0 %v1203
      %2019 = vmatpush1.msra.mxu0 %v1202
      %2020 = vmatprep.subr.mxu0 %v1207
      %2021 = vmatpush1.msra.mxu0 %v1206
      %2022 = vmatprep.subr.mxu0 %v1211
      %2023 = vmatpush1.msra.mxu0 %v1210
      %2024 = vmatprep.subr.mxu0 %v1215
      %2025 = vmatpush1.msra.mxu0 %v1214
      %2026 = vmatprep.subr.mxu0 %v1219
      %2027 = vmatpush1.msra.mxu0 %v1218
      %2028 = vmatprep.subr.mxu0 %v1223
      %2029 = vmatpush1.msra.mxu0 %v1222
      %2030 = vmatprep.subr.mxu0 %v1227
      %2031 = vmatpush1.msra.mxu0 %v1226
      %2032 = vmatprep.subr.mxu0 %v1231
      %2033 = vmatpush1.msra.mxu0 %v1230
      %2034 = vmatprep.subr.mxu0 %v1235
      %2035 = vmatpush1.msra.mxu0 %v1234
      %2036 = vmatprep.subr.mxu0 %v1239
      %2037 = vmatpush1.msra.mxu0 %v1238
      %2038 = vmatprep.subr.mxu0 0.0
      %2039 = vmatpush1.msra.mxu0 0.0
      %2040 = vmatprep.subr.mxu0 0.0
      %2041 = vmatpush1.msra.mxu0 0.0
      %2042 = vmatprep.subr.mxu0 0.0
      %2043 = vmatpush1.msra.mxu0 0.0
      %2044 = vmatprep.subr.mxu0 0.0
      %2045 = vmatpush1.msra.mxu0 0.0
      %2046 = vmatprep.subr.mxu0 0.0
      %2047 = vmatpush1.msra.mxu0 0.0
      %2048 = vmatprep.subr.mxu0 0.0
      %2049 = vmatpush1.msra.mxu0 0.0
      %2050 = vmatprep.subr.mxu0 0.0
      %2051 = vmatpush1.msra.mxu0 0.0
      %2052 = vmatprep.subr.mxu0 0.0
      %2053 = vmatpush1.msra.mxu0 0.0
      %2054 = vmatprep.subr.mxu0 0.0
      %2055 = vmatpush1.msra.mxu0 0.0
      %2056 = vmatprep.subr.mxu0 0.0
      %2057 = vmatpush1.msra.mxu0 0.0
      %2058 = vmatprep.subr.mxu0 0.0
      %2059 = vmatpush1.msra.mxu0 0.0
      %2060 = vmatprep.subr.mxu0 0.0
      %2061 = vmatpush1.msra.mxu0 0.0
      %2062 = vmatprep.subr.mxu0 0.0
      %2063 = vmatpush1.msra.mxu0 0.0
      %2064 = vmatprep.subr.mxu0 0.0
      %2065 = vmatpush1.msra.mxu0 0.0
      %2066 = vmatprep.subr.mxu0 0.0
      %2067 = vmatpush1.msra.mxu0 0.0
      %2068 = vmatprep.subr.mxu0 0.0
      %2069 = vmatpush1.msra.mxu0 0.0
      %2070 = vmatprep.mubr.f32.mxu0 0.0
      %2071 = vmatmul.mubr.f32.gmra.mrb[0].mxu0 %v2000
      %v2072 = vpop.f32.mrb[0].mxu0
      %v2073 = vadd.f32 0.0, %v2072
      %v2074 = vpop.f32.mrb[0].mxu0
      %v2075 = vadd.f32 0.0, %v2074
      %2076 = vdwg.mxu0
      %2077 = vmatprep.subr.mxu0 %v1181
      %2078 = vmatpush1.msra.mxu0 %v1180
      %2079 = vmatprep.subr.mxu0 %v1185
      %2080 = vmatpush1.msra.mxu0 %v1184
      %2081 = vmatprep.subr.mxu0 %v1189
      %2082 = vmatpush1.msra.mxu0 %v1188
      %2083 = vmatprep.subr.mxu0 %v1193
      %2084 = vmatpush1.msra.mxu0 %v1192
      %2085 = vmatprep.subr.mxu0 %v1197
      %2086 = vmatpush1.msra.mxu0 %v1196
      %2087 = vmatprep.subr.mxu0 %v1201
      %2088 = vmatpush1.msra.mxu0 %v1200
      %2089 = vmatprep.subr.mxu0 %v1205
      %2090 = vmatpush1.msra.mxu0 %v1204
      %2091 = vmatprep.subr.mxu0 %v1209
      %2092 = vmatpush1.msra.mxu0 %v1208
      %2093 = vmatprep.subr.mxu0 %v1213
      %2094 = vmatpush1.msra.mxu0 %v1212
      %2095 = vmatprep.subr.mxu0 %v1217
      %2096 = vmatpush1.msra.mxu0 %v1216
      %2097 = vmatprep.subr.mxu0 %v1221
      %2098 = vmatpush1.msra.mxu0 %v1220
      %2099 = vmatprep.subr.mxu0 %v1225
      %2100 = vmatpush1.msra.mxu0 %v1224
      %2101 = vmatprep.subr.mxu0 %v1229
      %2102 = vmatpush1.msra.mxu0 %v1228
      %2103 = vmatprep.subr.mxu0 %v1233
      %2104 = vmatpush1.msra.mxu0 %v1232
      %2105 = vmatprep.subr.mxu0 %v1237
      %2106 = vmatpush1.msra.mxu0 %v1236
      %2107 = vmatprep.subr.mxu0 %v1241
      %2108 = vmatpush1.msra.mxu0 %v1240
      %2109 = vmatprep.subr.mxu0 0.0
      %2110 = vmatpush1.msra.mxu0 0.0
      %2111 = vmatprep.subr.mxu0 0.0
      %2112 = vmatpush1.msra.mxu0 0.0
      %2113 = vmatprep.subr.mxu0 0.0
      %2114 = vmatpush1.msra.mxu0 0.0
      %2115 = vmatprep.subr.mxu0 0.0
      %2116 = vmatpush1.msra.mxu0 0.0
      %2117 = vmatprep.subr.mxu0 0.0
      %2118 = vmatpush1.msra.mxu0 0.0
      %2119 = vmatprep.subr.mxu0 0.0
      %2120 = vmatpush1.msra.mxu0 0.0
      %2121 = vmatprep.subr.mxu0 0.0
      %2122 = vmatpush1.msra.mxu0 0.0
      %2123 = vmatprep.subr.mxu0 0.0
      %2124 = vmatpush1.msra.mxu0 0.0
      %2125 = vmatprep.subr.mxu0 0.0
      %2126 = vmatpush1.msra.mxu0 0.0
      %2127 = vmatprep.subr.mxu0 0.0
      %2128 = vmatpush1.msra.mxu0 0.0
      %2129 = vmatprep.subr.mxu0 0.0
      %2130 = vmatpush1.msra.mxu0 0.0
      %2131 = vmatprep.subr.mxu0 0.0
      %2132 = vmatpush1.msra.mxu0 0.0
      %2133 = vmatprep.subr.mxu0 0.0
      %2134 = vmatpush1.msra.mxu0 0.0
      %2135 = vmatprep.subr.mxu0 0.0
      %2136 = vmatpush1.msra.mxu0 0.0
      %2137 = vmatprep.subr.mxu0 0.0
      %2138 = vmatpush1.msra.mxu0 0.0
      %2139 = vmatprep.subr.mxu0 0.0
      %2140 = vmatpush1.msra.mxu0 0.0
      %2141 = vmatprep.mubr.f32.mxu0 0.0
      %2142 = vmatmul.mubr.f32.gmra.mrb[0].mxu0 %v2000
      %v2143 = vpop.f32.mrb[0].mxu0
      %v2144 = vadd.f32 0.0, %v2143
      %v2145 = vpop.f32.mrb[0].mxu0
      %v2146 = vadd.f32 0.0, %v2145
      %2147 = vdwg.mxu0
      %v2148 = vadd.f32 %v2002, %v2073
      %v2149 = vadd.f32 %v2003, %v2075
      %v2150 = vadd.f32 %v2004, %v2144
      %v2151 = vadd.f32 %v2005, %v2146
      %v2152 = vxor.u32 %v2148, 2147483648
      %v2153 = vmul.f32 %v2152, 1.442695
      %v2154 = vpow.pop %v2153
      %v2155 = vadd.f32 %v2154, 1.0
      %v2156 = vrcp.pop %v2155
      %v2157 = vmul.f32 1.0, %v2156
      %v2158 = vxor.u32 %v2149, 2147483648
      %v2159 = vmul.f32 %v2158, 1.442695
      %v2160 = vpow.pop %v2159
      %v2161 = vadd.f32 %v2160, 1.0
      %v2162 = vrcp.pop %v2161
      %v2163 = vmul.f32 1.0, %v2162
      %v2164 = vtanh.pop %v2150
      %v2165 = vxor.u32 %v2151, 2147483648
      %v2166 = vmul.f32 %v2165, 1.442695
      %v2167 = vpow.pop %v2166
      %v2168 = vadd.f32 %v2167, 1.0
      %v2169 = vrcp.pop %v2168
      %v2170 = vmul.f32 1.0, %v2169
      %v2171 = vmul.f32 %v2163, %v1998
      %v2172 = vmul.f32 %v2157, %v2164
      %v2173 = vadd.f32 %v2171, %v2172
      %v2174 = vtanh.pop %v2173
      %v2175 = vmul.f32 %v2170, %v2174
      %2176 = vst [vmem:[#allocation14 + $0x18] sm:$0xff] %v2175
      %2177 = vst [vmem:[#allocation11] sm:$0xff] %v2175
      %2178 = vst [vmem:[#allocation12] sm:$0xff] %v2173
      // Predicated region
      $region323: #{lstm_by_split_forward.1} parent=23 // pred_check
        %p2179 = pneg %p113
      $region324: #{lstm_by_split_forward.1} parent=23 // pred_check_branch
        %2181 = sbr.rel (%p2179) target = $region326
      $region325: #{lstm_by_split_forward.1} parent=23 // pred_region
        %s2182 = scalar_lea.sflag [#allocation15], 3
        %s2183 = smul.u32 8, 16
        %s2184 = smul.u32 %s2183, 4
        %s2185 = sshll.u32 %s2184, 4
        %2186 = dma.done %s2182, %s2185
        %s2187 = scalar_lea.sflag [#allocation15], 4
        %s2188 = sshll.u32 %s2184, 4
        %2189 = dma.done %s2187, %s2188
        %s2190 = scalar_lea.sflag [#allocation15], 5
        %s2191 = smul.u32 1, 4
        %s2192 = sshll.u32 %s2191, 4
        %2193 = dma.done %s2190, %s2192
      $region326: #{lstm_by_split_forward.1} parent=23 // pred_fallthru
        _
      %v2194 = vld [vmem:[#allocation5] sm:$0xff]
      %v2195 = vld [vmem:[#allocation5 + $0x8] sm:$0xff]
      %v2196 = vld [vmem:[#allocation5 + $0x10] sm:$0xff]
      %v2197 = vld [vmem:[#allocation5 + $0x18] sm:$0xff]
      %v2198 = vld [vmem:[#allocation5 + $0x20] sm:$0xff]
      %v2199 = vld [vmem:[#allocation5 + $0x28] sm:$0xff]
      %v2200 = vld [vmem:[#allocation5 + $0x30] sm:$0xff]
      %v2201 = vld [vmem:[#allocation5 + $0x38] sm:$0xff]
      %v2202 = vld [vmem:[#allocation5 + $0x40] sm:$0xff]
      %v2203 = vld [vmem:[#allocation5 + $0x48] sm:$0xff]
      %v2204 = vld [vmem:[#allocation5 + $0x50] sm:$0xff]
      %v2205 = vld [vmem:[#allocation5 + $0x58] sm:$0xff]
      %v2206 = vld [vmem:[#allocation5 + $0x60] sm:$0xff]
      %v2207 = vld [vmem:[#allocation5 + $0x68] sm:$0xff]
      %v2208 = vld [vmem:[#allocation5 + $0x70] sm:$0xff]
      %v2209 = vld [vmem:[#allocation5 + $0x78] sm:$0xff]
      %v2210 = vld [vmem:[#allocation5 + $0x80] sm:$0xff]
      %v2211 = vld [vmem:[#allocation5 + $0x88] sm:$0xff]
      %v2212 = vld [vmem:[#allocation5 + $0x90] sm:$0xff]
      %v2213 = vld [vmem:[#allocation5 + $0x98] sm:$0xff]
      %v2214 = vld [vmem:[#allocation5 + $0xa0] sm:$0xff]
      %v2215 = vld [vmem:[#allocation5 + $0xa8] sm:$0xff]
      %v2216 = vld [vmem:[#allocation5 + $0xb0] sm:$0xff]
      %v2217 = vld [vmem:[#allocation5 + $0xb8] sm:$0xff]
      %v2218 = vld [vmem:[#allocation5 + $0xc0] sm:$0xff]
      %v2219 = vld [vmem:[#allocation5 + $0xc8] sm:$0xff]
      %v2220 = vld [vmem:[#allocation5 + $0xd0] sm:$0xff]
      %v2221 = vld [vmem:[#allocation5 + $0xd8] sm:$0xff]
      %v2222 = vld [vmem:[#allocation5 + $0xe0] sm:$0xff]
      %v2223 = vld [vmem:[#allocation5 + $0xe8] sm:$0xff]
      %v2224 = vld [vmem:[#allocation5 + $0xf0] sm:$0xff]
      %v2225 = vld [vmem:[#allocation5 + $0xf8] sm:$0xff]
      %v2226 = vld [vmem:[#allocation5 + $0x100] sm:$0xff]
      %v2227 = vld [vmem:[#allocation5 + $0x108] sm:$0xff]
      %v2228 = vld [vmem:[#allocation5 + $0x110] sm:$0xff]
      %v2229 = vld [vmem:[#allocation5 + $0x118] sm:$0xff]
      %v2230 = vld [vmem:[#allocation5 + $0x120] sm:$0xff]
      %v2231 = vld [vmem:[#allocation5 + $0x128] sm:$0xff]
      %v2232 = vld [vmem:[#allocation5 + $0x130] sm:$0xff]
      %v2233 = vld [vmem:[#allocation5 + $0x138] sm:$0xff]
      %v2234 = vld [vmem:[#allocation5 + $0x140] sm:$0xff]
      %v2235 = vld [vmem:[#allocation5 + $0x148] sm:$0xff]
      %v2236 = vld [vmem:[#allocation5 + $0x150] sm:$0xff]
      %v2237 = vld [vmem:[#allocation5 + $0x158] sm:$0xff]
      %v2238 = vld [vmem:[#allocation5 + $0x160] sm:$0xff]
      %v2239 = vld [vmem:[#allocation5 + $0x168] sm:$0xff]
      %v2240 = vld [vmem:[#allocation5 + $0x170] sm:$0xff]
      %v2241 = vld [vmem:[#allocation5 + $0x178] sm:$0xff]
      %v2242 = vld [vmem:[#allocation5 + $0x180] sm:$0xff]
      %v2243 = vld [vmem:[#allocation5 + $0x188] sm:$0xff]
      %v2244 = vld [vmem:[#allocation5 + $0x190] sm:$0xff]
      %v2245 = vld [vmem:[#allocation5 + $0x198] sm:$0xff]
      %v2246 = vld [vmem:[#allocation5 + $0x1a0] sm:$0xff]
      %v2247 = vld [vmem:[#allocation5 + $0x1a8] sm:$0xff]
      %v2248 = vld [vmem:[#allocation5 + $0x1b0] sm:$0xff]
      %v2249 = vld [vmem:[#allocation5 + $0x1b8] sm:$0xff]
      %v2250 = vld [vmem:[#allocation5 + $0x1c0] sm:$0xff]
      %v2251 = vld [vmem:[#allocation5 + $0x1c8] sm:$0xff]
      %v2252 = vld [vmem:[#allocation5 + $0x1d0] sm:$0xff]
      %v2253 = vld [vmem:[#allocation5 + $0x1d8] sm:$0xff]
      %v2254 = vld [vmem:[#allocation5 + $0x1e0] sm:$0xff]
      %v2255 = vld [vmem:[#allocation5 + $0x1e8] sm:$0xff]
      %v2256 = vld [vmem:[#allocation5 + $0x1f0] sm:$0xff]
      %v2257 = vld [vmem:[#allocation5 + $0x1f8] sm:$0xff]
      %v2258 = vld [vmem:[#allocation6] sm:$0xff]
      %v2259 = vld [vmem:[#allocation6 + $0x8] sm:$0xff]
      %v2260 = vld [vmem:[#allocation6 + $0x10] sm:$0xff]
      %v2261 = vld [vmem:[#allocation6 + $0x18] sm:$0xff]
      %v2262 = vld [vmem:[#allocation6 + $0x20] sm:$0xff]
      %v2263 = vld [vmem:[#allocation6 + $0x28] sm:$0xff]
      %v2264 = vld [vmem:[#allocation6 + $0x30] sm:$0xff]
      %v2265 = vld [vmem:[#allocation6 + $0x38] sm:$0xff]
      %v2266 = vld [vmem:[#allocation6 + $0x40] sm:$0xff]
      %v2267 = vld [vmem:[#allocation6 + $0x48] sm:$0xff]
      %v2268 = vld [vmem:[#allocation6 + $0x50] sm:$0xff]
      %v2269 = vld [vmem:[#allocation6 + $0x58] sm:$0xff]
      %v2270 = vld [vmem:[#allocation6 + $0x60] sm:$0xff]
      %v2271 = vld [vmem:[#allocation6 + $0x68] sm:$0xff]
      %v2272 = vld [vmem:[#allocation6 + $0x70] sm:$0xff]
      %v2273 = vld [vmem:[#allocation6 + $0x78] sm:$0xff]
      %v2274 = vld [vmem:[#allocation6 + $0x80] sm:$0xff]
      %v2275 = vld [vmem:[#allocation6 + $0x88] sm:$0xff]
      %v2276 = vld [vmem:[#allocation6 + $0x90] sm:$0xff]
      %v2277 = vld [vmem:[#allocation6 + $0x98] sm:$0xff]
      %v2278 = vld [vmem:[#allocation6 + $0xa0] sm:$0xff]
      %v2279 = vld [vmem:[#allocation6 + $0xa8] sm:$0xff]
      %v2280 = vld [vmem:[#allocation6 + $0xb0] sm:$0xff]
      %v2281 = vld [vmem:[#allocation6 + $0xb8] sm:$0xff]
      %v2282 = vld [vmem:[#allocation6 + $0xc0] sm:$0xff]
      %v2283 = vld [vmem:[#allocation6 + $0xc8] sm:$0xff]
      %v2284 = vld [vmem:[#allocation6 + $0xd0] sm:$0xff]
      %v2285 = vld [vmem:[#allocation6 + $0xd8] sm:$0xff]
      %v2286 = vld [vmem:[#allocation6 + $0xe0] sm:$0xff]
      %v2287 = vld [vmem:[#allocation6 + $0xe8] sm:$0xff]
      %v2288 = vld [vmem:[#allocation6 + $0xf0] sm:$0xff]
      %v2289 = vld [vmem:[#allocation6 + $0xf8] sm:$0xff]
      %v2290 = vld [vmem:[#allocation6 + $0x100] sm:$0xff]
      %v2291 = vld [vmem:[#allocation6 + $0x108] sm:$0xff]
      %v2292 = vld [vmem:[#allocation6 + $0x110] sm:$0xff]
      %v2293 = vld [vmem:[#allocation6 + $0x118] sm:$0xff]
      %v2294 = vld [vmem:[#allocation6 + $0x120] sm:$0xff]
      %v2295 = vld [vmem:[#allocation6 + $0x128] sm:$0xff]
      %v2296 = vld [vmem:[#allocation6 + $0x130] sm:$0xff]
      %v2297 = vld [vmem:[#allocation6 + $0x138] sm:$0xff]
      %v2298 = vld [vmem:[#allocation6 + $0x140] sm:$0xff]
      %v2299 = vld [vmem:[#allocation6 + $0x148] sm:$0xff]
      %v2300 = vld [vmem:[#allocation6 + $0x150] sm:$0xff]
      %v2301 = vld [vmem:[#allocation6 + $0x158] sm:$0xff]
      %v2302 = vld [vmem:[#allocation6 + $0x160] sm:$0xff]
      %v2303 = vld [vmem:[#allocation6 + $0x168] sm:$0xff]
      %v2304 = vld [vmem:[#allocation6 + $0x170] sm:$0xff]
      %v2305 = vld [vmem:[#allocation6 + $0x178] sm:$0xff]
      %v2306 = vld [vmem:[#allocation6 + $0x180] sm:$0xff]
      %v2307 = vld [vmem:[#allocation6 + $0x188] sm:$0xff]
      %v2308 = vld [vmem:[#allocation6 + $0x190] sm:$0xff]
      %v2309 = vld [vmem:[#allocation6 + $0x198] sm:$0xff]
      %v2310 = vld [vmem:[#allocation6 + $0x1a0] sm:$0xff]
      %v2311 = vld [vmem:[#allocation6 + $0x1a8] sm:$0xff]
      %v2312 = vld [vmem:[#allocation6 + $0x1b0] sm:$0xff]
      %v2313 = vld [vmem:[#allocation6 + $0x1b8] sm:$0xff]
      %v2314 = vld [vmem:[#allocation6 + $0x1c0] sm:$0xff]
      %v2315 = vld [vmem:[#allocation6 + $0x1c8] sm:$0xff]
      %v2316 = vld [vmem:[#allocation6 + $0x1d0] sm:$0xff]
      %v2317 = vld [vmem:[#allocation6 + $0x1d8] sm:$0xff]
      %v2318 = vld [vmem:[#allocation6 + $0x1e0] sm:$0xff]
      %v2319 = vld [vmem:[#allocation6 + $0x1e8] sm:$0xff]
      %v2320 = vld [vmem:[#allocation6 + $0x1f0] sm:$0xff]
      %v2321 = vld [vmem:[#allocation6 + $0x1f8] sm:$0xff]
      %v2322 = vld [vmem:[#allocation7] sm:$0xf]
      %v2323 = vld [vmem:[#allocation14] sm:$0xff]
      %v2324 = vld [vmem:[#allocation14 + $0x8] sm:$0xff]
      %v2325 = vld [vmem:[#allocation14 + $0x10] sm:$0xff]
      %v2326 = vld [vmem:[#allocation14 + $0x18] sm:$0xff]
      %v2328 = vlaneseq
      %v2329 = vshrl.u32 %v2328, 7
      %v2330 = vsub.s32 0, %v2329
      %v2331 = vrot.slane %v2322, %v2330
      %v2332 = vlaneseq
      %v2333 = vshrl.u32 %v2332, 7
      %v2334 = vsub.s32 1, %v2333
      %v2335 = vrot.slane %v2322, %v2334
      %v2336 = vlaneseq
      %v2337 = vshrl.u32 %v2336, 7
      %v2338 = vsub.s32 2, %v2337
      %v2339 = vrot.slane %v2322, %v2338
      %v2340 = vlaneseq
      %v2341 = vshrl.u32 %v2340, 7
      %v2342 = vsub.s32 3, %v2341
      %v2343 = vrot.slane %v2322, %v2342
      %2348 = vmatprep.subr.mxu0 %v2195
      %2349 = vmatpush1.msra.mxu0 %v2194
      %2350 = vmatprep.subr.mxu0 %v2199
      %2351 = vmatpush1.msra.mxu0 %v2198
      %2352 = vmatprep.subr.mxu0 %v2203
      %2353 = vmatpush1.msra.mxu0 %v2202
      %2354 = vmatprep.subr.mxu0 %v2207
      %2355 = vmatpush1.msra.mxu0 %v2206
      %2356 = vmatprep.subr.mxu0 %v2211
      %2357 = vmatpush1.msra.mxu0 %v2210
      %2358 = vmatprep.subr.mxu0 %v2215
      %2359 = vmatpush1.msra.mxu0 %v2214
      %2360 = vmatprep.subr.mxu0 %v2219
      %2361 = vmatpush1.msra.mxu0 %v2218
      %2362 = vmatprep.subr.mxu0 %v2223
      %2363 = vmatpush1.msra.mxu0 %v2222
      %2364 = vmatprep.subr.mxu0 %v2227
      %2365 = vmatpush1.msra.mxu0 %v2226
      %2366 = vmatprep.subr.mxu0 %v2231
      %2367 = vmatpush1.msra.mxu0 %v2230
      %2368 = vmatprep.subr.mxu0 %v2235
      %2369 = vmatpush1.msra.mxu0 %v2234
      %2370 = vmatprep.subr.mxu0 %v2239
      %2371 = vmatpush1.msra.mxu0 %v2238
      %2372 = vmatprep.subr.mxu0 %v2243
      %2373 = vmatpush1.msra.mxu0 %v2242
      %2374 = vmatprep.subr.mxu0 %v2247
      %2375 = vmatpush1.msra.mxu0 %v2246
      %2376 = vmatprep.subr.mxu0 %v2251
      %2377 = vmatpush1.msra.mxu0 %v2250
      %2378 = vmatprep.subr.mxu0 %v2255
      %2379 = vmatpush1.msra.mxu0 %v2254
      %2380 = vmatprep.subr.mxu0 0.0
      %2381 = vmatpush1.msra.mxu0 0.0
      %2382 = vmatprep.subr.mxu0 0.0
      %2383 = vmatpush1.msra.mxu0 0.0
      %2384 = vmatprep.subr.mxu0 0.0
      %2385 = vmatpush1.msra.mxu0 0.0
      %2386 = vmatprep.subr.mxu0 0.0
      %2387 = vmatpush1.msra.mxu0 0.0
      %2388 = vmatprep.subr.mxu0 0.0
      %2389 = vmatpush1.msra.mxu0 0.0
      %2390 = vmatprep.subr.mxu0 0.0
      %2391 = vmatpush1.msra.mxu0 0.0
      %2392 = vmatprep.subr.mxu0 0.0
      %2393 = vmatpush1.msra.mxu0 0.0
      %2394 = vmatprep.subr.mxu0 0.0
      %2395 = vmatpush1.msra.mxu0 0.0
      %2396 = vmatprep.subr.mxu0 0.0
      %2397 = vmatpush1.msra.mxu0 0.0
      %2398 = vmatprep.subr.mxu0 0.0
      %2399 = vmatpush1.msra.mxu0 0.0
      %2400 = vmatprep.subr.mxu0 0.0
      %2401 = vmatpush1.msra.mxu0 0.0
      %2402 = vmatprep.subr.mxu0 0.0
      %2403 = vmatpush1.msra.mxu0 0.0
      %2404 = vmatprep.subr.mxu0 0.0
      %2405 = vmatpush1.msra.mxu0 0.0
      %2406 = vmatprep.subr.mxu0 0.0
      %2407 = vmatpush1.msra.mxu0 0.0
      %2408 = vmatprep.subr.mxu0 0.0
      %2409 = vmatpush1.msra.mxu0 0.0
      %2410 = vmatprep.subr.mxu0 0.0
      %2411 = vmatpush1.msra.mxu0 0.0
      %2412 = vmatprep.mubr.f32.mxu0 0.0
      %2413 = vmatmul.mubr.f32.gmra.mrb[0].mxu0 %v2323
      %v2414 = vpop.f32.mrb[0].mxu0
      %v2415 = vadd.f32 %v2331, %v2414
      %v2416 = vpop.f32.mrb[0].mxu0
      %v2417 = vadd.f32 %v2335, %v2416
      %2418 = vmatprep.mubr.f32.mxu0 0.0
      %2419 = vmatmul.mubr.f32.gmra.mrb[0].mxu0 %v2324
      %v2420 = vpop.f32.mrb[0].mxu0
      %v2421 = vadd.f32 %v2331, %v2420
      %v2422 = vpop.f32.mrb[0].mxu0
      %v2423 = vadd.f32 %v2335, %v2422
      %2424 = vmatprep.mubr.f32.mxu0 0.0
      %2425 = vmatmul.mubr.f32.gmra.mrb[0].mxu0 %v2325
      %v2426 = vpop.f32.mrb[0].mxu0
      %v2427 = vadd.f32 %v2331, %v2426
      %v2428 = vpop.f32.mrb[0].mxu0
      %v2429 = vadd.f32 %v2335, %v2428
      %2430 = vmatprep.mubr.f32.mxu0 0.0
      %2431 = vmatmul.mubr.f32.gmra.mrb[0].mxu0 %v2326
      %v2432 = vpop.f32.mrb[0].mxu0
      %v2433 = vadd.f32 %v2331, %v2432
      %v2434 = vpop.f32.mrb[0].mxu0
      %v2435 = vadd.f32 %v2335, %v2434
      %2436 = vdwg.mxu0
      %2437 = vmatprep.subr.mxu0 %v2197
      %2438 = vmatpush1.msra.mxu0 %v2196
      %2439 = vmatprep.subr.mxu0 %v2201
      %2440 = vmatpush1.msra.mxu0 %v2200
      %2441 = vmatprep.subr.mxu0 %v2205
      %2442 = vmatpush1.msra.mxu0 %v2204
      %2443 = vmatprep.subr.mxu0 %v2209
      %2444 = vmatpush1.msra.mxu0 %v2208
      %2445 = vmatprep.subr.mxu0 %v2213
      %2446 = vmatpush1.msra.mxu0 %v2212
      %2447 = vmatprep.subr.mxu0 %v2217
      %2448 = vmatpush1.msra.mxu0 %v2216
      %2449 = vmatprep.subr.mxu0 %v2221
      %2450 = vmatpush1.msra.mxu0 %v2220
      %2451 = vmatprep.subr.mxu0 %v2225
      %2452 = vmatpush1.msra.mxu0 %v2224
      %2453 = vmatprep.subr.mxu0 %v2229
      %2454 = vmatpush1.msra.mxu0 %v2228
      %2455 = vmatprep.subr.mxu0 %v2233
      %2456 = vmatpush1.msra.mxu0 %v2232
      %2457 = vmatprep.subr.mxu0 %v2237
      %2458 = vmatpush1.msra.mxu0 %v2236
      %2459 = vmatprep.subr.mxu0 %v2241
      %2460 = vmatpush1.msra.mxu0 %v2240
      %2461 = vmatprep.subr.mxu0 %v2245
      %2462 = vmatpush1.msra.mxu0 %v2244
      %2463 = vmatprep.subr.mxu0 %v2249
      %2464 = vmatpush1.msra.mxu0 %v2248
      %2465 = vmatprep.subr.mxu0 %v2253
      %2466 = vmatpush1.msra.mxu0 %v2252
      %2467 = vmatprep.subr.mxu0 %v2257
      %2468 = vmatpush1.msra.mxu0 %v2256
      %2469 = vmatprep.subr.mxu0 0.0
      %2470 = vmatpush1.msra.mxu0 0.0
      %2471 = vmatprep.subr.mxu0 0.0
      %2472 = vmatpush1.msra.mxu0 0.0
      %2473 = vmatprep.subr.mxu0 0.0
      %2474 = vmatpush1.msra.mxu0 0.0
      %2475 = vmatprep.subr.mxu0 0.0
      %2476 = vmatpush1.msra.mxu0 0.0
      %2477 = vmatprep.subr.mxu0 0.0
      %2478 = vmatpush1.msra.mxu0 0.0
      %2479 = vmatprep.subr.mxu0 0.0
      %2480 = vmatpush1.msra.mxu0 0.0
      %2481 = vmatprep.subr.mxu0 0.0
      %2482 = vmatpush1.msra.mxu0 0.0
      %2483 = vmatprep.subr.mxu0 0.0
      %2484 = vmatpush1.msra.mxu0 0.0
      %2485 = vmatprep.subr.mxu0 0.0
      %2486 = vmatpush1.msra.mxu0 0.0
      %2487 = vmatprep.subr.mxu0 0.0
      %2488 = vmatpush1.msra.mxu0 0.0
      %2489 = vmatprep.subr.mxu0 0.0
      %2490 = vmatpush1.msra.mxu0 0.0
      %2491 = vmatprep.subr.mxu0 0.0
      %2492 = vmatpush1.msra.mxu0 0.0
      %2493 = vmatprep.subr.mxu0 0.0
      %2494 = vmatpush1.msra.mxu0 0.0
      %2495 = vmatprep.subr.mxu0 0.0
      %2496 = vmatpush1.msra.mxu0 0.0
      %2497 = vmatprep.subr.mxu0 0.0
      %2498 = vmatpush1.msra.mxu0 0.0
      %2499 = vmatprep.subr.mxu0 0.0
      %2500 = vmatpush1.msra.mxu0 0.0
      %2501 = vmatprep.mubr.f32.mxu0 0.0
      %2502 = vmatmul.mubr.f32.gmra.mrb[0].mxu0 %v2323
      %v2503 = vpop.f32.mrb[0].mxu0
      %v2504 = vadd.f32 %v2339, %v2503
      %v2505 = vpop.f32.mrb[0].mxu0
      %v2506 = vadd.f32 %v2343, %v2505
      %2507 = vmatprep.mubr.f32.mxu0 0.0
      %2508 = vmatmul.mubr.f32.gmra.mrb[0].mxu0 %v2324
      %v2509 = vpop.f32.mrb[0].mxu0
      %v2510 = vadd.f32 %v2339, %v2509
      %v2511 = vpop.f32.mrb[0].mxu0
      %v2512 = vadd.f32 %v2343, %v2511
      %2513 = vmatprep.mubr.f32.mxu0 0.0
      %2514 = vmatmul.mubr.f32.gmra.mrb[0].mxu0 %v2325
      %v2515 = vpop.f32.mrb[0].mxu0
      %v2516 = vadd.f32 %v2339, %v2515
      %v2517 = vpop.f32.mrb[0].mxu0
      %v2518 = vadd.f32 %v2343, %v2517
      %2519 = vmatprep.mubr.f32.mxu0 0.0
      %2520 = vmatmul.mubr.f32.gmra.mrb[0].mxu0 %v2326
      %v2521 = vpop.f32.mrb[0].mxu0
      %v2522 = vadd.f32 %v2339, %v2521
      %v2523 = vpop.f32.mrb[0].mxu0
      %v2524 = vadd.f32 %v2343, %v2523
      %2525 = vdwg.mxu0
      %2526 = vst [vmem:[#allocation13] sm:$0xff] %v2415
      %2527 = vst [vmem:[#allocation13 + $0x8] sm:$0xff] %v2417
      %2528 = vst [vmem:[#allocation13 + $0x10] sm:$0xff] %v2504
      %2529 = vst [vmem:[#allocation13 + $0x18] sm:$0xff] %v2506
      %2530 = vst [vmem:[#allocation13 + $0x20] sm:$0xff] %v2421
      %2531 = vst [vmem:[#allocation13 + $0x28] sm:$0xff] %v2423
      %2532 = vst [vmem:[#allocation13 + $0x30] sm:$0xff] %v2510
      %2533 = vst [vmem:[#allocation13 + $0x38] sm:$0xff] %v2512
      %2534 = vst [vmem:[#allocation13 + $0x40] sm:$0xff] %v2427
      %2535 = vst [vmem:[#allocation13 + $0x48] sm:$0xff] %v2429
      %2536 = vst [vmem:[#allocation13 + $0x50] sm:$0xff] %v2516
      %2537 = vst [vmem:[#allocation13 + $0x58] sm:$0xff] %v2518
      %2538 = vst [vmem:[#allocation13 + $0x60] sm:$0xff] %v2433
      %2539 = vst [vmem:[#allocation13 + $0x68] sm:$0xff] %v2435
      %2540 = vst [vmem:[#allocation13 + $0x70] sm:$0xff] %v2522
      %2541 = vst [vmem:[#allocation13 + $0x78] sm:$0xff] %v2524
      %s2542 = scalar_lea.vmem [#allocation11], 8
      %v2543 = vld [vmem:[%s2542] sm:$0xff]
      %s2544 = scalar_lea.vmem [#allocation12], 8
      %v2545 = vld [vmem:[%s2544] sm:$0xff]
      %v2546 = vld [vmem:[#allocation13] sm:$0xff]
      %v2547 = vld [vmem:[#allocation13 + $0x8] sm:$0xff]
      %v2548 = vld [vmem:[#allocation13 + $0x10] sm:$0xff]
      %v2549 = vld [vmem:[#allocation13 + $0x18] sm:$0xff]
      %2550 = vmatprep.subr.mxu0 %v2259
      %2551 = vmatpush1.msra.mxu0 %v2258
      %2552 = vmatprep.subr.mxu0 %v2263
      %2553 = vmatpush1.msra.mxu0 %v2262
      %2554 = vmatprep.subr.mxu0 %v2267
      %2555 = vmatpush1.msra.mxu0 %v2266
      %2556 = vmatprep.subr.mxu0 %v2271
      %2557 = vmatpush1.msra.mxu0 %v2270
      %2558 = vmatprep.subr.mxu0 %v2275
      %2559 = vmatpush1.msra.mxu0 %v2274
      %2560 = vmatprep.subr.mxu0 %v2279
      %2561 = vmatpush1.msra.mxu0 %v2278
      %2562 = vmatprep.subr.mxu0 %v2283
      %2563 = vmatpush1.msra.mxu0 %v2282
      %2564 = vmatprep.subr.mxu0 %v2287
      %2565 = vmatpush1.msra.mxu0 %v2286
      %2566 = vmatprep.subr.mxu0 %v2291
      %2567 = vmatpush1.msra.mxu0 %v2290
      %2568 = vmatprep.subr.mxu0 %v2295
      %2569 = vmatpush1.msra.mxu0 %v2294
      %2570 = vmatprep.subr.mxu0 %v2299
      %2571 = vmatpush1.msra.mxu0 %v2298
      %2572 = vmatprep.subr.mxu0 %v2303
      %2573 = vmatpush1.msra.mxu0 %v2302
      %2574 = vmatprep.subr.mxu0 %v2307
      %2575 = vmatpush1.msra.mxu0 %v2306
      %2576 = vmatprep.subr.mxu0 %v2311
      %2577 = vmatpush1.msra.mxu0 %v2310
      %2578 = vmatprep.subr.mxu0 %v2315
      %2579 = vmatpush1.msra.mxu0 %v2314
      %2580 = vmatprep.subr.mxu0 %v2319
      %2581 = vmatpush1.msra.mxu0 %v2318
      %2582 = vmatprep.subr.mxu0 0.0
      %2583 = vmatpush1.msra.mxu0 0.0
      %2584 = vmatprep.subr.mxu0 0.0
      %2585 = vmatpush1.msra.mxu0 0.0
      %2586 = vmatprep.subr.mxu0 0.0
      %2587 = vmatpush1.msra.mxu0 0.0
      %2588 = vmatprep.subr.mxu0 0.0
      %2589 = vmatpush1.msra.mxu0 0.0
      %2590 = vmatprep.subr.mxu0 0.0
      %2591 = vmatpush1.msra.mxu0 0.0
      %2592 = vmatprep.subr.mxu0 0.0
      %2593 = vmatpush1.msra.mxu0 0.0
      %2594 = vmatprep.subr.mxu0 0.0
      %2595 = vmatpush1.msra.mxu0 0.0
      %2596 = vmatprep.subr.mxu0 0.0
      %2597 = vmatpush1.msra.mxu0 0.0
      %2598 = vmatprep.subr.mxu0 0.0
      %2599 = vmatpush1.msra.mxu0 0.0
      %2600 = vmatprep.subr.mxu0 0.0
      %2601 = vmatpush1.msra.mxu0 0.0
      %2602 = vmatprep.subr.mxu0 0.0
      %2603 = vmatpush1.msra.mxu0 0.0
      %2604 = vmatprep.subr.mxu0 0.0
      %2605 = vmatpush1.msra.mxu0 0.0
      %2606 = vmatprep.subr.mxu0 0.0
      %2607 = vmatpush1.msra.mxu0 0.0
      %2608 = vmatprep.subr.mxu0 0.0
      %2609 = vmatpush1.msra.mxu0 0.0
      %2610 = vmatprep.subr.mxu0 0.0
      %2611 = vmatpush1.msra.mxu0 0.0
      %2612 = vmatprep.subr.mxu0 0.0
      %2613 = vmatpush1.msra.mxu0 0.0
      %2614 = vmatprep.mubr.f32.mxu0 0.0
      %2615 = vmatmul.mubr.f32.gmra.mrb[0].mxu0 %v2543
      %v2616 = vpop.f32.mrb[0].mxu0
      %v2617 = vadd.f32 0.0, %v2616
      %v2618 = vpop.f32.mrb[0].mxu0
      %v2619 = vadd.f32 0.0, %v2618
      %2620 = vdwg.mxu0
      %2621 = vmatprep.subr.mxu0 %v2261
      %2622 = vmatpush1.msra.mxu0 %v2260
      %2623 = vmatprep.subr.mxu0 %v2265
      %2624 = vmatpush1.msra.mxu0 %v2264
      %2625 = vmatprep.subr.mxu0 %v2269
      %2626 = vmatpush1.msra.mxu0 %v2268
      %2627 = vmatprep.subr.mxu0 %v2273
      %2628 = vmatpush1.msra.mxu0 %v2272
      %2629 = vmatprep.subr.mxu0 %v2277
      %2630 = vmatpush1.msra.mxu0 %v2276
      %2631 = vmatprep.subr.mxu0 %v2281
      %2632 = vmatpush1.msra.mxu0 %v2280
      %2633 = vmatprep.subr.mxu0 %v2285
      %2634 = vmatpush1.msra.mxu0 %v2284
      %2635 = vmatprep.subr.mxu0 %v2289
      %2636 = vmatpush1.msra.mxu0 %v2288
      %2637 = vmatprep.subr.mxu0 %v2293
      %2638 = vmatpush1.msra.mxu0 %v2292
      %2639 = vmatprep.subr.mxu0 %v2297
      %2640 = vmatpush1.msra.mxu0 %v2296
      %2641 = vmatprep.subr.mxu0 %v2301
      %2642 = vmatpush1.msra.mxu0 %v2300
      %2643 = vmatprep.subr.mxu0 %v2305
      %2644 = vmatpush1.msra.mxu0 %v2304
      %2645 = vmatprep.subr.mxu0 %v2309
      %2646 = vmatpush1.msra.mxu0 %v2308
      %2647 = vmatprep.subr.mxu0 %v2313
      %2648 = vmatpush1.msra.mxu0 %v2312
      %2649 = vmatprep.subr.mxu0 %v2317
      %2650 = vmatpush1.msra.mxu0 %v2316
      %2651 = vmatprep.subr.mxu0 %v2321
      %2652 = vmatpush1.msra.mxu0 %v2320
      %2653 = vmatprep.subr.mxu0 0.0
      %2654 = vmatpush1.msra.mxu0 0.0
      %2655 = vmatprep.subr.mxu0 0.0
      %2656 = vmatpush1.msra.mxu0 0.0
      %2657 = vmatprep.subr.mxu0 0.0
      %2658 = vmatpush1.msra.mxu0 0.0
      %2659 = vmatprep.subr.mxu0 0.0
      %2660 = vmatpush1.msra.mxu0 0.0
      %2661 = vmatprep.subr.mxu0 0.0
      %2662 = vmatpush1.msra.mxu0 0.0
      %2663 = vmatprep.subr.mxu0 0.0
      %2664 = vmatpush1.msra.mxu0 0.0
      %2665 = vmatprep.subr.mxu0 0.0
      %2666 = vmatpush1.msra.mxu0 0.0
      %2667 = vmatprep.subr.mxu0 0.0
      %2668 = vmatpush1.msra.mxu0 0.0
      %2669 = vmatprep.subr.mxu0 0.0
      %2670 = vmatpush1.msra.mxu0 0.0
      %2671 = vmatprep.subr.mxu0 0.0
      %2672 = vmatpush1.msra.mxu0 0.0
      %2673 = vmatprep.subr.mxu0 0.0
      %2674 = vmatpush1.msra.mxu0 0.0
      %2675 = vmatprep.subr.mxu0 0.0
      %2676 = vmatpush1.msra.mxu0 0.0
      %2677 = vmatprep.subr.mxu0 0.0
      %2678 = vmatpush1.msra.mxu0 0.0
      %2679 = vmatprep.subr.mxu0 0.0
      %2680 = vmatpush1.msra.mxu0 0.0
      %2681 = vmatprep.subr.mxu0 0.0
      %2682 = vmatpush1.msra.mxu0 0.0
      %2683 = vmatprep.subr.mxu0 0.0
      %2684 = vmatpush1.msra.mxu0 0.0
      %2685 = vmatprep.mubr.f32.mxu0 0.0
      %2686 = vmatmul.mubr.f32.gmra.mrb[0].mxu0 %v2543
      %v2687 = vpop.f32.mrb[0].mxu0
      %v2688 = vadd.f32 0.0, %v2687
      %v2689 = vpop.f32.mrb[0].mxu0
      %v2690 = vadd.f32 0.0, %v2689
      %2691 = vdwg.mxu0
      %v2692 = vadd.f32 %v2546, %v2617
      %v2693 = vadd.f32 %v2547, %v2619
      %v2694 = vadd.f32 %v2548, %v2688
      %v2695 = vadd.f32 %v2549, %v2690
      %v2696 = vxor.u32 %v2692, 2147483648
      %v2697 = vmul.f32 %v2696, 1.442695
      %v2698 = vpow.pop %v2697
      %v2699 = vadd.f32 %v2698, 1.0
      %v2700 = vrcp.pop %v2699
      %v2701 = vmul.f32 1.0, %v2700
      %v2702 = vxor.u32 %v2693, 2147483648
      %v2703 = vmul.f32 %v2702, 1.442695
      %v2704 = vpow.pop %v2703
      %v2705 = vadd.f32 %v2704, 1.0
      %v2706 = vrcp.pop %v2705
      %v2707 = vmul.f32 1.0, %v2706
      %v2708 = vtanh.pop %v2694
      %v2709 = vxor.u32 %v2695, 2147483648
      %v2710 = vmul.f32 %v2709, 1.442695
      %v2711 = vpow.pop %v2710
      %v2712 = vadd.f32 %v2711, 1.0
      %v2713 = vrcp.pop %v2712
      %v2714 = vmul.f32 1.0, %v2713
      %v2715 = vmul.f32 %v2707, %v2545
      %v2716 = vmul.f32 %v2701, %v2708
      %v2717 = vadd.f32 %v2715, %v2716
      %v2718 = vtanh.pop %v2717
      %v2719 = vmul.f32 %v2714, %v2718
      %2720 = vst [vmem:[#allocation14] sm:$0xff] %v2719
      %v2721 = vld [vmem:[#allocation13 + $0x20] sm:$0xff]
      %v2722 = vld [vmem:[#allocation13 + $0x28] sm:$0xff]
      %v2723 = vld [vmem:[#allocation13 + $0x30] sm:$0xff]
      %v2724 = vld [vmem:[#allocation13 + $0x38] sm:$0xff]
      %2725 = vmatprep.subr.mxu0 %v2259
      %2726 = vmatpush1.msra.mxu0 %v2258
      %2727 = vmatprep.subr.mxu0 %v2263
      %2728 = vmatpush1.msra.mxu0 %v2262
      %2729 = vmatprep.subr.mxu0 %v2267
      %2730 = vmatpush1.msra.mxu0 %v2266
      %2731 = vmatprep.subr.mxu0 %v2271
      %2732 = vmatpush1.msra.mxu0 %v2270
      %2733 = vmatprep.subr.mxu0 %v2275
      %2734 = vmatpush1.msra.mxu0 %v2274
      %2735 = vmatprep.subr.mxu0 %v2279
      %2736 = vmatpush1.msra.mxu0 %v2278
      %2737 = vmatprep.subr.mxu0 %v2283
      %2738 = vmatpush1.msra.mxu0 %v2282
      %2739 = vmatprep.subr.mxu0 %v2287
      %2740 = vmatpush1.msra.mxu0 %v2286
      %2741 = vmatprep.subr.mxu0 %v2291
      %2742 = vmatpush1.msra.mxu0 %v2290
      %2743 = vmatprep.subr.mxu0 %v2295
      %2744 = vmatpush1.msra.mxu0 %v2294
      %2745 = vmatprep.subr.mxu0 %v2299
      %2746 = vmatpush1.msra.mxu0 %v2298
      %2747 = vmatprep.subr.mxu0 %v2303
      %2748 = vmatpush1.msra.mxu0 %v2302
      %2749 = vmatprep.subr.mxu0 %v2307
      %2750 = vmatpush1.msra.mxu0 %v2306
      %2751 = vmatprep.subr.mxu0 %v2311
      %2752 = vmatpush1.msra.mxu0 %v2310
      %2753 = vmatprep.subr.mxu0 %v2315
      %2754 = vmatpush1.msra.mxu0 %v2314
      %2755 = vmatprep.subr.mxu0 %v2319
      %2756 = vmatpush1.msra.mxu0 %v2318
      %2757 = vmatprep.subr.mxu0 0.0
      %2758 = vmatpush1.msra.mxu0 0.0
      %2759 = vmatprep.subr.mxu0 0.0
      %2760 = vmatpush1.msra.mxu0 0.0
      %2761 = vmatprep.subr.mxu0 0.0
      %2762 = vmatpush1.msra.mxu0 0.0
      %2763 = vmatprep.subr.mxu0 0.0
      %2764 = vmatpush1.msra.mxu0 0.0
      %2765 = vmatprep.subr.mxu0 0.0
      %2766 = vmatpush1.msra.mxu0 0.0
      %2767 = vmatprep.subr.mxu0 0.0
      %2768 = vmatpush1.msra.mxu0 0.0
      %2769 = vmatprep.subr.mxu0 0.0
      %2770 = vmatpush1.msra.mxu0 0.0
      %2771 = vmatprep.subr.mxu0 0.0
      %2772 = vmatpush1.msra.mxu0 0.0
      %2773 = vmatprep.subr.mxu0 0.0
      %2774 = vmatpush1.msra.mxu0 0.0
      %2775 = vmatprep.subr.mxu0 0.0
      %2776 = vmatpush1.msra.mxu0 0.0
      %2777 = vmatprep.subr.mxu0 0.0
      %2778 = vmatpush1.msra.mxu0 0.0
      %2779 = vmatprep.subr.mxu0 0.0
      %2780 = vmatpush1.msra.mxu0 0.0
      %2781 = vmatprep.subr.mxu0 0.0
      %2782 = vmatpush1.msra.mxu0 0.0
      %2783 = vmatprep.subr.mxu0 0.0
      %2784 = vmatpush1.msra.mxu0 0.0
      %2785 = vmatprep.subr.mxu0 0.0
      %2786 = vmatpush1.msra.mxu0 0.0
      %2787 = vmatprep.subr.mxu0 0.0
      %2788 = vmatpush1.msra.mxu0 0.0
      %2789 = vmatprep.mubr.f32.mxu0 0.0
      %2790 = vmatmul.mubr.f32.gmra.mrb[0].mxu0 %v2719
      %v2791 = vpop.f32.mrb[0].mxu0
      %v2792 = vadd.f32 0.0, %v2791
      %v2793 = vpop.f32.mrb[0].mxu0
      %v2794 = vadd.f32 0.0, %v2793
      %2795 = vdwg.mxu0
      %2796 = vmatprep.subr.mxu0 %v2261
      %2797 = vmatpush1.msra.mxu0 %v2260
      %2798 = vmatprep.subr.mxu0 %v2265
      %2799 = vmatpush1.msra.mxu0 %v2264
      %2800 = vmatprep.subr.mxu0 %v2269
      %2801 = vmatpush1.msra.mxu0 %v2268
      %2802 = vmatprep.subr.mxu0 %v2273
      %2803 = vmatpush1.msra.mxu0 %v2272
      %2804 = vmatprep.subr.mxu0 %v2277
      %2805 = vmatpush1.msra.mxu0 %v2276
      %2806 = vmatprep.subr.mxu0 %v2281
      %2807 = vmatpush1.msra.mxu0 %v2280
      %2808 = vmatprep.subr.mxu0 %v2285
      %2809 = vmatpush1.msra.mxu0 %v2284
      %2810 = vmatprep.subr.mxu0 %v2289
      %2811 = vmatpush1.msra.mxu0 %v2288
      %2812 = vmatprep.subr.mxu0 %v2293
      %2813 = vmatpush1.msra.mxu0 %v2292
      %2814 = vmatprep.subr.mxu0 %v2297
      %2815 = vmatpush1.msra.mxu0 %v2296
      %2816 = vmatprep.subr.mxu0 %v2301
      %2817 = vmatpush1.msra.mxu0 %v2300
      %2818 = vmatprep.subr.mxu0 %v2305
      %2819 = vmatpush1.msra.mxu0 %v2304
      %2820 = vmatprep.subr.mxu0 %v2309
      %2821 = vmatpush1.msra.mxu0 %v2308
      %2822 = vmatprep.subr.mxu0 %v2313
      %2823 = vmatpush1.msra.mxu0 %v2312
      %2824 = vmatprep.subr.mxu0 %v2317
      %2825 = vmatpush1.msra.mxu0 %v2316
      %2826 = vmatprep.subr.mxu0 %v2321
      %2827 = vmatpush1.msra.mxu0 %v2320
      %2828 = vmatprep.subr.mxu0 0.0
      %2829 = vmatpush1.msra.mxu0 0.0
      %2830 = vmatprep.subr.mxu0 0.0
      %2831 = vmatpush1.msra.mxu0 0.0
      %2832 = vmatprep.subr.mxu0 0.0
      %2833 = vmatpush1.msra.mxu0 0.0
      %2834 = vmatprep.subr.mxu0 0.0
      %2835 = vmatpush1.msra.mxu0 0.0
      %2836 = vmatprep.subr.mxu0 0.0
      %2837 = vmatpush1.msra.mxu0 0.0
      %2838 = vmatprep.subr.mxu0 0.0
      %2839 = vmatpush1.msra.mxu0 0.0
      %2840 = vmatprep.subr.mxu0 0.0
      %2841 = vmatpush1.msra.mxu0 0.0
      %2842 = vmatprep.subr.mxu0 0.0
      %2843 = vmatpush1.msra.mxu0 0.0
      %2844 = vmatprep.subr.mxu0 0.0
      %2845 = vmatpush1.msra.mxu0 0.0
      %2846 = vmatprep.subr.mxu0 0.0
      %2847 = vmatpush1.msra.mxu0 0.0
      %2848 = vmatprep.subr.mxu0 0.0
      %2849 = vmatpush1.msra.mxu0 0.0
      %2850 = vmatprep.subr.mxu0 0.0
      %2851 = vmatpush1.msra.mxu0 0.0
      %2852 = vmatprep.subr.mxu0 0.0
      %2853 = vmatpush1.msra.mxu0 0.0
      %2854 = vmatprep.subr.mxu0 0.0
      %2855 = vmatpush1.msra.mxu0 0.0
      %2856 = vmatprep.subr.mxu0 0.0
      %2857 = vmatpush1.msra.mxu0 0.0
      %2858 = vmatprep.subr.mxu0 0.0
      %2859 = vmatpush1.msra.mxu0 0.0
      %2860 = vmatprep.mubr.f32.mxu0 0.0
      %2861 = vmatmul.mubr.f32.gmra.mrb[0].mxu0 %v2719
      %v2862 = vpop.f32.mrb[0].mxu0
      %v2863 = vadd.f32 0.0, %v2862
      %v2864 = vpop.f32.mrb[0].mxu0
      %v2865 = vadd.f32 0.0, %v2864
      %2866 = vdwg.mxu0
      %v2867 = vadd.f32 %v2721, %v2792
      %v2868 = vadd.f32 %v2722, %v2794
      %v2869 = vadd.f32 %v2723, %v2863
      %v2870 = vadd.f32 %v2724, %v2865
      %v2871 = vxor.u32 %v2867, 2147483648
      %v2872 = vmul.f32 %v2871, 1.442695
      %v2873 = vpow.pop %v2872
      %v2874 = vadd.f32 %v2873, 1.0
      %v2875 = vrcp.pop %v2874
      %v2876 = vmul.f32 1.0, %v2875
      %v2877 = vxor.u32 %v2868, 2147483648
      %v2878 = vmul.f32 %v2877, 1.442695
      %v2879 = vpow.pop %v2878
      %v2880 = vadd.f32 %v2879, 1.0
      %v2881 = vrcp.pop %v2880
      %v2882 = vmul.f32 1.0, %v2881
      %v2883 = vtanh.pop %v2869
      %v2884 = vxor.u32 %v2870, 2147483648
      %v2885 = vmul.f32 %v2884, 1.442695
      %v2886 = vpow.pop %v2885
      %v2887 = vadd.f32 %v2886, 1.0
      %v2888 = vrcp.pop %v2887
      %v2889 = vmul.f32 1.0, %v2888
      %v2890 = vmul.f32 %v2882, %v2717
      %v2891 = vmul.f32 %v2876, %v2883
      %v2892 = vadd.f32 %v2890, %v2891
      %v2893 = vtanh.pop %v2892
      %v2894 = vmul.f32 %v2889, %v2893
      %2895 = vst [vmem:[#allocation14 + $0x8] sm:$0xff] %v2894
      %v2896 = vld [vmem:[#allocation13 + $0x40] sm:$0xff]
      %v2897 = vld [vmem:[#allocation13 + $0x48] sm:$0xff]
      %v2898 = vld [vmem:[#allocation13 + $0x50] sm:$0xff]
      %v2899 = vld [vmem:[#allocation13 + $0x58] sm:$0xff]
      %2900 = vmatprep.subr.mxu0 %v2259
      %2901 = vmatpush1.msra.mxu0 %v2258
      %2902 = vmatprep.subr.mxu0 %v2263
      %2903 = vmatpush1.msra.mxu0 %v2262
      %2904 = vmatprep.subr.mxu0 %v2267
      %2905 = vmatpush1.msra.mxu0 %v2266
      %2906 = vmatprep.subr.mxu0 %v2271
      %2907 = vmatpush1.msra.mxu0 %v2270
      %2908 = vmatprep.subr.mxu0 %v2275
      %2909 = vmatpush1.msra.mxu0 %v2274
      %2910 = vmatprep.subr.mxu0 %v2279
      %2911 = vmatpush1.msra.mxu0 %v2278
      %2912 = vmatprep.subr.mxu0 %v2283
      %2913 = vmatpush1.msra.mxu0 %v2282
      %2914 = vmatprep.subr.mxu0 %v2287
      %2915 = vmatpush1.msra.mxu0 %v2286
      %2916 = vmatprep.subr.mxu0 %v2291
      %2917 = vmatpush1.msra.mxu0 %v2290
      %2918 = vmatprep.subr.mxu0 %v2295
      %2919 = vmatpush1.msra.mxu0 %v2294
      %2920 = vmatprep.subr.mxu0 %v2299
      %2921 = vmatpush1.msra.mxu0 %v2298
      %2922 = vmatprep.subr.mxu0 %v2303
      %2923 = vmatpush1.msra.mxu0 %v2302
      %2924 = vmatprep.subr.mxu0 %v2307
      %2925 = vmatpush1.msra.mxu0 %v2306
      %2926 = vmatprep.subr.mxu0 %v2311
      %2927 = vmatpush1.msra.mxu0 %v2310
      %2928 = vmatprep.subr.mxu0 %v2315
      %2929 = vmatpush1.msra.mxu0 %v2314
      %2930 = vmatprep.subr.mxu0 %v2319
      %2931 = vmatpush1.msra.mxu0 %v2318
      %2932 = vmatprep.subr.mxu0 0.0
      %2933 = vmatpush1.msra.mxu0 0.0
      %2934 = vmatprep.subr.mxu0 0.0
      %2935 = vmatpush1.msra.mxu0 0.0
      %2936 = vmatprep.subr.mxu0 0.0
      %2937 = vmatpush1.msra.mxu0 0.0
      %2938 = vmatprep.subr.mxu0 0.0
      %2939 = vmatpush1.msra.mxu0 0.0
      %2940 = vmatprep.subr.mxu0 0.0
      %2941 = vmatpush1.msra.mxu0 0.0
      %2942 = vmatprep.subr.mxu0 0.0
      %2943 = vmatpush1.msra.mxu0 0.0
      %2944 = vmatprep.subr.mxu0 0.0
      %2945 = vmatpush1.msra.mxu0 0.0
      %2946 = vmatprep.subr.mxu0 0.0
      %2947 = vmatpush1.msra.mxu0 0.0
      %2948 = vmatprep.subr.mxu0 0.0
      %2949 = vmatpush1.msra.mxu0 0.0
      %2950 = vmatprep.subr.mxu0 0.0
      %2951 = vmatpush1.msra.mxu0 0.0
      %2952 = vmatprep.subr.mxu0 0.0
      %2953 = vmatpush1.msra.mxu0 0.0
      %2954 = vmatprep.subr.mxu0 0.0
      %2955 = vmatpush1.msra.mxu0 0.0
      %2956 = vmatprep.subr.mxu0 0.0
      %2957 = vmatpush1.msra.mxu0 0.0
      %2958 = vmatprep.subr.mxu0 0.0
      %2959 = vmatpush1.msra.mxu0 0.0
      %2960 = vmatprep.subr.mxu0 0.0
      %2961 = vmatpush1.msra.mxu0 0.0
      %2962 = vmatprep.subr.mxu0 0.0
      %2963 = vmatpush1.msra.mxu0 0.0
      %2964 = vmatprep.mubr.f32.mxu0 0.0
      %2965 = vmatmul.mubr.f32.gmra.mrb[0].mxu0 %v2894
      %v2966 = vpop.f32.mrb[0].mxu0
      %v2967 = vadd.f32 0.0, %v2966
      %v2968 = vpop.f32.mrb[0].mxu0
      %v2969 = vadd.f32 0.0, %v2968
      %2970 = vdwg.mxu0
      %2971 = vmatprep.subr.mxu0 %v2261
      %2972 = vmatpush1.msra.mxu0 %v2260
      %2973 = vmatprep.subr.mxu0 %v2265
      %2974 = vmatpush1.msra.mxu0 %v2264
      %2975 = vmatprep.subr.mxu0 %v2269
      %2976 = vmatpush1.msra.mxu0 %v2268
      %2977 = vmatprep.subr.mxu0 %v2273
      %2978 = vmatpush1.msra.mxu0 %v2272
      %2979 = vmatprep.subr.mxu0 %v2277
      %2980 = vmatpush1.msra.mxu0 %v2276
      %2981 = vmatprep.subr.mxu0 %v2281
      %2982 = vmatpush1.msra.mxu0 %v2280
      %2983 = vmatprep.subr.mxu0 %v2285
      %2984 = vmatpush1.msra.mxu0 %v2284
      %2985 = vmatprep.subr.mxu0 %v2289
      %2986 = vmatpush1.msra.mxu0 %v2288
      %2987 = vmatprep.subr.mxu0 %v2293
      %2988 = vmatpush1.msra.mxu0 %v2292
      %2989 = vmatprep.subr.mxu0 %v2297
      %2990 = vmatpush1.msra.mxu0 %v2296
      %2991 = vmatprep.subr.mxu0 %v2301
      %2992 = vmatpush1.msra.mxu0 %v2300
      %2993 = vmatprep.subr.mxu0 %v2305
      %2994 = vmatpush1.msra.mxu0 %v2304
      %2995 = vmatprep.subr.mxu0 %v2309
      %2996 = vmatpush1.msra.mxu0 %v2308
      %2997 = vmatprep.subr.mxu0 %v2313
      %2998 = vmatpush1.msra.mxu0 %v2312
      %2999 = vmatprep.subr.mxu0 %v2317
      %3000 = vmatpush1.msra.mxu0 %v2316
      %3001 = vmatprep.subr.mxu0 %v2321
      %3002 = vmatpush1.msra.mxu0 %v2320
      %3003 = vmatprep.subr.mxu0 0.0
      %3004 = vmatpush1.msra.mxu0 0.0
      %3005 = vmatprep.subr.mxu0 0.0
      %3006 = vmatpush1.msra.mxu0 0.0
      %3007 = vmatprep.subr.mxu0 0.0
      %3008 = vmatpush1.msra.mxu0 0.0
      %3009 = vmatprep.subr.mxu0 0.0
      %3010 = vmatpush1.msra.mxu0 0.0
      %3011 = vmatprep.subr.mxu0 0.0
      %3012 = vmatpush1.msra.mxu0 0.0
      %3013 = vmatprep.subr.mxu0 0.0
      %3014 = vmatpush1.msra.mxu0 0.0
      %3015 = vmatprep.subr.mxu0 0.0
      %3016 = vmatpush1.msra.mxu0 0.0
      %3017 = vmatprep.subr.mxu0 0.0
      %3018 = vmatpush1.msra.mxu0 0.0
      %3019 = vmatprep.subr.mxu0 0.0
      %3020 = vmatpush1.msra.mxu0 0.0
      %3021 = vmatprep.subr.mxu0 0.0
      %3022 = vmatpush1.msra.mxu0 0.0
      %3023 = vmatprep.subr.mxu0 0.0
      %3024 = vmatpush1.msra.mxu0 0.0
      %3025 = vmatprep.subr.mxu0 0.0
      %3026 = vmatpush1.msra.mxu0 0.0
      %3027 = vmatprep.subr.mxu0 0.0
      %3028 = vmatpush1.msra.mxu0 0.0
      %3029 = vmatprep.subr.mxu0 0.0
      %3030 = vmatpush1.msra.mxu0 0.0
      %3031 = vmatprep.subr.mxu0 0.0
      %3032 = vmatpush1.msra.mxu0 0.0
      %3033 = vmatprep.subr.mxu0 0.0
      %3034 = vmatpush1.msra.mxu0 0.0
      %3035 = vmatprep.mubr.f32.mxu0 0.0
      %3036 = vmatmul.mubr.f32.gmra.mrb[0].mxu0 %v2894
      %v3037 = vpop.f32.mrb[0].mxu0
      %v3038 = vadd.f32 0.0, %v3037
      %v3039 = vpop.f32.mrb[0].mxu0
      %v3040 = vadd.f32 0.0, %v3039
      %3041 = vdwg.mxu0
      %v3042 = vadd.f32 %v2896, %v2967
      %v3043 = vadd.f32 %v2897, %v2969
      %v3044 = vadd.f32 %v2898, %v3038
      %v3045 = vadd.f32 %v2899, %v3040
      %v3046 = vxor.u32 %v3042, 2147483648
      %v3047 = vmul.f32 %v3046, 1.442695
      %v3048 = vpow.pop %v3047
      %v3049 = vadd.f32 %v3048, 1.0
      %v3050 = vrcp.pop %v3049
      %v3051 = vmul.f32 1.0, %v3050
      %v3052 = vxor.u32 %v3043, 2147483648
      %v3053 = vmul.f32 %v3052, 1.442695
      %v3054 = vpow.pop %v3053
      %v3055 = vadd.f32 %v3054, 1.0
      %v3056 = vrcp.pop %v3055
      %v3057 = vmul.f32 1.0, %v3056
      %v3058 = vtanh.pop %v3044
      %v3059 = vxor.u32 %v3045, 2147483648
      %v3060 = vmul.f32 %v3059, 1.442695
      %v3061 = vpow.pop %v3060
      %v3062 = vadd.f32 %v3061, 1.0
      %v3063 = vrcp.pop %v3062
      %v3064 = vmul.f32 1.0, %v3063
      %v3065 = vmul.f32 %v3057, %v2892
      %v3066 = vmul.f32 %v3051, %v3058
      %v3067 = vadd.f32 %v3065, %v3066
      %v3068 = vtanh.pop %v3067
      %v3069 = vmul.f32 %v3064, %v3068
      %3070 = vst [vmem:[#allocation14 + $0x10] sm:$0xff] %v3069
      %v3071 = vld [vmem:[#allocation13 + $0x60] sm:$0xff]
      %v3072 = vld [vmem:[#allocation13 + $0x68] sm:$0xff]
      %v3073 = vld [vmem:[#allocation13 + $0x70] sm:$0xff]
      %v3074 = vld [vmem:[#allocation13 + $0x78] sm:$0xff]
      %3075 = vmatprep.subr.mxu0 %v2259
      %3076 = vmatpush1.msra.mxu0 %v2258
      %3077 = vmatprep.subr.mxu0 %v2263
      %3078 = vmatpush1.msra.mxu0 %v2262
      %3079 = vmatprep.subr.mxu0 %v2267
      %3080 = vmatpush1.msra.mxu0 %v2266
      %3081 = vmatprep.subr.mxu0 %v2271
      %3082 = vmatpush1.msra.mxu0 %v2270
      %3083 = vmatprep.subr.mxu0 %v2275
      %3084 = vmatpush1.msra.mxu0 %v2274
      %3085 = vmatprep.subr.mxu0 %v2279
      %3086 = vmatpush1.msra.mxu0 %v2278
      %3087 = vmatprep.subr.mxu0 %v2283
      %3088 = vmatpush1.msra.mxu0 %v2282
      %3089 = vmatprep.subr.mxu0 %v2287
      %3090 = vmatpush1.msra.mxu0 %v2286
      %3091 = vmatprep.subr.mxu0 %v2291
      %3092 = vmatpush1.msra.mxu0 %v2290
      %3093 = vmatprep.subr.mxu0 %v2295
      %3094 = vmatpush1.msra.mxu0 %v2294
      %3095 = vmatprep.subr.mxu0 %v2299
      %3096 = vmatpush1.msra.mxu0 %v2298
      %3097 = vmatprep.subr.mxu0 %v2303
      %3098 = vmatpush1.msra.mxu0 %v2302
      %3099 = vmatprep.subr.mxu0 %v2307
      %3100 = vmatpush1.msra.mxu0 %v2306
      %3101 = vmatprep.subr.mxu0 %v2311
      %3102 = vmatpush1.msra.mxu0 %v2310
      %3103 = vmatprep.subr.mxu0 %v2315
      %3104 = vmatpush1.msra.mxu0 %v2314
      %3105 = vmatprep.subr.mxu0 %v2319
      %3106 = vmatpush1.msra.mxu0 %v2318
      %3107 = vmatprep.subr.mxu0 0.0
      %3108 = vmatpush1.msra.mxu0 0.0
      %3109 = vmatprep.subr.mxu0 0.0
      %3110 = vmatpush1.msra.mxu0 0.0
      %3111 = vmatprep.subr.mxu0 0.0
      %3112 = vmatpush1.msra.mxu0 0.0
      %3113 = vmatprep.subr.mxu0 0.0
      %3114 = vmatpush1.msra.mxu0 0.0
      %3115 = vmatprep.subr.mxu0 0.0
      %3116 = vmatpush1.msra.mxu0 0.0
      %3117 = vmatprep.subr.mxu0 0.0
      %3118 = vmatpush1.msra.mxu0 0.0
      %3119 = vmatprep.subr.mxu0 0.0
      %3120 = vmatpush1.msra.mxu0 0.0
      %3121 = vmatprep.subr.mxu0 0.0
      %3122 = vmatpush1.msra.mxu0 0.0
      %3123 = vmatprep.subr.mxu0 0.0
      %3124 = vmatpush1.msra.mxu0 0.0
      %3125 = vmatprep.subr.mxu0 0.0
      %3126 = vmatpush1.msra.mxu0 0.0
      %3127 = vmatprep.subr.mxu0 0.0
      %3128 = vmatpush1.msra.mxu0 0.0
      %3129 = vmatprep.subr.mxu0 0.0
      %3130 = vmatpush1.msra.mxu0 0.0
      %3131 = vmatprep.subr.mxu0 0.0
      %3132 = vmatpush1.msra.mxu0 0.0
      %3133 = vmatprep.subr.mxu0 0.0
      %3134 = vmatpush1.msra.mxu0 0.0
      %3135 = vmatprep.subr.mxu0 0.0
      %3136 = vmatpush1.msra.mxu0 0.0
      %3137 = vmatprep.subr.mxu0 0.0
      %3138 = vmatpush1.msra.mxu0 0.0
      %3139 = vmatprep.mubr.f32.mxu0 0.0
      %3140 = vmatmul.mubr.f32.gmra.mrb[0].mxu0 %v3069
      %v3141 = vpop.f32.mrb[0].mxu0
      %v3142 = vadd.f32 0.0, %v3141
      %v3143 = vpop.f32.mrb[0].mxu0
      %v3144 = vadd.f32 0.0, %v3143
      %3145 = vdwg.mxu0
      %3146 = vmatprep.subr.mxu0 %v2261
      %3147 = vmatpush1.msra.mxu0 %v2260
      %3148 = vmatprep.subr.mxu0 %v2265
      %3149 = vmatpush1.msra.mxu0 %v2264
      %3150 = vmatprep.subr.mxu0 %v2269
      %3151 = vmatpush1.msra.mxu0 %v2268
      %3152 = vmatprep.subr.mxu0 %v2273
      %3153 = vmatpush1.msra.mxu0 %v2272
      %3154 = vmatprep.subr.mxu0 %v2277
      %3155 = vmatpush1.msra.mxu0 %v2276
      %3156 = vmatprep.subr.mxu0 %v2281
      %3157 = vmatpush1.msra.mxu0 %v2280
      %3158 = vmatprep.subr.mxu0 %v2285
      %3159 = vmatpush1.msra.mxu0 %v2284
      %3160 = vmatprep.subr.mxu0 %v2289
      %3161 = vmatpush1.msra.mxu0 %v2288
      %3162 = vmatprep.subr.mxu0 %v2293
      %3163 = vmatpush1.msra.mxu0 %v2292
      %3164 = vmatprep.subr.mxu0 %v2297
      %3165 = vmatpush1.msra.mxu0 %v2296
      %3166 = vmatprep.subr.mxu0 %v2301
      %3167 = vmatpush1.msra.mxu0 %v2300
      %3168 = vmatprep.subr.mxu0 %v2305
      %3169 = vmatpush1.msra.mxu0 %v2304
      %3170 = vmatprep.subr.mxu0 %v2309
      %3171 = vmatpush1.msra.mxu0 %v2308
      %3172 = vmatprep.subr.mxu0 %v2313
      %3173 = vmatpush1.msra.mxu0 %v2312
      %3174 = vmatprep.subr.mxu0 %v2317
      %3175 = vmatpush1.msra.mxu0 %v2316
      %3176 = vmatprep.subr.mxu0 %v2321
      %3177 = vmatpush1.msra.mxu0 %v2320
      %3178 = vmatprep.subr.mxu0 0.0
      %3179 = vmatpush1.msra.mxu0 0.0
      %3180 = vmatprep.subr.mxu0 0.0
      %3181 = vmatpush1.msra.mxu0 0.0
      %3182 = vmatprep.subr.mxu0 0.0
      %3183 = vmatpush1.msra.mxu0 0.0
      %3184 = vmatprep.subr.mxu0 0.0
      %3185 = vmatpush1.msra.mxu0 0.0
      %3186 = vmatprep.subr.mxu0 0.0
      %3187 = vmatpush1.msra.mxu0 0.0
      %3188 = vmatprep.subr.mxu0 0.0
      %3189 = vmatpush1.msra.mxu0 0.0
      %3190 = vmatprep.subr.mxu0 0.0
      %3191 = vmatpush1.msra.mxu0 0.0
      %3192 = vmatprep.subr.mxu0 0.0
      %3193 = vmatpush1.msra.mxu0 0.0
      %3194 = vmatprep.subr.mxu0 0.0
      %3195 = vmatpush1.msra.mxu0 0.0
      %3196 = vmatprep.subr.mxu0 0.0
      %3197 = vmatpush1.msra.mxu0 0.0
      %3198 = vmatprep.subr.mxu0 0.0
      %3199 = vmatpush1.msra.mxu0 0.0
      %3200 = vmatprep.subr.mxu0 0.0
      %3201 = vmatpush1.msra.mxu0 0.0
      %3202 = vmatprep.subr.mxu0 0.0
      %3203 = vmatpush1.msra.mxu0 0.0
      %3204 = vmatprep.subr.mxu0 0.0
      %3205 = vmatpush1.msra.mxu0 0.0
      %3206 = vmatprep.subr.mxu0 0.0
      %3207 = vmatpush1.msra.mxu0 0.0
      %3208 = vmatprep.subr.mxu0 0.0
      %3209 = vmatpush1.msra.mxu0 0.0
      %3210 = vmatprep.mubr.f32.mxu0 0.0
      %3211 = vmatmul.mubr.f32.gmra.mrb[0].mxu0 %v3069
      %v3212 = vpop.f32.mrb[0].mxu0
      %v3213 = vadd.f32 0.0, %v3212
      %v3214 = vpop.f32.mrb[0].mxu0
      %v3215 = vadd.f32 0.0, %v3214
      %3216 = vdwg.mxu0
      %v3217 = vadd.f32 %v3071, %v3142
      %v3218 = vadd.f32 %v3072, %v3144
      %v3219 = vadd.f32 %v3073, %v3213
      %v3220 = vadd.f32 %v3074, %v3215
      %v3221 = vxor.u32 %v3217, 2147483648
      %v3222 = vmul.f32 %v3221, 1.442695
      %v3223 = vpow.pop %v3222
      %v3224 = vadd.f32 %v3223, 1.0
      %v3225 = vrcp.pop %v3224
      %v3226 = vmul.f32 1.0, %v3225
      %v3227 = vxor.u32 %v3218, 2147483648
      %v3228 = vmul.f32 %v3227, 1.442695
      %v3229 = vpow.pop %v3228
      %v3230 = vadd.f32 %v3229, 1.0
      %v3231 = vrcp.pop %v3230
      %v3232 = vmul.f32 1.0, %v3231
      %v3233 = vtanh.pop %v3219
      %v3234 = vxor.u32 %v3220, 2147483648
      %v3235 = vmul.f32 %v3234, 1.442695
      %v3236 = vpow.pop %v3235
      %v3237 = vadd.f32 %v3236, 1.0
      %v3238 = vrcp.pop %v3237
      %v3239 = vmul.f32 1.0, %v3238
      %v3240 = vmul.f32 %v3232, %v3067
      %v3241 = vmul.f32 %v3226, %v3233
      %v3242 = vadd.f32 %v3240, %v3241
      %v3243 = vtanh.pop %v3242
      %v3244 = vmul.f32 %v3239, %v3243
      %3245 = vst [vmem:[#allocation14 + $0x18] sm:$0xff] %v3244
      %3246 = vst [vmem:[%s2542] sm:$0xff] %v3244
      %3247 = vst [vmem:[%s2544] sm:$0xff] %v3242
      // Predicated region
      $region327: #{lstm_by_split_forward.1} parent=23 // pred_check
        %p3248 = pneg %p113
      $region328: #{lstm_by_split_forward.1} parent=23 // pred_check_branch
        %3250 = sbr.rel (%p3248) target = $region330
      $region329: #{lstm_by_split_forward.1} parent=23 // pred_region
        %s3251 = scalar_lea.sflag [#allocation15], 6
        %s3252 = smul.u32 8, 16
        %s3253 = smul.u32 %s3252, 4
        %s3254 = sshll.u32 %s3253, 4
        %3255 = dma.done %s3251, %s3254
        %s3256 = scalar_lea.sflag [#allocation15], 7
        %s3257 = sshll.u32 %s3253, 4
        %3258 = dma.done %s3256, %s3257
        %s3259 = scalar_lea.sflag [#allocation15], 8
        %s3260 = smul.u32 1, 4
        %s3261 = sshll.u32 %s3260, 4
        %3262 = dma.done %s3259, %s3261
      $region330: #{lstm_by_split_forward.1} parent=23 // pred_fallthru
        _
      %v3263 = vld [vmem:[#allocation8] sm:$0xff]
      %v3264 = vld [vmem:[#allocation8 + $0x8] sm:$0xff]
      %v3265 = vld [vmem:[#allocation8 + $0x10] sm:$0xff]
      %v3266 = vld [vmem:[#allocation8 + $0x18] sm:$0xff]
      %v3267 = vld [vmem:[#allocation8 + $0x20] sm:$0xff]
      %v3268 = vld [vmem:[#allocation8 + $0x28] sm:$0xff]
      %v3269 = vld [vmem:[#allocation8 + $0x30] sm:$0xff]
      %v3270 = vld [vmem:[#allocation8 + $0x38] sm:$0xff]
      %v3271 = vld [vmem:[#allocation8 + $0x40] sm:$0xff]
      %v3272 = vld [vmem:[#allocation8 + $0x48] sm:$0xff]
      %v3273 = vld [vmem:[#allocation8 + $0x50] sm:$0xff]
      %v3274 = vld [vmem:[#allocation8 + $0x58] sm:$0xff]
      %v3275 = vld [vmem:[#allocation8 + $0x60] sm:$0xff]
      %v3276 = vld [vmem:[#allocation8 + $0x68] sm:$0xff]
      %v3277 = vld [vmem:[#allocation8 + $0x70] sm:$0xff]
      %v3278 = vld [vmem:[#allocation8 + $0x78] sm:$0xff]
      %v3279 = vld [vmem:[#allocation8 + $0x80] sm:$0xff]
      %v3280 = vld [vmem:[#allocation8 + $0x88] sm:$0xff]
      %v3281 = vld [vmem:[#allocation8 + $0x90] sm:$0xff]
      %v3282 = vld [vmem:[#allocation8 + $0x98] sm:$0xff]
      %v3283 = vld [vmem:[#allocation8 + $0xa0] sm:$0xff]
      %v3284 = vld [vmem:[#allocation8 + $0xa8] sm:$0xff]
      %v3285 = vld [vmem:[#allocation8 + $0xb0] sm:$0xff]
      %v3286 = vld [vmem:[#allocation8 + $0xb8] sm:$0xff]
      %v3287 = vld [vmem:[#allocation8 + $0xc0] sm:$0xff]
      %v3288 = vld [vmem:[#allocation8 + $0xc8] sm:$0xff]
      %v3289 = vld [vmem:[#allocation8 + $0xd0] sm:$0xff]
      %v3290 = vld [vmem:[#allocation8 + $0xd8] sm:$0xff]
      %v3291 = vld [vmem:[#allocation8 + $0xe0] sm:$0xff]
      %v3292 = vld [vmem:[#allocation8 + $0xe8] sm:$0xff]
      %v3293 = vld [vmem:[#allocation8 + $0xf0] sm:$0xff]
      %v3294 = vld [vmem:[#allocation8 + $0xf8] sm:$0xff]
      %v3295 = vld [vmem:[#allocation8 + $0x100] sm:$0xff]
      %v3296 = vld [vmem:[#allocation8 + $0x108] sm:$0xff]
      %v3297 = vld [vmem:[#allocation8 + $0x110] sm:$0xff]
      %v3298 = vld [vmem:[#allocation8 + $0x118] sm:$0xff]
      %v3299 = vld [vmem:[#allocation8 + $0x120] sm:$0xff]
      %v3300 = vld [vmem:[#allocation8 + $0x128] sm:$0xff]
      %v3301 = vld [vmem:[#allocation8 + $0x130] sm:$0xff]
      %v3302 = vld [vmem:[#allocation8 + $0x138] sm:$0xff]
      %v3303 = vld [vmem:[#allocation8 + $0x140] sm:$0xff]
      %v3304 = vld [vmem:[#allocation8 + $0x148] sm:$0xff]
      %v3305 = vld [vmem:[#allocation8 + $0x150] sm:$0xff]
      %v3306 = vld [vmem:[#allocation8 + $0x158] sm:$0xff]
      %v3307 = vld [vmem:[#allocation8 + $0x160] sm:$0xff]
      %v3308 = vld [vmem:[#allocation8 + $0x168] sm:$0xff]
      %v3309 = vld [vmem:[#allocation8 + $0x170] sm:$0xff]
      %v3310 = vld [vmem:[#allocation8 + $0x178] sm:$0xff]
      %v3311 = vld [vmem:[#allocation8 + $0x180] sm:$0xff]
      %v3312 = vld [vmem:[#allocation8 + $0x188] sm:$0xff]
      %v3313 = vld [vmem:[#allocation8 + $0x190] sm:$0xff]
      %v3314 = vld [vmem:[#allocation8 + $0x198] sm:$0xff]
      %v3315 = vld [vmem:[#allocation8 + $0x1a0] sm:$0xff]
      %v3316 = vld [vmem:[#allocation8 + $0x1a8] sm:$0xff]
      %v3317 = vld [vmem:[#allocation8 + $0x1b0] sm:$0xff]
      %v3318 = vld [vmem:[#allocation8 + $0x1b8] sm:$0xff]
      %v3319 = vld [vmem:[#allocation8 + $0x1c0] sm:$0xff]
      %v3320 = vld [vmem:[#allocation8 + $0x1c8] sm:$0xff]
      %v3321 = vld [vmem:[#allocation8 + $0x1d0] sm:$0xff]
      %v3322 = vld [vmem:[#allocation8 + $0x1d8] sm:$0xff]
      %v3323 = vld [vmem:[#allocation8 + $0x1e0] sm:$0xff]
      %v3324 = vld [vmem:[#allocation8 + $0x1e8] sm:$0xff]
      %v3325 = vld [vmem:[#allocation8 + $0x1f0] sm:$0xff]
      %v3326 = vld [vmem:[#allocation8 + $0x1f8] sm:$0xff]
      %v3327 = vld [vmem:[#allocation9] sm:$0xff]
      %v3328 = vld [vmem:[#allocation9 + $0x8] sm:$0xff]
      %v3329 = vld [vmem:[#allocation9 + $0x10] sm:$0xff]
      %v3330 = vld [vmem:[#allocation9 + $0x18] sm:$0xff]
      %v3331 = vld [vmem:[#allocation9 + $0x20] sm:$0xff]
      %v3332 = vld [vmem:[#allocation9 + $0x28] sm:$0xff]
      %v3333 = vld [vmem:[#allocation9 + $0x30] sm:$0xff]
      %v3334 = vld [vmem:[#allocation9 + $0x38] sm:$0xff]
      %v3335 = vld [vmem:[#allocation9 + $0x40] sm:$0xff]
      %v3336 = vld [vmem:[#allocation9 + $0x48] sm:$0xff]
      %v3337 = vld [vmem:[#allocation9 + $0x50] sm:$0xff]
      %v3338 = vld [vmem:[#allocation9 + $0x58] sm:$0xff]
      %v3339 = vld [vmem:[#allocation9 + $0x60] sm:$0xff]
      %v3340 = vld [vmem:[#allocation9 + $0x68] sm:$0xff]
      %v3341 = vld [vmem:[#allocation9 + $0x70] sm:$0xff]
      %v3342 = vld [vmem:[#allocation9 + $0x78] sm:$0xff]
      %v3343 = vld [vmem:[#allocation9 + $0x80] sm:$0xff]
      %v3344 = vld [vmem:[#allocation9 + $0x88] sm:$0xff]
      %v3345 = vld [vmem:[#allocation9 + $0x90] sm:$0xff]
      %v3346 = vld [vmem:[#allocation9 + $0x98] sm:$0xff]
      %v3347 = vld [vmem:[#allocation9 + $0xa0] sm:$0xff]
      %v3348 = vld [vmem:[#allocation9 + $0xa8] sm:$0xff]
      %v3349 = vld [vmem:[#allocation9 + $0xb0] sm:$0xff]
      %v3350 = vld [vmem:[#allocation9 + $0xb8] sm:$0xff]
      %v3351 = vld [vmem:[#allocation9 + $0xc0] sm:$0xff]
      %v3352 = vld [vmem:[#allocation9 + $0xc8] sm:$0xff]
      %v3353 = vld [vmem:[#allocation9 + $0xd0] sm:$0xff]
      %v3354 = vld [vmem:[#allocation9 + $0xd8] sm:$0xff]
      %v3355 = vld [vmem:[#allocation9 + $0xe0] sm:$0xff]
      %v3356 = vld [vmem:[#allocation9 + $0xe8] sm:$0xff]
      %v3357 = vld [vmem:[#allocation9 + $0xf0] sm:$0xff]
      %v3358 = vld [vmem:[#allocation9 + $0xf8] sm:$0xff]
      %v3359 = vld [vmem:[#allocation9 + $0x100] sm:$0xff]
      %v3360 = vld [vmem:[#allocation9 + $0x108] sm:$0xff]
      %v3361 = vld [vmem:[#allocation9 + $0x110] sm:$0xff]
      %v3362 = vld [vmem:[#allocation9 + $0x118] sm:$0xff]
      %v3363 = vld [vmem:[#allocation9 + $0x120] sm:$0xff]
      %v3364 = vld [vmem:[#allocation9 + $0x128] sm:$0xff]
      %v3365 = vld [vmem:[#allocation9 + $0x130] sm:$0xff]
      %v3366 = vld [vmem:[#allocation9 + $0x138] sm:$0xff]
      %v3367 = vld [vmem:[#allocation9 + $0x140] sm:$0xff]
      %v3368 = vld [vmem:[#allocation9 + $0x148] sm:$0xff]
      %v3369 = vld [vmem:[#allocation9 + $0x150] sm:$0xff]
      %v3370 = vld [vmem:[#allocation9 + $0x158] sm:$0xff]
      %v3371 = vld [vmem:[#allocation9 + $0x160] sm:$0xff]
      %v3372 = vld [vmem:[#allocation9 + $0x168] sm:$0xff]
      %v3373 = vld [vmem:[#allocation9 + $0x170] sm:$0xff]
      %v3374 = vld [vmem:[#allocation9 + $0x178] sm:$0xff]
      %v3375 = vld [vmem:[#allocation9 + $0x180] sm:$0xff]
      %v3376 = vld [vmem:[#allocation9 + $0x188] sm:$0xff]
      %v3377 = vld [vmem:[#allocation9 + $0x190] sm:$0xff]
      %v3378 = vld [vmem:[#allocation9 + $0x198] sm:$0xff]
      %v3379 = vld [vmem:[#allocation9 + $0x1a0] sm:$0xff]
      %v3380 = vld [vmem:[#allocation9 + $0x1a8] sm:$0xff]
      %v3381 = vld [vmem:[#allocation9 + $0x1b0] sm:$0xff]
      %v3382 = vld [vmem:[#allocation9 + $0x1b8] sm:$0xff]
      %v3383 = vld [vmem:[#allocation9 + $0x1c0] sm:$0xff]
      %v3384 = vld [vmem:[#allocation9 + $0x1c8] sm:$0xff]
      %v3385 = vld [vmem:[#allocation9 + $0x1d0] sm:$0xff]
      %v3386 = vld [vmem:[#allocation9 + $0x1d8] sm:$0xff]
      %v3387 = vld [vmem:[#allocation9 + $0x1e0] sm:$0xff]
      %v3388 = vld [vmem:[#allocation9 + $0x1e8] sm:$0xff]
      %v3389 = vld [vmem:[#allocation9 + $0x1f0] sm:$0xff]
      %v3390 = vld [vmem:[#allocation9 + $0x1f8] sm:$0xff]
      %v3391 = vld [vmem:[#allocation10] sm:$0xf]
      %v3392 = vld [vmem:[#allocation14] sm:$0xff]
      %v3393 = vld [vmem:[#allocation14 + $0x8] sm:$0xff]
      %v3394 = vld [vmem:[#allocation14 + $0x10] sm:$0xff]
      %v3395 = vld [vmem:[#allocation14 + $0x18] sm:$0xff]
      %v3397 = vlaneseq
      %v3398 = vshrl.u32 %v3397, 7
      %v3399 = vsub.s32 0, %v3398
      %v3400 = vrot.slane %v3391, %v3399
      %v3401 = vlaneseq
      %v3402 = vshrl.u32 %v3401, 7
      %v3403 = vsub.s32 1, %v3402
      %v3404 = vrot.slane %v3391, %v3403
      %v3405 = vlaneseq
      %v3406 = vshrl.u32 %v3405, 7
      %v3407 = vsub.s32 2, %v3406
      %v3408 = vrot.slane %v3391, %v3407
      %v3409 = vlaneseq
      %v3410 = vshrl.u32 %v3409, 7
      %v3411 = vsub.s32 3, %v3410
      %v3412 = vrot.slane %v3391, %v3411
      %3417 = vmatprep.subr.mxu0 %v3264
      %3418 = vmatpush1.msra.mxu0 %v3263
      %3419 = vmatprep.subr.mxu0 %v3268
      %3420 = vmatpush1.msra.mxu0 %v3267
      %3421 = vmatprep.subr.mxu0 %v3272
      %3422 = vmatpush1.msra.mxu0 %v3271
      %3423 = vmatprep.subr.mxu0 %v3276
      %3424 = vmatpush1.msra.mxu0 %v3275
      %3425 = vmatprep.subr.mxu0 %v3280
      %3426 = vmatpush1.msra.mxu0 %v3279
      %3427 = vmatprep.subr.mxu0 %v3284
      %3428 = vmatpush1.msra.mxu0 %v3283
      %3429 = vmatprep.subr.mxu0 %v3288
      %3430 = vmatpush1.msra.mxu0 %v3287
      %3431 = vmatprep.subr.mxu0 %v3292
      %3432 = vmatpush1.msra.mxu0 %v3291
      %3433 = vmatprep.subr.mxu0 %v3296
      %3434 = vmatpush1.msra.mxu0 %v3295
      %3435 = vmatprep.subr.mxu0 %v3300
      %3436 = vmatpush1.msra.mxu0 %v3299
      %3437 = vmatprep.subr.mxu0 %v3304
      %3438 = vmatpush1.msra.mxu0 %v3303
      %3439 = vmatprep.subr.mxu0 %v3308
      %3440 = vmatpush1.msra.mxu0 %v3307
      %3441 = vmatprep.subr.mxu0 %v3312
      %3442 = vmatpush1.msra.mxu0 %v3311
      %3443 = vmatprep.subr.mxu0 %v3316
      %3444 = vmatpush1.msra.mxu0 %v3315
      %3445 = vmatprep.subr.mxu0 %v3320
      %3446 = vmatpush1.msra.mxu0 %v3319
      %3447 = vmatprep.subr.mxu0 %v3324
      %3448 = vmatpush1.msra.mxu0 %v3323
      %3449 = vmatprep.subr.mxu0 0.0
      %3450 = vmatpush1.msra.mxu0 0.0
      %3451 = vmatprep.subr.mxu0 0.0
      %3452 = vmatpush1.msra.mxu0 0.0
      %3453 = vmatprep.subr.mxu0 0.0
      %3454 = vmatpush1.msra.mxu0 0.0
      %3455 = vmatprep.subr.mxu0 0.0
      %3456 = vmatpush1.msra.mxu0 0.0
      %3457 = vmatprep.subr.mxu0 0.0
      %3458 = vmatpush1.msra.mxu0 0.0
      %3459 = vmatprep.subr.mxu0 0.0
      %3460 = vmatpush1.msra.mxu0 0.0
      %3461 = vmatprep.subr.mxu0 0.0
      %3462 = vmatpush1.msra.mxu0 0.0
      %3463 = vmatprep.subr.mxu0 0.0
      %3464 = vmatpush1.msra.mxu0 0.0
      %3465 = vmatprep.subr.mxu0 0.0
      %3466 = vmatpush1.msra.mxu0 0.0
      %3467 = vmatprep.subr.mxu0 0.0
      %3468 = vmatpush1.msra.mxu0 0.0
      %3469 = vmatprep.subr.mxu0 0.0
      %3470 = vmatpush1.msra.mxu0 0.0
      %3471 = vmatprep.subr.mxu0 0.0
      %3472 = vmatpush1.msra.mxu0 0.0
      %3473 = vmatprep.subr.mxu0 0.0
      %3474 = vmatpush1.msra.mxu0 0.0
      %3475 = vmatprep.subr.mxu0 0.0
      %3476 = vmatpush1.msra.mxu0 0.0
      %3477 = vmatprep.subr.mxu0 0.0
      %3478 = vmatpush1.msra.mxu0 0.0
      %3479 = vmatprep.subr.mxu0 0.0
      %3480 = vmatpush1.msra.mxu0 0.0
      %3481 = vmatprep.mubr.f32.mxu0 0.0
      %3482 = vmatmul.mubr.f32.gmra.mrb[0].mxu0 %v3392
      %v3483 = vpop.f32.mrb[0].mxu0
      %v3484 = vadd.f32 %v3400, %v3483
      %v3485 = vpop.f32.mrb[0].mxu0
      %v3486 = vadd.f32 %v3404, %v3485
      %3487 = vmatprep.mubr.f32.mxu0 0.0
      %3488 = vmatmul.mubr.f32.gmra.mrb[0].mxu0 %v3393
      %v3489 = vpop.f32.mrb[0].mxu0
      %v3490 = vadd.f32 %v3400, %v3489
      %v3491 = vpop.f32.mrb[0].mxu0
      %v3492 = vadd.f32 %v3404, %v3491
      %3493 = vmatprep.mubr.f32.mxu0 0.0
      %3494 = vmatmul.mubr.f32.gmra.mrb[0].mxu0 %v3394
      %v3495 = vpop.f32.mrb[0].mxu0
      %v3496 = vadd.f32 %v3400, %v3495
      %v3497 = vpop.f32.mrb[0].mxu0
      %v3498 = vadd.f32 %v3404, %v3497
      %3499 = vmatprep.mubr.f32.mxu0 0.0
      %3500 = vmatmul.mubr.f32.gmra.mrb[0].mxu0 %v3395
      %v3501 = vpop.f32.mrb[0].mxu0
      %v3502 = vadd.f32 %v3400, %v3501
      %v3503 = vpop.f32.mrb[0].mxu0
      %v3504 = vadd.f32 %v3404, %v3503
      %3505 = vdwg.mxu0
      %3506 = vmatprep.subr.mxu0 %v3266
      %3507 = vmatpush1.msra.mxu0 %v3265
      %3508 = vmatprep.subr.mxu0 %v3270
      %3509 = vmatpush1.msra.mxu0 %v3269
      %3510 = vmatprep.subr.mxu0 %v3274
      %3511 = vmatpush1.msra.mxu0 %v3273
      %3512 = vmatprep.subr.mxu0 %v3278
      %3513 = vmatpush1.msra.mxu0 %v3277
      %3514 = vmatprep.subr.mxu0 %v3282
      %3515 = vmatpush1.msra.mxu0 %v3281
      %3516 = vmatprep.subr.mxu0 %v3286
      %3517 = vmatpush1.msra.mxu0 %v3285
      %3518 = vmatprep.subr.mxu0 %v3290
      %3519 = vmatpush1.msra.mxu0 %v3289
      %3520 = vmatprep.subr.mxu0 %v3294
      %3521 = vmatpush1.msra.mxu0 %v3293
      %3522 = vmatprep.subr.mxu0 %v3298
      %3523 = vmatpush1.msra.mxu0 %v3297
      %3524 = vmatprep.subr.mxu0 %v3302
      %3525 = vmatpush1.msra.mxu0 %v3301
      %3526 = vmatprep.subr.mxu0 %v3306
      %3527 = vmatpush1.msra.mxu0 %v3305
      %3528 = vmatprep.subr.mxu0 %v3310
      %3529 = vmatpush1.msra.mxu0 %v3309
      %3530 = vmatprep.subr.mxu0 %v3314
      %3531 = vmatpush1.msra.mxu0 %v3313
      %3532 = vmatprep.subr.mxu0 %v3318
      %3533 = vmatpush1.msra.mxu0 %v3317
      %3534 = vmatprep.subr.mxu0 %v3322
      %3535 = vmatpush1.msra.mxu0 %v3321
      %3536 = vmatprep.subr.mxu0 %v3326
      %3537 = vmatpush1.msra.mxu0 %v3325
      %3538 = vmatprep.subr.mxu0 0.0
      %3539 = vmatpush1.msra.mxu0 0.0
      %3540 = vmatprep.subr.mxu0 0.0
      %3541 = vmatpush1.msra.mxu0 0.0
      %3542 = vmatprep.subr.mxu0 0.0
      %3543 = vmatpush1.msra.mxu0 0.0
      %3544 = vmatprep.subr.mxu0 0.0
      %3545 = vmatpush1.msra.mxu0 0.0
      %3546 = vmatprep.subr.mxu0 0.0
      %3547 = vmatpush1.msra.mxu0 0.0
      %3548 = vmatprep.subr.mxu0 0.0
      %3549 = vmatpush1.msra.mxu0 0.0
      %3550 = vmatprep.subr.mxu0 0.0
      %3551 = vmatpush1.msra.mxu0 0.0
      %3552 = vmatprep.subr.mxu0 0.0
      %3553 = vmatpush1.msra.mxu0 0.0
      %3554 = vmatprep.subr.mxu0 0.0
      %3555 = vmatpush1.msra.mxu0 0.0
      %3556 = vmatprep.subr.mxu0 0.0
      %3557 = vmatpush1.msra.mxu0 0.0
      %3558 = vmatprep.subr.mxu0 0.0
      %3559 = vmatpush1.msra.mxu0 0.0
      %3560 = vmatprep.subr.mxu0 0.0
      %3561 = vmatpush1.msra.mxu0 0.0
      %3562 = vmatprep.subr.mxu0 0.0
      %3563 = vmatpush1.msra.mxu0 0.0
      %3564 = vmatprep.subr.mxu0 0.0
      %3565 = vmatpush1.msra.mxu0 0.0
      %3566 = vmatprep.subr.mxu0 0.0
      %3567 = vmatpush1.msra.mxu0 0.0
      %3568 = vmatprep.subr.mxu0 0.0
      %3569 = vmatpush1.msra.mxu0 0.0
      %3570 = vmatprep.mubr.f32.mxu0 0.0
      %3571 = vmatmul.mubr.f32.gmra.mrb[0].mxu0 %v3392
      %v3572 = vpop.f32.mrb[0].mxu0
      %v3573 = vadd.f32 %v3408, %v3572
      %v3574 = vpop.f32.mrb[0].mxu0
      %v3575 = vadd.f32 %v3412, %v3574
      %3576 = vmatprep.mubr.f32.mxu0 0.0
      %3577 = vmatmul.mubr.f32.gmra.mrb[0].mxu0 %v3393
      %v3578 = vpop.f32.mrb[0].mxu0
      %v3579 = vadd.f32 %v3408, %v3578
      %v3580 = vpop.f32.mrb[0].mxu0
      %v3581 = vadd.f32 %v3412, %v3580
      %3582 = vmatprep.mubr.f32.mxu0 0.0
      %3583 = vmatmul.mubr.f32.gmra.mrb[0].mxu0 %v3394
      %v3584 = vpop.f32.mrb[0].mxu0
      %v3585 = vadd.f32 %v3408, %v3584
      %v3586 = vpop.f32.mrb[0].mxu0
      %v3587 = vadd.f32 %v3412, %v3586
      %3588 = vmatprep.mubr.f32.mxu0 0.0
      %3589 = vmatmul.mubr.f32.gmra.mrb[0].mxu0 %v3395
      %v3590 = vpop.f32.mrb[0].mxu0
      %v3591 = vadd.f32 %v3408, %v3590
      %v3592 = vpop.f32.mrb[0].mxu0
      %v3593 = vadd.f32 %v3412, %v3592
      %3594 = vdwg.mxu0
      %3595 = vst [vmem:[#allocation13] sm:$0xff] %v3484
      %3596 = vst [vmem:[#allocation13 + $0x8] sm:$0xff] %v3486
      %3597 = vst [vmem:[#allocation13 + $0x10] sm:$0xff] %v3573
      %3598 = vst [vmem:[#allocation13 + $0x18] sm:$0xff] %v3575
      %3599 = vst [vmem:[#allocation13 + $0x20] sm:$0xff] %v3490
      %3600 = vst [vmem:[#allocation13 + $0x28] sm:$0xff] %v3492
      %3601 = vst [vmem:[#allocation13 + $0x30] sm:$0xff] %v3579
      %3602 = vst [vmem:[#allocation13 + $0x38] sm:$0xff] %v3581
      %3603 = vst [vmem:[#allocation13 + $0x40] sm:$0xff] %v3496
      %3604 = vst [vmem:[#allocation13 + $0x48] sm:$0xff] %v3498
      %3605 = vst [vmem:[#allocation13 + $0x50] sm:$0xff] %v3585
      %3606 = vst [vmem:[#allocation13 + $0x58] sm:$0xff] %v3587
      %3607 = vst [vmem:[#allocation13 + $0x60] sm:$0xff] %v3502
      %3608 = vst [vmem:[#allocation13 + $0x68] sm:$0xff] %v3504
      %3609 = vst [vmem:[#allocation13 + $0x70] sm:$0xff] %v3591
      %3610 = vst [vmem:[#allocation13 + $0x78] sm:$0xff] %v3593
      %s3611 = scalar_lea.vmem [#allocation11], 16
      %v3612 = vld [vmem:[%s3611] sm:$0xff]
      %s3613 = scalar_lea.vmem [#allocation12], 16
      %v3614 = vld [vmem:[%s3613] sm:$0xff]
      %v3615 = vld [vmem:[#allocation13] sm:$0xff]
      %v3616 = vld [vmem:[#allocation13 + $0x8] sm:$0xff]
      %v3617 = vld [vmem:[#allocation13 + $0x10] sm:$0xff]
      %v3618 = vld [vmem:[#allocation13 + $0x18] sm:$0xff]
      %3619 = vmatprep.subr.mxu0 %v3328
      %3620 = vmatpush1.msra.mxu0 %v3327
      %3621 = vmatprep.subr.mxu0 %v3332
      %3622 = vmatpush1.msra.mxu0 %v3331
      %3623 = vmatprep.subr.mxu0 %v3336
      %3624 = vmatpush1.msra.mxu0 %v3335
      %3625 = vmatprep.subr.mxu0 %v3340
      %3626 = vmatpush1.msra.mxu0 %v3339
      %3627 = vmatprep.subr.mxu0 %v3344
      %3628 = vmatpush1.msra.mxu0 %v3343
      %3629 = vmatprep.subr.mxu0 %v3348
      %3630 = vmatpush1.msra.mxu0 %v3347
      %3631 = vmatprep.subr.mxu0 %v3352
      %3632 = vmatpush1.msra.mxu0 %v3351
      %3633 = vmatprep.subr.mxu0 %v3356
      %3634 = vmatpush1.msra.mxu0 %v3355
      %3635 = vmatprep.subr.mxu0 %v3360
      %3636 = vmatpush1.msra.mxu0 %v3359
      %3637 = vmatprep.subr.mxu0 %v3364
      %3638 = vmatpush1.msra.mxu0 %v3363
      %3639 = vmatprep.subr.mxu0 %v3368
      %3640 = vmatpush1.msra.mxu0 %v3367
      %3641 = vmatprep.subr.mxu0 %v3372
      %3642 = vmatpush1.msra.mxu0 %v3371
      %3643 = vmatprep.subr.mxu0 %v3376
      %3644 = vmatpush1.msra.mxu0 %v3375
      %3645 = vmatprep.subr.mxu0 %v3380
      %3646 = vmatpush1.msra.mxu0 %v3379
      %3647 = vmatprep.subr.mxu0 %v3384
      %3648 = vmatpush1.msra.mxu0 %v3383
      %3649 = vmatprep.subr.mxu0 %v3388
      %3650 = vmatpush1.msra.mxu0 %v3387
      %3651 = vmatprep.subr.mxu0 0.0
      %3652 = vmatpush1.msra.mxu0 0.0
      %3653 = vmatprep.subr.mxu0 0.0
      %3654 = vmatpush1.msra.mxu0 0.0
      %3655 = vmatprep.subr.mxu0 0.0
      %3656 = vmatpush1.msra.mxu0 0.0
      %3657 = vmatprep.subr.mxu0 0.0
      %3658 = vmatpush1.msra.mxu0 0.0
      %3659 = vmatprep.subr.mxu0 0.0
      %3660 = vmatpush1.msra.mxu0 0.0
      %3661 = vmatprep.subr.mxu0 0.0
      %3662 = vmatpush1.msra.mxu0 0.0
      %3663 = vmatprep.subr.mxu0 0.0
      %3664 = vmatpush1.msra.mxu0 0.0
      %3665 = vmatprep.subr.mxu0 0.0
      %3666 = vmatpush1.msra.mxu0 0.0
      %3667 = vmatprep.subr.mxu0 0.0
      %3668 = vmatpush1.msra.mxu0 0.0
      %3669 = vmatprep.subr.mxu0 0.0
      %3670 = vmatpush1.msra.mxu0 0.0
      %3671 = vmatprep.subr.mxu0 0.0
      %3672 = vmatpush1.msra.mxu0 0.0
      %3673 = vmatprep.subr.mxu0 0.0
      %3674 = vmatpush1.msra.mxu0 0.0
      %3675 = vmatprep.subr.mxu0 0.0
      %3676 = vmatpush1.msra.mxu0 0.0
      %3677 = vmatprep.subr.mxu0 0.0
      %3678 = vmatpush1.msra.mxu0 0.0
      %3679 = vmatprep.subr.mxu0 0.0
      %3680 = vmatpush1.msra.mxu0 0.0
      %3681 = vmatprep.subr.mxu0 0.0
      %3682 = vmatpush1.msra.mxu0 0.0
      %3683 = vmatprep.mubr.f32.mxu0 0.0
      %3684 = vmatmul.mubr.f32.gmra.mrb[0].mxu0 %v3612
      %v3685 = vpop.f32.mrb[0].mxu0
      %v3686 = vadd.f32 0.0, %v3685
      %v3687 = vpop.f32.mrb[0].mxu0
      %v3688 = vadd.f32 0.0, %v3687
      %3689 = vdwg.mxu0
      %3690 = vmatprep.subr.mxu0 %v3330
      %3691 = vmatpush1.msra.mxu0 %v3329
      %3692 = vmatprep.subr.mxu0 %v3334
      %3693 = vmatpush1.msra.mxu0 %v3333
      %3694 = vmatprep.subr.mxu0 %v3338
      %3695 = vmatpush1.msra.mxu0 %v3337
      %3696 = vmatprep.subr.mxu0 %v3342
      %3697 = vmatpush1.msra.mxu0 %v3341
      %3698 = vmatprep.subr.mxu0 %v3346
      %3699 = vmatpush1.msra.mxu0 %v3345
      %3700 = vmatprep.subr.mxu0 %v3350
      %3701 = vmatpush1.msra.mxu0 %v3349
      %3702 = vmatprep.subr.mxu0 %v3354
      %3703 = vmatpush1.msra.mxu0 %v3353
      %3704 = vmatprep.subr.mxu0 %v3358
      %3705 = vmatpush1.msra.mxu0 %v3357
      %3706 = vmatprep.subr.mxu0 %v3362
      %3707 = vmatpush1.msra.mxu0 %v3361
      %3708 = vmatprep.subr.mxu0 %v3366
      %3709 = vmatpush1.msra.mxu0 %v3365
      %3710 = vmatprep.subr.mxu0 %v3370
      %3711 = vmatpush1.msra.mxu0 %v3369
      %3712 = vmatprep.subr.mxu0 %v3374
      %3713 = vmatpush1.msra.mxu0 %v3373
      %3714 = vmatprep.subr.mxu0 %v3378
      %3715 = vmatpush1.msra.mxu0 %v3377
      %3716 = vmatprep.subr.mxu0 %v3382
      %3717 = vmatpush1.msra.mxu0 %v3381
      %3718 = vmatprep.subr.mxu0 %v3386
      %3719 = vmatpush1.msra.mxu0 %v3385
      %3720 = vmatprep.subr.mxu0 %v3390
      %3721 = vmatpush1.msra.mxu0 %v3389
      %3722 = vmatprep.subr.mxu0 0.0
      %3723 = vmatpush1.msra.mxu0 0.0
      %3724 = vmatprep.subr.mxu0 0.0
      %3725 = vmatpush1.msra.mxu0 0.0
      %3726 = vmatprep.subr.mxu0 0.0
      %3727 = vmatpush1.msra.mxu0 0.0
      %3728 = vmatprep.subr.mxu0 0.0
      %3729 = vmatpush1.msra.mxu0 0.0
      %3730 = vmatprep.subr.mxu0 0.0
      %3731 = vmatpush1.msra.mxu0 0.0
      %3732 = vmatprep.subr.mxu0 0.0
      %3733 = vmatpush1.msra.mxu0 0.0
      %3734 = vmatprep.subr.mxu0 0.0
      %3735 = vmatpush1.msra.mxu0 0.0
      %3736 = vmatprep.subr.mxu0 0.0
      %3737 = vmatpush1.msra.mxu0 0.0
      %3738 = vmatprep.subr.mxu0 0.0
      %3739 = vmatpush1.msra.mxu0 0.0
      %3740 = vmatprep.subr.mxu0 0.0
      %3741 = vmatpush1.msra.mxu0 0.0
      %3742 = vmatprep.subr.mxu0 0.0
      %3743 = vmatpush1.msra.mxu0 0.0
      %3744 = vmatprep.subr.mxu0 0.0
      %3745 = vmatpush1.msra.mxu0 0.0
      %3746 = vmatprep.subr.mxu0 0.0
      %3747 = vmatpush1.msra.mxu0 0.0
      %3748 = vmatprep.subr.mxu0 0.0
      %3749 = vmatpush1.msra.mxu0 0.0
      %3750 = vmatprep.subr.mxu0 0.0
      %3751 = vmatpush1.msra.mxu0 0.0
      %3752 = vmatprep.subr.mxu0 0.0
      %3753 = vmatpush1.msra.mxu0 0.0
      %3754 = vmatprep.mubr.f32.mxu0 0.0
      %3755 = vmatmul.mubr.f32.gmra.mrb[0].mxu0 %v3612
      %v3756 = vpop.f32.mrb[0].mxu0
      %v3757 = vadd.f32 0.0, %v3756
      %v3758 = vpop.f32.mrb[0].mxu0
      %v3759 = vadd.f32 0.0, %v3758
      %3760 = vdwg.mxu0
      %v3761 = vadd.f32 %v3615, %v3686
      %v3762 = vadd.f32 %v3616, %v3688
      %v3763 = vadd.f32 %v3617, %v3757
      %v3764 = vadd.f32 %v3618, %v3759
      %v3765 = vxor.u32 %v3761, 2147483648
      %v3766 = vmul.f32 %v3765, 1.442695
      %v3767 = vpow.pop %v3766
      %v3768 = vadd.f32 %v3767, 1.0
      %v3769 = vrcp.pop %v3768
      %v3770 = vmul.f32 1.0, %v3769
      %v3771 = vxor.u32 %v3762, 2147483648
      %v3772 = vmul.f32 %v3771, 1.442695
      %v3773 = vpow.pop %v3772
      %v3774 = vadd.f32 %v3773, 1.0
      %v3775 = vrcp.pop %v3774
      %v3776 = vmul.f32 1.0, %v3775
      %v3777 = vtanh.pop %v3763
      %v3778 = vxor.u32 %v3764, 2147483648
      %v3779 = vmul.f32 %v3778, 1.442695
      %v3780 = vpow.pop %v3779
      %v3781 = vadd.f32 %v3780, 1.0
      %v3782 = vrcp.pop %v3781
      %v3783 = vmul.f32 1.0, %v3782
      %v3784 = vmul.f32 %v3776, %v3614
      %v3785 = vmul.f32 %v3770, %v3777
      %v3786 = vadd.f32 %v3784, %v3785
      %v3787 = vtanh.pop %v3786
      %v3788 = vmul.f32 %v3783, %v3787
      %v3789 = vld [vmem:[#allocation13 + $0x20] sm:$0xff]
      %v3790 = vld [vmem:[#allocation13 + $0x28] sm:$0xff]
      %v3791 = vld [vmem:[#allocation13 + $0x30] sm:$0xff]
      %v3792 = vld [vmem:[#allocation13 + $0x38] sm:$0xff]
      %3793 = vmatprep.subr.mxu0 %v3328
      %3794 = vmatpush1.msra.mxu0 %v3327
      %3795 = vmatprep.subr.mxu0 %v3332
      %3796 = vmatpush1.msra.mxu0 %v3331
      %3797 = vmatprep.subr.mxu0 %v3336
      %3798 = vmatpush1.msra.mxu0 %v3335
      %3799 = vmatprep.subr.mxu0 %v3340
      %3800 = vmatpush1.msra.mxu0 %v3339
      %3801 = vmatprep.subr.mxu0 %v3344
      %3802 = vmatpush1.msra.mxu0 %v3343
      %3803 = vmatprep.subr.mxu0 %v3348
      %3804 = vmatpush1.msra.mxu0 %v3347
      %3805 = vmatprep.subr.mxu0 %v3352
      %3806 = vmatpush1.msra.mxu0 %v3351
      %3807 = vmatprep.subr.mxu0 %v3356
      %3808 = vmatpush1.msra.mxu0 %v3355
      %3809 = vmatprep.subr.mxu0 %v3360
      %3810 = vmatpush1.msra.mxu0 %v3359
      %3811 = vmatprep.subr.mxu0 %v3364
      %3812 = vmatpush1.msra.mxu0 %v3363
      %3813 = vmatprep.subr.mxu0 %v3368
      %3814 = vmatpush1.msra.mxu0 %v3367
      %3815 = vmatprep.subr.mxu0 %v3372
      %3816 = vmatpush1.msra.mxu0 %v3371
      %3817 = vmatprep.subr.mxu0 %v3376
      %3818 = vmatpush1.msra.mxu0 %v3375
      %3819 = vmatprep.subr.mxu0 %v3380
      %3820 = vmatpush1.msra.mxu0 %v3379
      %3821 = vmatprep.subr.mxu0 %v3384
      %3822 = vmatpush1.msra.mxu0 %v3383
      %3823 = vmatprep.subr.mxu0 %v3388
      %3824 = vmatpush1.msra.mxu0 %v3387
      %3825 = vmatprep.subr.mxu0 0.0
      %3826 = vmatpush1.msra.mxu0 0.0
      %3827 = vmatprep.subr.mxu0 0.0
      %3828 = vmatpush1.msra.mxu0 0.0
      %3829 = vmatprep.subr.mxu0 0.0
      %3830 = vmatpush1.msra.mxu0 0.0
      %3831 = vmatprep.subr.mxu0 0.0
      %3832 = vmatpush1.msra.mxu0 0.0
      %3833 = vmatprep.subr.mxu0 0.0
      %3834 = vmatpush1.msra.mxu0 0.0
      %3835 = vmatprep.subr.mxu0 0.0
      %3836 = vmatpush1.msra.mxu0 0.0
      %3837 = vmatprep.subr.mxu0 0.0
      %3838 = vmatpush1.msra.mxu0 0.0
      %3839 = vmatprep.subr.mxu0 0.0
      %3840 = vmatpush1.msra.mxu0 0.0
      %3841 = vmatprep.subr.mxu0 0.0
      %3842 = vmatpush1.msra.mxu0 0.0
      %3843 = vmatprep.subr.mxu0 0.0
      %3844 = vmatpush1.msra.mxu0 0.0
      %3845 = vmatprep.subr.mxu0 0.0
      %3846 = vmatpush1.msra.mxu0 0.0
      %3847 = vmatprep.subr.mxu0 0.0
      %3848 = vmatpush1.msra.mxu0 0.0
      %3849 = vmatprep.subr.mxu0 0.0
      %3850 = vmatpush1.msra.mxu0 0.0
      %3851 = vmatprep.subr.mxu0 0.0
      %3852 = vmatpush1.msra.mxu0 0.0
      %3853 = vmatprep.subr.mxu0 0.0
      %3854 = vmatpush1.msra.mxu0 0.0
      %3855 = vmatprep.subr.mxu0 0.0
      %3856 = vmatpush1.msra.mxu0 0.0
      %3857 = vmatprep.mubr.f32.mxu0 0.0
      %3858 = vmatmul.mubr.f32.gmra.mrb[0].mxu0 %v3788
      %v3859 = vpop.f32.mrb[0].mxu0
      %v3860 = vadd.f32 0.0, %v3859
      %v3861 = vpop.f32.mrb[0].mxu0
      %v3862 = vadd.f32 0.0, %v3861
      %3863 = vdwg.mxu0
      %3864 = vmatprep.subr.mxu0 %v3330
      %3865 = vmatpush1.msra.mxu0 %v3329
      %3866 = vmatprep.subr.mxu0 %v3334
      %3867 = vmatpush1.msra.mxu0 %v3333
      %3868 = vmatprep.subr.mxu0 %v3338
      %3869 = vmatpush1.msra.mxu0 %v3337
      %3870 = vmatprep.subr.mxu0 %v3342
      %3871 = vmatpush1.msra.mxu0 %v3341
      %3872 = vmatprep.subr.mxu0 %v3346
      %3873 = vmatpush1.msra.mxu0 %v3345
      %3874 = vmatprep.subr.mxu0 %v3350
      %3875 = vmatpush1.msra.mxu0 %v3349
      %3876 = vmatprep.subr.mxu0 %v3354
      %3877 = vmatpush1.msra.mxu0 %v3353
      %3878 = vmatprep.subr.mxu0 %v3358
      %3879 = vmatpush1.msra.mxu0 %v3357
      %3880 = vmatprep.subr.mxu0 %v3362
      %3881 = vmatpush1.msra.mxu0 %v3361
      %3882 = vmatprep.subr.mxu0 %v3366
      %3883 = vmatpush1.msra.mxu0 %v3365
      %3884 = vmatprep.subr.mxu0 %v3370
      %3885 = vmatpush1.msra.mxu0 %v3369
      %3886 = vmatprep.subr.mxu0 %v3374
      %3887 = vmatpush1.msra.mxu0 %v3373
      %3888 = vmatprep.subr.mxu0 %v3378
      %3889 = vmatpush1.msra.mxu0 %v3377
      %3890 = vmatprep.subr.mxu0 %v3382
      %3891 = vmatpush1.msra.mxu0 %v3381
      %3892 = vmatprep.subr.mxu0 %v3386
      %3893 = vmatpush1.msra.mxu0 %v3385
      %3894 = vmatprep.subr.mxu0 %v3390
      %3895 = vmatpush1.msra.mxu0 %v3389
      %3896 = vmatprep.subr.mxu0 0.0
      %3897 = vmatpush1.msra.mxu0 0.0
      %3898 = vmatprep.subr.mxu0 0.0
      %3899 = vmatpush1.msra.mxu0 0.0
      %3900 = vmatprep.subr.mxu0 0.0
      %3901 = vmatpush1.msra.mxu0 0.0
      %3902 = vmatprep.subr.mxu0 0.0
      %3903 = vmatpush1.msra.mxu0 0.0
      %3904 = vmatprep.subr.mxu0 0.0
      %3905 = vmatpush1.msra.mxu0 0.0
      %3906 = vmatprep.subr.mxu0 0.0
      %3907 = vmatpush1.msra.mxu0 0.0
      %3908 = vmatprep.subr.mxu0 0.0
      %3909 = vmatpush1.msra.mxu0 0.0
      %3910 = vmatprep.subr.mxu0 0.0
      %3911 = vmatpush1.msra.mxu0 0.0
      %3912 = vmatprep.subr.mxu0 0.0
      %3913 = vmatpush1.msra.mxu0 0.0
      %3914 = vmatprep.subr.mxu0 0.0
      %3915 = vmatpush1.msra.mxu0 0.0
      %3916 = vmatprep.subr.mxu0 0.0
      %3917 = vmatpush1.msra.mxu0 0.0
      %3918 = vmatprep.subr.mxu0 0.0
      %3919 = vmatpush1.msra.mxu0 0.0
      %3920 = vmatprep.subr.mxu0 0.0
      %3921 = vmatpush1.msra.mxu0 0.0
      %3922 = vmatprep.subr.mxu0 0.0
      %3923 = vmatpush1.msra.mxu0 0.0
      %3924 = vmatprep.subr.mxu0 0.0
      %3925 = vmatpush1.msra.mxu0 0.0
      %3926 = vmatprep.subr.mxu0 0.0
      %3927 = vmatpush1.msra.mxu0 0.0
      %3928 = vmatprep.mubr.f32.mxu0 0.0
      %3929 = vmatmul.mubr.f32.gmra.mrb[0].mxu0 %v3788
      %v3930 = vpop.f32.mrb[0].mxu0
      %v3931 = vadd.f32 0.0, %v3930
      %v3932 = vpop.f32.mrb[0].mxu0
      %v3933 = vadd.f32 0.0, %v3932
      %3934 = vdwg.mxu0
      %v3935 = vadd.f32 %v3789, %v3860
      %v3936 = vadd.f32 %v3790, %v3862
      %v3937 = vadd.f32 %v3791, %v3931
      %v3938 = vadd.f32 %v3792, %v3933
      %v3939 = vxor.u32 %v3935, 2147483648
      %v3940 = vmul.f32 %v3939, 1.442695
      %v3941 = vpow.pop %v3940
      %v3942 = vadd.f32 %v3941, 1.0
      %v3943 = vrcp.pop %v3942
      %v3944 = vmul.f32 1.0, %v3943
      %v3945 = vxor.u32 %v3936, 2147483648
      %v3946 = vmul.f32 %v3945, 1.442695
      %v3947 = vpow.pop %v3946
      %v3948 = vadd.f32 %v3947, 1.0
      %v3949 = vrcp.pop %v3948
      %v3950 = vmul.f32 1.0, %v3949
      %v3951 = vtanh.pop %v3937
      %v3952 = vxor.u32 %v3938, 2147483648
      %v3953 = vmul.f32 %v3952, 1.442695
      %v3954 = vpow.pop %v3953
      %v3955 = vadd.f32 %v3954, 1.0
      %v3956 = vrcp.pop %v3955
      %v3957 = vmul.f32 1.0, %v3956
      %v3958 = vmul.f32 %v3950, %v3786
      %v3959 = vmul.f32 %v3944, %v3951
      %v3960 = vadd.f32 %v3958, %v3959
      %v3961 = vtanh.pop %v3960
      %v3962 = vmul.f32 %v3957, %v3961
      %v3963 = vld [vmem:[#allocation13 + $0x40] sm:$0xff]
      %v3964 = vld [vmem:[#allocation13 + $0x48] sm:$0xff]
      %v3965 = vld [vmem:[#allocation13 + $0x50] sm:$0xff]
      %v3966 = vld [vmem:[#allocation13 + $0x58] sm:$0xff]
      %3967 = vmatprep.subr.mxu0 %v3328
      %3968 = vmatpush1.msra.mxu0 %v3327
      %3969 = vmatprep.subr.mxu0 %v3332
      %3970 = vmatpush1.msra.mxu0 %v3331
      %3971 = vmatprep.subr.mxu0 %v3336
      %3972 = vmatpush1.msra.mxu0 %v3335
      %3973 = vmatprep.subr.mxu0 %v3340
      %3974 = vmatpush1.msra.mxu0 %v3339
      %3975 = vmatprep.subr.mxu0 %v3344
      %3976 = vmatpush1.msra.mxu0 %v3343
      %3977 = vmatprep.subr.mxu0 %v3348
      %3978 = vmatpush1.msra.mxu0 %v3347
      %3979 = vmatprep.subr.mxu0 %v3352
      %3980 = vmatpush1.msra.mxu0 %v3351
      %3981 = vmatprep.subr.mxu0 %v3356
      %3982 = vmatpush1.msra.mxu0 %v3355
      %3983 = vmatprep.subr.mxu0 %v3360
      %3984 = vmatpush1.msra.mxu0 %v3359
      %3985 = vmatprep.subr.mxu0 %v3364
      %3986 = vmatpush1.msra.mxu0 %v3363
      %3987 = vmatprep.subr.mxu0 %v3368
      %3988 = vmatpush1.msra.mxu0 %v3367
      %3989 = vmatprep.subr.mxu0 %v3372
      %3990 = vmatpush1.msra.mxu0 %v3371
      %3991 = vmatprep.subr.mxu0 %v3376
      %3992 = vmatpush1.msra.mxu0 %v3375
      %3993 = vmatprep.subr.mxu0 %v3380
      %3994 = vmatpush1.msra.mxu0 %v3379
      %3995 = vmatprep.subr.mxu0 %v3384
      %3996 = vmatpush1.msra.mxu0 %v3383
      %3997 = vmatprep.subr.mxu0 %v3388
      %3998 = vmatpush1.msra.mxu0 %v3387
      %3999 = vmatprep.subr.mxu0 0.0
      %4000 = vmatpush1.msra.mxu0 0.0
      %4001 = vmatprep.subr.mxu0 0.0
      %4002 = vmatpush1.msra.mxu0 0.0
      %4003 = vmatprep.subr.mxu0 0.0
      %4004 = vmatpush1.msra.mxu0 0.0
      %4005 = vmatprep.subr.mxu0 0.0
      %4006 = vmatpush1.msra.mxu0 0.0
      %4007 = vmatprep.subr.mxu0 0.0
      %4008 = vmatpush1.msra.mxu0 0.0
      %4009 = vmatprep.subr.mxu0 0.0
      %4010 = vmatpush1.msra.mxu0 0.0
      %4011 = vmatprep.subr.mxu0 0.0
      %4012 = vmatpush1.msra.mxu0 0.0
      %4013 = vmatprep.subr.mxu0 0.0
      %4014 = vmatpush1.msra.mxu0 0.0
      %4015 = vmatprep.subr.mxu0 0.0
      %4016 = vmatpush1.msra.mxu0 0.0
      %4017 = vmatprep.subr.mxu0 0.0
      %4018 = vmatpush1.msra.mxu0 0.0
      %4019 = vmatprep.subr.mxu0 0.0
      %4020 = vmatpush1.msra.mxu0 0.0
      %4021 = vmatprep.subr.mxu0 0.0
      %4022 = vmatpush1.msra.mxu0 0.0
      %4023 = vmatprep.subr.mxu0 0.0
      %4024 = vmatpush1.msra.mxu0 0.0
      %4025 = vmatprep.subr.mxu0 0.0
      %4026 = vmatpush1.msra.mxu0 0.0
      %4027 = vmatprep.subr.mxu0 0.0
      %4028 = vmatpush1.msra.mxu0 0.0
      %4029 = vmatprep.subr.mxu0 0.0
      %4030 = vmatpush1.msra.mxu0 0.0
      %4031 = vmatprep.mubr.f32.mxu0 0.0
      %4032 = vmatmul.mubr.f32.gmra.mrb[0].mxu0 %v3962
      %v4033 = vpop.f32.mrb[0].mxu0
      %v4034 = vadd.f32 0.0, %v4033
      %v4035 = vpop.f32.mrb[0].mxu0
      %v4036 = vadd.f32 0.0, %v4035
      %4037 = vdwg.mxu0
      %4038 = vmatprep.subr.mxu0 %v3330
      %4039 = vmatpush1.msra.mxu0 %v3329
      %4040 = vmatprep.subr.mxu0 %v3334
      %4041 = vmatpush1.msra.mxu0 %v3333
      %4042 = vmatprep.subr.mxu0 %v3338
      %4043 = vmatpush1.msra.mxu0 %v3337
      %4044 = vmatprep.subr.mxu0 %v3342
      %4045 = vmatpush1.msra.mxu0 %v3341
      %4046 = vmatprep.subr.mxu0 %v3346
      %4047 = vmatpush1.msra.mxu0 %v3345
      %4048 = vmatprep.subr.mxu0 %v3350
      %4049 = vmatpush1.msra.mxu0 %v3349
      %4050 = vmatprep.subr.mxu0 %v3354
      %4051 = vmatpush1.msra.mxu0 %v3353
      %4052 = vmatprep.subr.mxu0 %v3358
      %4053 = vmatpush1.msra.mxu0 %v3357
      %4054 = vmatprep.subr.mxu0 %v3362
      %4055 = vmatpush1.msra.mxu0 %v3361
      %4056 = vmatprep.subr.mxu0 %v3366
      %4057 = vmatpush1.msra.mxu0 %v3365
      %4058 = vmatprep.subr.mxu0 %v3370
      %4059 = vmatpush1.msra.mxu0 %v3369
      %4060 = vmatprep.subr.mxu0 %v3374
      %4061 = vmatpush1.msra.mxu0 %v3373
      %4062 = vmatprep.subr.mxu0 %v3378
      %4063 = vmatpush1.msra.mxu0 %v3377
      %4064 = vmatprep.subr.mxu0 %v3382
      %4065 = vmatpush1.msra.mxu0 %v3381
      %4066 = vmatprep.subr.mxu0 %v3386
      %4067 = vmatpush1.msra.mxu0 %v3385
      %4068 = vmatprep.subr.mxu0 %v3390
      %4069 = vmatpush1.msra.mxu0 %v3389
      %4070 = vmatprep.subr.mxu0 0.0
      %4071 = vmatpush1.msra.mxu0 0.0
      %4072 = vmatprep.subr.mxu0 0.0
      %4073 = vmatpush1.msra.mxu0 0.0
      %4074 = vmatprep.subr.mxu0 0.0
      %4075 = vmatpush1.msra.mxu0 0.0
      %4076 = vmatprep.subr.mxu0 0.0
      %4077 = vmatpush1.msra.mxu0 0.0
      %4078 = vmatprep.subr.mxu0 0.0
      %4079 = vmatpush1.msra.mxu0 0.0
      %4080 = vmatprep.subr.mxu0 0.0
      %4081 = vmatpush1.msra.mxu0 0.0
      %4082 = vmatprep.subr.mxu0 0.0
      %4083 = vmatpush1.msra.mxu0 0.0
      %4084 = vmatprep.subr.mxu0 0.0
      %4085 = vmatpush1.msra.mxu0 0.0
      %4086 = vmatprep.subr.mxu0 0.0
      %4087 = vmatpush1.msra.mxu0 0.0
      %4088 = vmatprep.subr.mxu0 0.0
      %4089 = vmatpush1.msra.mxu0 0.0
      %4090 = vmatprep.subr.mxu0 0.0
      %4091 = vmatpush1.msra.mxu0 0.0
      %4092 = vmatprep.subr.mxu0 0.0
      %4093 = vmatpush1.msra.mxu0 0.0
      %4094 = vmatprep.subr.mxu0 0.0
      %4095 = vmatpush1.msra.mxu0 0.0
      %4096 = vmatprep.subr.mxu0 0.0
      %4097 = vmatpush1.msra.mxu0 0.0
      %4098 = vmatprep.subr.mxu0 0.0
      %4099 = vmatpush1.msra.mxu0 0.0
      %4100 = vmatprep.subr.mxu0 0.0
      %4101 = vmatpush1.msra.mxu0 0.0
      %4102 = vmatprep.mubr.f32.mxu0 0.0
      %4103 = vmatmul.mubr.f32.gmra.mrb[0].mxu0 %v3962
      %v4104 = vpop.f32.mrb[0].mxu0
      %v4105 = vadd.f32 0.0, %v4104
      %v4106 = vpop.f32.mrb[0].mxu0
      %v4107 = vadd.f32 0.0, %v4106
      %4108 = vdwg.mxu0
      %v4109 = vadd.f32 %v3963, %v4034
      %v4110 = vadd.f32 %v3964, %v4036
      %v4111 = vadd.f32 %v3965, %v4105
      %v4112 = vadd.f32 %v3966, %v4107
      %v4113 = vxor.u32 %v4109, 2147483648
      %v4114 = vmul.f32 %v4113, 1.442695
      %v4115 = vpow.pop %v4114
      %v4116 = vadd.f32 %v4115, 1.0
      %v4117 = vrcp.pop %v4116
      %v4118 = vmul.f32 1.0, %v4117
      %v4119 = vxor.u32 %v4110, 2147483648
      %v4120 = vmul.f32 %v4119, 1.442695
      %v4121 = vpow.pop %v4120
      %v4122 = vadd.f32 %v4121, 1.0
      %v4123 = vrcp.pop %v4122
      %v4124 = vmul.f32 1.0, %v4123
      %v4125 = vtanh.pop %v4111
      %v4126 = vxor.u32 %v4112, 2147483648
      %v4127 = vmul.f32 %v4126, 1.442695
      %v4128 = vpow.pop %v4127
      %v4129 = vadd.f32 %v4128, 1.0
      %v4130 = vrcp.pop %v4129
      %v4131 = vmul.f32 1.0, %v4130
      %v4132 = vmul.f32 %v4124, %v3960
      %v4133 = vmul.f32 %v4118, %v4125
      %v4134 = vadd.f32 %v4132, %v4133
      %v4135 = vtanh.pop %v4134
      %v4136 = vmul.f32 %v4131, %v4135
      %v4137 = vld [vmem:[#allocation13 + $0x60] sm:$0xff]
      %v4138 = vld [vmem:[#allocation13 + $0x68] sm:$0xff]
      %v4139 = vld [vmem:[#allocation13 + $0x70] sm:$0xff]
      %v4140 = vld [vmem:[#allocation13 + $0x78] sm:$0xff]
      %4141 = vmatprep.subr.mxu0 %v3328
      %4142 = vmatpush1.msra.mxu0 %v3327
      %4143 = vmatprep.subr.mxu0 %v3332
      %4144 = vmatpush1.msra.mxu0 %v3331
      %4145 = vmatprep.subr.mxu0 %v3336
      %4146 = vmatpush1.msra.mxu0 %v3335
      %4147 = vmatprep.subr.mxu0 %v3340
      %4148 = vmatpush1.msra.mxu0 %v3339
      %4149 = vmatprep.subr.mxu0 %v3344
      %4150 = vmatpush1.msra.mxu0 %v3343
      %4151 = vmatprep.subr.mxu0 %v3348
      %4152 = vmatpush1.msra.mxu0 %v3347
      %4153 = vmatprep.subr.mxu0 %v3352
      %4154 = vmatpush1.msra.mxu0 %v3351
      %4155 = vmatprep.subr.mxu0 %v3356
      %4156 = vmatpush1.msra.mxu0 %v3355
      %4157 = vmatprep.subr.mxu0 %v3360
      %4158 = vmatpush1.msra.mxu0 %v3359
      %4159 = vmatprep.subr.mxu0 %v3364
      %4160 = vmatpush1.msra.mxu0 %v3363
      %4161 = vmatprep.subr.mxu0 %v3368
      %4162 = vmatpush1.msra.mxu0 %v3367
      %4163 = vmatprep.subr.mxu0 %v3372
      %4164 = vmatpush1.msra.mxu0 %v3371
      %4165 = vmatprep.subr.mxu0 %v3376
      %4166 = vmatpush1.msra.mxu0 %v3375
      %4167 = vmatprep.subr.mxu0 %v3380
      %4168 = vmatpush1.msra.mxu0 %v3379
      %4169 = vmatprep.subr.mxu0 %v3384
      %4170 = vmatpush1.msra.mxu0 %v3383
      %4171 = vmatprep.subr.mxu0 %v3388
      %4172 = vmatpush1.msra.mxu0 %v3387
      %4173 = vmatprep.subr.mxu0 0.0
      %4174 = vmatpush1.msra.mxu0 0.0
      %4175 = vmatprep.subr.mxu0 0.0
      %4176 = vmatpush1.msra.mxu0 0.0
      %4177 = vmatprep.subr.mxu0 0.0
      %4178 = vmatpush1.msra.mxu0 0.0
      %4179 = vmatprep.subr.mxu0 0.0
      %4180 = vmatpush1.msra.mxu0 0.0
      %4181 = vmatprep.subr.mxu0 0.0
      %4182 = vmatpush1.msra.mxu0 0.0
      %4183 = vmatprep.subr.mxu0 0.0
      %4184 = vmatpush1.msra.mxu0 0.0
      %4185 = vmatprep.subr.mxu0 0.0
      %4186 = vmatpush1.msra.mxu0 0.0
      %4187 = vmatprep.subr.mxu0 0.0
      %4188 = vmatpush1.msra.mxu0 0.0
      %4189 = vmatprep.subr.mxu0 0.0
      %4190 = vmatpush1.msra.mxu0 0.0
      %4191 = vmatprep.subr.mxu0 0.0
      %4192 = vmatpush1.msra.mxu0 0.0
      %4193 = vmatprep.subr.mxu0 0.0
      %4194 = vmatpush1.msra.mxu0 0.0
      %4195 = vmatprep.subr.mxu0 0.0
      %4196 = vmatpush1.msra.mxu0 0.0
      %4197 = vmatprep.subr.mxu0 0.0
      %4198 = vmatpush1.msra.mxu0 0.0
      %4199 = vmatprep.subr.mxu0 0.0
      %4200 = vmatpush1.msra.mxu0 0.0
      %4201 = vmatprep.subr.mxu0 0.0
      %4202 = vmatpush1.msra.mxu0 0.0
      %4203 = vmatprep.subr.mxu0 0.0
      %4204 = vmatpush1.msra.mxu0 0.0
      %4205 = vmatprep.mubr.f32.mxu0 0.0
      %4206 = vmatmul.mubr.f32.gmra.mrb[0].mxu0 %v4136
      %v4207 = vpop.f32.mrb[0].mxu0
      %v4208 = vadd.f32 0.0, %v4207
      %v4209 = vpop.f32.mrb[0].mxu0
      %v4210 = vadd.f32 0.0, %v4209
      %4211 = vdwg.mxu0
      %4212 = vmatprep.subr.mxu0 %v3330
      %4213 = vmatpush1.msra.mxu0 %v3329
      %4214 = vmatprep.subr.mxu0 %v3334
      %4215 = vmatpush1.msra.mxu0 %v3333
      %4216 = vmatprep.subr.mxu0 %v3338
      %4217 = vmatpush1.msra.mxu0 %v3337
      %4218 = vmatprep.subr.mxu0 %v3342
      %4219 = vmatpush1.msra.mxu0 %v3341
      %4220 = vmatprep.subr.mxu0 %v3346
      %4221 = vmatpush1.msra.mxu0 %v3345
      %4222 = vmatprep.subr.mxu0 %v3350
      %4223 = vmatpush1.msra.mxu0 %v3349
      %4224 = vmatprep.subr.mxu0 %v3354
      %4225 = vmatpush1.msra.mxu0 %v3353
      %4226 = vmatprep.subr.mxu0 %v3358
      %4227 = vmatpush1.msra.mxu0 %v3357
      %4228 = vmatprep.subr.mxu0 %v3362
      %4229 = vmatpush1.msra.mxu0 %v3361
      %4230 = vmatprep.subr.mxu0 %v3366
      %4231 = vmatpush1.msra.mxu0 %v3365
      %4232 = vmatprep.subr.mxu0 %v3370
      %4233 = vmatpush1.msra.mxu0 %v3369
      %4234 = vmatprep.subr.mxu0 %v3374
      %4235 = vmatpush1.msra.mxu0 %v3373
      %4236 = vmatprep.subr.mxu0 %v3378
      %4237 = vmatpush1.msra.mxu0 %v3377
      %4238 = vmatprep.subr.mxu0 %v3382
      %4239 = vmatpush1.msra.mxu0 %v3381
      %4240 = vmatprep.subr.mxu0 %v3386
      %4241 = vmatpush1.msra.mxu0 %v3385
      %4242 = vmatprep.subr.mxu0 %v3390
      %4243 = vmatpush1.msra.mxu0 %v3389
      %4244 = vmatprep.subr.mxu0 0.0
      %4245 = vmatpush1.msra.mxu0 0.0
      %4246 = vmatprep.subr.mxu0 0.0
      %4247 = vmatpush1.msra.mxu0 0.0
      %4248 = vmatprep.subr.mxu0 0.0
      %4249 = vmatpush1.msra.mxu0 0.0
      %4250 = vmatprep.subr.mxu0 0.0
      %4251 = vmatpush1.msra.mxu0 0.0
      %4252 = vmatprep.subr.mxu0 0.0
      %4253 = vmatpush1.msra.mxu0 0.0
      %4254 = vmatprep.subr.mxu0 0.0
      %4255 = vmatpush1.msra.mxu0 0.0
      %4256 = vmatprep.subr.mxu0 0.0
      %4257 = vmatpush1.msra.mxu0 0.0
      %4258 = vmatprep.subr.mxu0 0.0
      %4259 = vmatpush1.msra.mxu0 0.0
      %4260 = vmatprep.subr.mxu0 0.0
      %4261 = vmatpush1.msra.mxu0 0.0
      %4262 = vmatprep.subr.mxu0 0.0
      %4263 = vmatpush1.msra.mxu0 0.0
      %4264 = vmatprep.subr.mxu0 0.0
      %4265 = vmatpush1.msra.mxu0 0.0
      %4266 = vmatprep.subr.mxu0 0.0
      %4267 = vmatpush1.msra.mxu0 0.0
      %4268 = vmatprep.subr.mxu0 0.0
      %4269 = vmatpush1.msra.mxu0 0.0
      %4270 = vmatprep.subr.mxu0 0.0
      %4271 = vmatpush1.msra.mxu0 0.0
      %4272 = vmatprep.subr.mxu0 0.0
      %4273 = vmatpush1.msra.mxu0 0.0
      %4274 = vmatprep.subr.mxu0 0.0
      %4275 = vmatpush1.msra.mxu0 0.0
      %4276 = vmatprep.mubr.f32.mxu0 0.0
      %4277 = vmatmul.mubr.f32.gmra.mrb[0].mxu0 %v4136
      %v4278 = vpop.f32.mrb[0].mxu0
      %v4279 = vadd.f32 0.0, %v4278
      %v4280 = vpop.f32.mrb[0].mxu0
      %v4281 = vadd.f32 0.0, %v4280
      %4282 = vdwg.mxu0
      %v4283 = vadd.f32 %v4137, %v4208
      %v4284 = vadd.f32 %v4138, %v4210
      %v4285 = vadd.f32 %v4139, %v4279
      %v4286 = vadd.f32 %v4140, %v4281
      %v4287 = vxor.u32 %v4283, 2147483648
      %v4288 = vmul.f32 %v4287, 1.442695
      %v4289 = vpow.pop %v4288
      %v4290 = vadd.f32 %v4289, 1.0
      %v4291 = vrcp.pop %v4290
      %v4292 = vmul.f32 1.0, %v4291
      %v4293 = vxor.u32 %v4284, 2147483648
      %v4294 = vmul.f32 %v4293, 1.442695
      %v4295 = vpow.pop %v4294
      %v4296 = vadd.f32 %v4295, 1.0
      %v4297 = vrcp.pop %v4296
      %v4298 = vmul.f32 1.0, %v4297
      %v4299 = vtanh.pop %v4285
      %v4300 = vxor.u32 %v4286, 2147483648
      %v4301 = vmul.f32 %v4300, 1.442695
      %v4302 = vpow.pop %v4301
      %v4303 = vadd.f32 %v4302, 1.0
      %v4304 = vrcp.pop %v4303
      %v4305 = vmul.f32 1.0, %v4304
      %v4306 = vmul.f32 %v4298, %v4134
      %v4307 = vmul.f32 %v4292, %v4299
      %v4308 = vadd.f32 %v4306, %v4307
      %v4309 = vtanh.pop %v4308
      %v4310 = vmul.f32 %v4305, %v4309
      %4311 = vst [vmem:[%s3611] sm:$0xff] %v4310
      %4312 = vst [vmem:[%s3613] sm:$0xff] %v4308
      %4313 = vst [vmem:[%s10] sm:$0xff] %v4310
      // Predicated region
      $region331: #{lstm_by_split_forward.1} parent=23 // pred_check
        %p4314 = pneg %p60
      $region332: #{lstm_by_split_forward.1} parent=23 // pred_check_branch
        %4316 = sbr.rel (%p4314) target = $region334
      $region333: #{lstm_by_split_forward.1} parent=23 // pred_region
        _
      $region334: #{lstm_by_split_forward.1} parent=23 // pred_fallthru
        _
      // Predicated region
      $region335: #{lstm_by_split_forward.1} parent=23 // pred_check
        %p4317 = pneg %p60
      $region336: #{lstm_by_split_forward.1} parent=23 // pred_check_branch
        %4319 = sbr.rel (%p4317) target = $region338
      $region337: #{lstm_by_split_forward.1} parent=23 // pred_region
        _
      $region338: #{lstm_by_split_forward.1} parent=23 // pred_fallthru
        _
    $region24: #{lstm_by_split_forward.1} parent=5 // pred_fallthru
      _
    %p4320 = scmp.le.s32.totalorder 2, %s16
    // Predicated region
    $region339: #{lstm_by_split_forward.1} parent=5 // pred_check
      %p4321 = pneg %p4320
    $region340: #{lstm_by_split_forward.1} parent=5 // pred_check_branch
      %4323 = sbr.rel (%p4321) target = $region342
    $region341: #{lstm_by_split_forward.1} parent=5 // pred_region
      %s4324 = ssub.s32 %s16, 2
    $region342: #{lstm_by_split_forward.1} parent=5 // pred_fallthru
      _
  $region6: #{lstm_by_split_forward.1} parent=0 // loop_footer
    %s20 = sadd.s32 1, %s16
  $region7: #{lstm_by_split_forward.1} parent=0 // loop_footer_branch
    %15 = sbr.rel target = $region3
  $region8: #{lstm_by_split_forward.1} parent=0 // loop_exit
    _
  %4325 = vsyncmov [#allocation15]
  %s4326 = vpop.sfrf %4325
  %p4327 = scmp.eq.s32.totalorder %s4326, 0
  %p4328 = pneg %p4327
  %4330 = shalt.err (%p4328)
  %s4331 = scalar_lea.sflag [#allocation15], 1
  %4332 = vsyncmov %s4331
  %s4333 = vpop.sfrf %4332
  %p4334 = scmp.eq.s32.totalorder %s4333, 0
  %p4335 = pneg %p4334
  %4337 = shalt.err (%p4335)
  %s4338 = scalar_lea.sflag [#allocation15], 2
  %4339 = vsyncmov %s4338
  %s4340 = vpop.sfrf %4339
  %p4341 = scmp.eq.s32.totalorder %s4340, 0
  %p4342 = pneg %p4341
  %4344 = shalt.err (%p4342)
  %s4345 = scalar_lea.sflag [#allocation15], 3
  %4346 = vsyncmov %s4345
  %s4347 = vpop.sfrf %4346
  %p4348 = scmp.eq.s32.totalorder %s4347, 0
  %p4349 = pneg %p4348
  %4351 = shalt.err (%p4349)
  %s4352 = scalar_lea.sflag [#allocation15], 4
  %4353 = vsyncmov %s4352
  %s4354 = vpop.sfrf %4353
  %p4355 = scmp.eq.s32.totalorder %s4354, 0
  %p4356 = pneg %p4355
  %4358 = shalt.err (%p4356)
  %s4359 = scalar_lea.sflag [#allocation15], 5
  %4360 = vsyncmov %s4359
  %s4361 = vpop.sfrf %4360
  %p4362 = scmp.eq.s32.totalorder %s4361, 0
  %p4363 = pneg %p4362
  %4365 = shalt.err (%p4363)
  %s4366 = scalar_lea.sflag [#allocation15], 6
  %4367 = vsyncmov %s4366
  %s4368 = vpop.sfrf %4367
  %p4369 = scmp.eq.s32.totalorder %s4368, 0
  %p4370 = pneg %p4369
  %4372 = shalt.err (%p4370)
  %s4373 = scalar_lea.sflag [#allocation15], 7
  %4374 = vsyncmov %s4373
  %s4375 = vpop.sfrf %4374
  %p4376 = scmp.eq.s32.totalorder %s4375, 0
  %p4377 = pneg %p4376
  %4379 = shalt.err (%p4377)
  %s4380 = scalar_lea.sflag [#allocation15], 8
  %4381 = vsyncmov %s4380
  %s4382 = vpop.sfrf %4381
  %p4383 = scmp.eq.s32.totalorder %s4382, 0
  %p4384 = pneg %p4383
  %4386 = shalt.err (%p4384)

</llo_original>
